<compile_context>
chip_gen: v5e
topology: v5e:2x2
jax: 0.10.0
libtpu: 0.0.40
codegen_flags: <defaults>
</compile_context>

<pallas_src>
import math
import numpy as np
import jax
import jax.numpy as jnp
from jax.experimental import pallas as pl
from jax.experimental.pallas import tpu as pltpu

_SP = 4          # spatial size (4x4), implied by the h_dim*2*4*4 flatten
_HW = _SP * _SP  # 16 pixels per image
_NCONV = 5


# --------------------------- fused forward kernel ---------------------------

def _discriminator_kernel(x_ref, mask_ref, convw_ref, convb_ref,
                          f1w_ref, fcw23_ref, fcb_ref, out_ref,
                          slab_ref, colbuf_ref, flat_ref):
    f32, bf16 = jnp.float32, jnp.bfloat16
    rows, c2 = x_ref.shape          # rows = block_batch * 16, row order (b,i,j)
    n1 = f1w_ref.shape[1]           # 2 * output_dim
    bb = out_ref.shape[0]           # batch elements in this grid block

    # Load the 9 per-tap border masks once (each (rows, 1) f32, 0/1).
    masks = [mask_ref[t] for t in range(9)]

    # ----- 5x (Conv2d 3x3 pad=1 + ReLU); activation resident as (rows,c2) f32
    act = x_ref[...]
    for layer in range(convw_ref.shape[0]):
        # Build the im2col slab in VMEM: lane block t holds the activation
        # shifted by tap t (a pure row roll in (b,i,j) order) with rows whose
        # source pixel falls outside the padding=1 border zeroed by the mask
        # (valid rows never cross an image boundary, so wrap-around is safe).
        for t in range(9):
            d = (t // 3 - 1) * _SP + (t % 3 - 1)      # row offset of tap t
            if d == 0:
                shifted = act                          # center tap: no shift
            else:
                shifted = pltpu.roll(act, shift=(-d) % rows, axis=0) * masks[t]
            slab_ref[:, t * c2:(t + 1) * c2] = shifted.astype(bf16)
        # One fused MXU matmul per conv layer: (rows, 9*c2) @ (9*c2, c2).
        z = jnp.dot(slab_ref[...], convw_ref[layer],
                    preferred_element_type=f32)
        act = jnp.maximum(z + convb_ref[layer], 0.0)   # f32 epilogue

    # ----- flatten: (b, ij) rows -> (b, ij*c2 + c) lanes (strided row gather;
    # PyTorch's (C,H,W) flatten order is folded into f1w at init).
    colbuf_ref[...] = act
    for ij in range(_HW):
        flat_ref[:, ij * c2:(ij + 1) * c2] = (
            colbuf_ref[pl.ds(ij, bb, stride=_HW), :].astype(bf16))

    # ----- fc1 + ReLU (single matmul, K = 16*c2), fc2 + ReLU, fc3
    h = jnp.dot(flat_ref[...], f1w_ref[...], preferred_element_type=f32)
    h = jnp.maximum(h + fcb_ref[:, 0:n1], 0.0)
    h = jnp.dot(h.astype(bf16), fcw23_ref[:, 0:n1],
                preferred_element_type=f32)
    h = jnp.maximum(h + fcb_ref[:, n1:2 * n1], 0.0)
    logits = (jnp.dot(h.astype(bf16), fcw23_ref[:, n1:n1 + 2],
                      preferred_element_type=f32)
              + fcb_ref[:, 2 * n1:2 * n1 + 2])

    # ----- numerically-stable log-softmax over the 2 classes (f32)
    z = logits - jnp.max(logits, axis=-1, keepdims=True)
    out_ref[...] = z - jnp.log(jnp.sum(jnp.exp(z), axis=-1, keepdims=True))


# ------------------------------ host wrapper --------------------------------

def _tap_masks(block_batch):
    """(9, block_batch*16, 1) f32 0/1 masks: mask[t, r] = 1 iff the source
    pixel of tap t for row r (row order (b,i,j)) lies inside the 4x4 image."""
    rows = block_batch * _HW
    m = np.zeros((9, rows, 1), np.float32)
    for t in range(9):
        dh, dw = t // 3 - 1, t % 3 - 1
        for b in range(block_batch):
            for i in range(_SP):
                for j in range(_SP):
                    if 0 <= i + dh < _SP and 0 <= j + dw < _SP:
                        m[t, b * _HW + i * _SP + j, 0] = 1.0
    return m


def discriminator_forward(x_nchw, kp, *, block_batch=None):
    """x_nchw: (B, h_dim, 4, 4) float32 (PyTorch layout). Returns (B, 2) log-probs."""
    b, cin, hh, ww = x_nchw.shape
    assert (hh, ww) == (_SP, _SP)
    c2 = kp["convw"].shape[2]        # 2 * h_dim
    n1 = kp["f1w"].shape[1]          # 2 * output_dim

    if block_batch is None:
        block_batch = 8 if (b > 8 and b % 8 == 0) else b
    assert b % block_batch == 0
    n_blocks = b // block_batch
    block_rows = block_batch * _HW

    # Tiny per-forward relayout: NCHW -> rows in (b,i,j) order, channels in
    # lanes, zero lane-padded from h_dim to c2 (conv1's weight is padded to
    # match at init, so results are unchanged).
    x2d = jnp.transpose(x_nchw, (0, 2, 3, 1)).reshape(b * _HW, cin)
    x2d = jnp.pad(x2d.astype(jnp.float32), ((0, 0), (0, c2 - cin)))
    masks = jnp.asarray(_tap_masks(block_batch))      # O(block) constant

    in_specs = [
        pl.BlockSpec((block_rows, c2), lambda i: (i, 0)),       # x (blocked)
        pl.BlockSpec((9, block_rows, 1), lambda i: (0, 0, 0)),  # tap masks
        pl.BlockSpec(kp["convw"].shape, lambda i: (0, 0, 0)),   # conv weights
        pl.BlockSpec(kp["convb"].shape, lambda i: (0, 0, 0)),   # conv biases
        pl.BlockSpec(kp["f1w"].shape, lambda i: (0, 0)),        # fc1 weight
        pl.BlockSpec(kp["fcw23"].shape, lambda i: (0, 0)),      # fc2|fc3 weight
        pl.BlockSpec(kp["fcb"].shape, lambda i: (0, 0)),        # fc biases
    ]
    out_specs = pl.BlockSpec((block_batch, 2), lambda i: (i, 0))
    scratch = [
        pltpu.VMEM((block_rows, 9 * c2), jnp.bfloat16),   # conv im2col slab
        pltpu.VMEM((block_rows, c2), jnp.float32),        # conv5 output buffer
        pltpu.VMEM((block_batch, _HW * c2), jnp.bfloat16),  # flattened features
    ]

    return pl.pallas_call(
        _discriminator_kernel,
        out_shape=jax.ShapeDtypeStruct((b, 2), jnp.float32),
        grid=(n_blocks,),
        in_specs=in_specs,
        out_specs=out_specs,
        scratch_shapes=scratch,
        compiler_params=pltpu.CompilerParams(
            dimension_semantics=("parallel",),            # batch blocks -> megacore
            vmem_limit_bytes=32 * 1024 * 1024),
    )(x2d, masks, kp["convw"], kp["convb"], kp["f1w"], kp["fcw23"], kp["fcb"])


# --------------------------- parameter handling ------------------------------

def init_params(key, h_dim, output_dim):
    """Parameters in PyTorch layouts (Conv2d: (Cout,Cin,3,3), Linear: (out,in))."""
    p = {}
    c2 = 2 * h_dim
    conv_dims = [(h_dim, c2)] + [(c2, c2)] * 4
    for i, (cin, cout) in enumerate(conv_dims):
        key, kw, kb = jax.random.split(key, 3)
        bound = 1.0 / math.sqrt(cin * 9)
        p[f"conv{i+1}_w"] = jax.random.uniform(kw, (cout, cin, 3, 3),
                                               jnp.float32, -bound, bound)
        p[f"conv{i+1}_b"] = jax.random.uniform(kb, (cout,),
                                               jnp.float32, -bound, bound)
    fc_dims = [(c2 * _HW, 2 * output_dim),
               (2 * output_dim, 2 * output_dim),
               (2 * output_dim, 2)]
    for i, (fin, fout) in enumerate(fc_dims):
        key, kw, kb = jax.random.split(key, 3)
        bound = 1.0 / math.sqrt(fin)
        p[f"fc{i+1}_w"] = jax.random.uniform(kw, (fout, fin),
                                             jnp.float32, -bound, bound)
        p[f"fc{i+1}_b"] = jax.random.uniform(kb, (fout,),
                                             jnp.float32, -bound, bound)
    return p


def prepare_params(p, h_dim, output_dim):
    """One-time conversion of PyTorch-layout params into kernel-ready tensors:
    per-layer conv weights concatenated over the 9 taps into (9*c2, c2) bf16
    matrices (conv1 zero-padded to c2 input channels) and stacked, fc1 weight
    with PyTorch's (C,H,W) flatten order folded in as a single (16*c2, n1)
    matrix, fc2/fc3 weights hstacked, and all fc biases packed into one row."""
    c2, n1 = 2 * h_dim, 2 * output_dim
    bf16, f32 = jnp.bfloat16, jnp.float32

    def pack_conv(w):   # (Cout, Cin, 3, 3) -> (9*c2, Cout), row = t*c2 + ci
        cout, cin = w.shape[0], w.shape[1]
        w = jnp.pad(w, ((0, 0), (0, c2 - cin), (0, 0), (0, 0)))
        return jnp.transpose(w, (2, 3, 1, 0)).reshape(9 * c2, cout).astype(bf16)

    convw = jnp.stack([pack_conv(p[f"conv{i}_w"]) for i in range(1, 6)])
    convb = jnp.stack([p[f"conv{i}_b"].reshape(1, c2)
                       for i in range(1, 6)]).astype(f32)
    # fc1: torch weight (n1, c2*16), torch input index = c*16 + ij;
    # kernel flat index = ij*c2 + c  ->  fold the permutation into the weight.
    f1w = jnp.transpose(p["fc1_w"].reshape(n1, c2, _HW),
                        (2, 1, 0)).reshape(_HW * c2, n1).astype(bf16)
    fcw23 = jnp.concatenate([p["fc2_w"].T, p["fc3_w"].T], axis=1).astype(bf16)
    fcb = jnp.concatenate([p["fc1_b"], p["fc2_b"],
                           p["fc3_b"]]).reshape(1, 2 * n1 + 2).astype(f32)
    return {"convw": convw, "convb": convb, "f1w": f1w,
            "fcw23": fcw23, "fcb": fcb}


# ----------------------- pure-XLA reference (validation) --------------------

def reference_forward(x_nchw, p):
    """f32 reference with exact PyTorch semantics (used only for checking)."""
    x = x_nchw.astype(jnp.float32)
    for i in range(1, 6):
        x = jax.lax.conv_general_dilated(
            x, p[f"conv{i}_w"], window_strides=(1, 1), padding=((1, 1), (1, 1)),
            dimension_numbers=("NCHW", "OIHW", "NCHW"))
        x = jnp.maximum(x + p[f"conv{i}_b"].reshape(1, -1, 1, 1), 0.0)
    feat = x.reshape(x.shape[0], -1)           # PyTorch .view: (C, H, W) order
    h = jnp.maximum(feat @ p["fc1_w"].T + p["fc1_b"], 0.0)
    h = jnp.maximum(h @ p["fc2_w"].T + p["fc2_b"], 0.0)
    logits = h @ p["fc3_w"].T + p["fc3_b"]
    return jax.nn.log_softmax(logits, axis=-1)


# ---------------------------------- main -------------------------------------

if __name__ == "__main__":
    h_dim, output_dim, batch = 8, 4, 2

    key = jax.random.PRNGKey(0)
    key_p, key_x = jax.random.split(key)
    params = init_params(key_p, h_dim, output_dim)
    kparams = prepare_params(params, h_dim, output_dim)

    # Input spatial size must be 4x4 (implied by the h_dim*2*4*4 flatten).
    x = jax.random.normal(key_x, (batch, h_dim, _SP, _SP), jnp.float32)

    fwd = jax.jit(discriminator_forward)
    out = jax.block_until_ready(fwd(x, kparams))

    assert out.shape == (batch, 2)
    # log-softmax rows must exp-sum to 1
    assert bool(jnp.allclose(jnp.sum(jnp.exp(out), axis=1), 1.0, atol=1e-4))
    # match the f32 PyTorch-semantics reference (tolerance covers bf16 rounding)
    ref = reference_forward(x, params)
    assert bool(jnp.allclose(out, ref, atol=0.1, rtol=0.1))
    print("KERNEL_OK")
</pallas_src>

<mosaic_0001>
module attributes {stable_mosaic.version = 11 : i64} {
  func.func @_discriminator_kernel(%arg0: i32, %arg1: memref<32x16xf32, #tpu.memory_space<vmem>>, %arg2: memref<9x32x1xf32, #tpu.memory_space<vmem>>, %arg3: memref<5x144x16xbf16, #tpu.memory_space<vmem>>, %arg4: memref<5x1x16xf32, #tpu.memory_space<vmem>>, %arg5: memref<256x8xbf16, #tpu.memory_space<vmem>>, %arg6: memref<8x10xbf16, #tpu.memory_space<vmem>>, %arg7: memref<1x18xf32, #tpu.memory_space<vmem>>, %arg8: memref<2x2xf32, #tpu.memory_space<vmem>>, %arg9: memref<32x144xbf16, #tpu.memory_space<vmem>>, %arg10: memref<32x16xf32, #tpu.memory_space<vmem>>, %arg11: memref<2x256xbf16, #tpu.memory_space<vmem>>) attributes {dimension_semantics = [#tpu.dimension_semantics<parallel>], iteration_bounds = array<i64: 1>, scalar_prefetch = 0 : i64, scratch_operands = 3 : i64, tpu.core_type = #tpu.core_type<tc>, window_params = [{transform_indices = @transform_0, window_bounds = array<i64: 32, 16>}, {pipeline_mode = #tpu.pipeline_mode<synchronous>, transform_indices = @transform_1, window_bounds = array<i64: 9, 32, 1>}, {pipeline_mode = #tpu.pipeline_mode<synchronous>, transform_indices = @transform_2, window_bounds = array<i64: 5, 144, 16>}, {pipeline_mode = #tpu.pipeline_mode<synchronous>, transform_indices = @transform_3, window_bounds = array<i64: 5, 1, 16>}, {pipeline_mode = #tpu.pipeline_mode<synchronous>, transform_indices = @transform_4, window_bounds = array<i64: 256, 8>}, {pipeline_mode = #tpu.pipeline_mode<synchronous>, transform_indices = @transform_5, window_bounds = array<i64: 8, 10>}, {pipeline_mode = #tpu.pipeline_mode<synchronous>, transform_indices = @transform_6, window_bounds = array<i64: 1, 18>}, {transform_indices = @transform_7, window_bounds = array<i64: 2, 2>}]} {
    %c0 = arith.constant 0 : index
    %c0_0 = arith.constant 0 : index
    %c0_1 = arith.constant 0 : index
    %0 = vector.load %arg2[%c0, %c0_0, %c0_1] : memref<9x32x1xf32, #tpu.memory_space<vmem>>, vector<1x32x1xf32>
    %1 = vector.shape_cast %0 : vector<1x32x1xf32> to vector<32x1xf32>
    %c1 = arith.constant 1 : index
    %c0_2 = arith.constant 0 : index
    %c0_3 = arith.constant 0 : index
    %2 = vector.load %arg2[%c1, %c0_2, %c0_3] : memref<9x32x1xf32, #tpu.memory_space<vmem>>, vector<1x32x1xf32>
    %3 = vector.shape_cast %2 : vector<1x32x1xf32> to vector<32x1xf32>
    %c2 = arith.constant 2 : index
    %c0_4 = arith.constant 0 : index
    %c0_5 = arith.constant 0 : index
    %4 = vector.load %arg2[%c2, %c0_4, %c0_5] : memref<9x32x1xf32, #tpu.memory_space<vmem>>, vector<1x32x1xf32>
    %5 = vector.shape_cast %4 : vector<1x32x1xf32> to vector<32x1xf32>
    %c3 = arith.constant 3 : index
    %c0_6 = arith.constant 0 : index
    %c0_7 = arith.constant 0 : index
    %6 = vector.load %arg2[%c3, %c0_6, %c0_7] : memref<9x32x1xf32, #tpu.memory_space<vmem>>, vector<1x32x1xf32>
    %7 = vector.shape_cast %6 : vector<1x32x1xf32> to vector<32x1xf32>
    %c5 = arith.constant 5 : index
    %c0_8 = arith.constant 0 : index
    %c0_9 = arith.constant 0 : index
    %8 = vector.load %arg2[%c5, %c0_8, %c0_9] : memref<9x32x1xf32, #tpu.memory_space<vmem>>, vector<1x32x1xf32>
    %9 = vector.shape_cast %8 : vector<1x32x1xf32> to vector<32x1xf32>
    %c6 = arith.constant 6 : index
    %c0_10 = arith.constant 0 : index
    %c0_11 = arith.constant 0 : index
    %10 = vector.load %arg2[%c6, %c0_10, %c0_11] : memref<9x32x1xf32, #tpu.memory_space<vmem>>, vector<1x32x1xf32>
    %11 = vector.shape_cast %10 : vector<1x32x1xf32> to vector<32x1xf32>
    %c7 = arith.constant 7 : index
    %c0_12 = arith.constant 0 : index
    %c0_13 = arith.constant 0 : index
    %12 = vector.load %arg2[%c7, %c0_12, %c0_13] : memref<9x32x1xf32, #tpu.memory_space<vmem>>, vector<1x32x1xf32>
    %13 = vector.shape_cast %12 : vector<1x32x1xf32> to vector<32x1xf32>
    %c8 = arith.constant 8 : index
    %c0_14 = arith.constant 0 : index
    %c0_15 = arith.constant 0 : index
    %14 = vector.load %arg2[%c8, %c0_14, %c0_15] : memref<9x32x1xf32, #tpu.memory_space<vmem>>, vector<1x32x1xf32>
    %15 = vector.shape_cast %14 : vector<1x32x1xf32> to vector<32x1xf32>
    %c0_16 = arith.constant 0 : index
    %c0_17 = arith.constant 0 : index
    %16 = vector.load %arg1[%c0_16, %c0_17] : memref<32x16xf32, #tpu.memory_space<vmem>>, vector<32x16xf32>
    %c5_i32 = arith.constant 5 : i32
    %17 = tpu.dynamic_rotate %16 by %c5_i32 dim 0 : vector<32x16xf32>, i32 -> vector<32x16xf32>
    %18 = vector.broadcast %1 : vector<32x1xf32> to vector<32x16xf32>
    %19 = arith.mulf %17, %18 : vector<32x16xf32>
    %20 = arith.truncf %19 : vector<32x16xf32> to vector<32x16xbf16>
    %c0_18 = arith.constant 0 : index
    %c0_19 = arith.constant 0 : index
    %21 = vector.load %arg9[%c0_18, %c0_19] : memref<32x144xbf16, #tpu.memory_space<vmem>>, vector<32x16xbf16>
    tpu.vector_store %arg9[%c0_18, %c0_19], %20 {strides = array<i32>} : memref<32x144xbf16, #tpu.memory_space<vmem>>, vector<32x16xbf16>,
    %c4_i32 = arith.constant 4 : i32
    %22 = tpu.dynamic_rotate %16 by %c4_i32 dim 0 : vector<32x16xf32>, i32 -> vector<32x16xf32>
    %23 = vector.broadcast %3 : vector<32x1xf32> to vector<32x16xf32>
    %24 = arith.mulf %22, %23 : vector<32x16xf32>
    %25 = arith.truncf %24 : vector<32x16xf32> to vector<32x16xbf16>
    %c0_20 = arith.constant 0 : index
    %c16 = arith.constant 16 : index
    %26 = vector.load %arg9[%c0_20, %c16] : memref<32x144xbf16, #tpu.memory_space<vmem>>, vector<32x16xbf16>
    tpu.vector_store %arg9[%c0_20, %c16], %25 {strides = array<i32>} : memref<32x144xbf16, #tpu.memory_space<vmem>>, vector<32x16xbf16>,
    %c3_i32 = arith.constant 3 : i32
    %27 = tpu.dynamic_rotate %16 by %c3_i32 dim 0 : vector<32x16xf32>, i32 -> vector<32x16xf32>
    %28 = vector.broadcast %5 : vector<32x1xf32> to vector<32x16xf32>
    %29 = arith.mulf %27, %28 : vector<32x16xf32>
    %30 = arith.truncf %29 : vector<32x16xf32> to vector<32x16xbf16>
    %c0_21 = arith.constant 0 : index
    %c32 = arith.constant 32 : index
    %31 = vector.load %arg9[%c0_21, %c32] : memref<32x144xbf16, #tpu.memory_space<vmem>>, vector<32x16xbf16>
    tpu.vector_store %arg9[%c0_21, %c32], %30 {strides = array<i32>} : memref<32x144xbf16, #tpu.memory_space<vmem>>, vector<32x16xbf16>,
    %c1_i32 = arith.constant 1 : i32
    %32 = tpu.dynamic_rotate %16 by %c1_i32 dim 0 : vector<32x16xf32>, i32 -> vector<32x16xf32>
    %33 = vector.broadcast %7 : vector<32x1xf32> to vector<32x16xf32>
    %34 = arith.mulf %32, %33 : vector<32x16xf32>
    %35 = arith.truncf %34 : vector<32x16xf32> to vector<32x16xbf16>
    %c0_22 = arith.constant 0 : index
    %c48 = arith.constant 48 : index
    %36 = vector.load %arg9[%c0_22, %c48] : memref<32x144xbf16, #tpu.memory_space<vmem>>, vector<32x16xbf16>
    tpu.vector_store %arg9[%c0_22, %c48], %35 {strides = array<i32>} : memref<32x144xbf16, #tpu.memory_space<vmem>>, vector<32x16xbf16>,
    %37 = arith.truncf %16 : vector<32x16xf32> to vector<32x16xbf16>
    %c0_23 = arith.constant 0 : index
    %c64 = arith.constant 64 : index
    %38 = vector.load %arg9[%c0_23, %c64] : memref<32x144xbf16, #tpu.memory_space<vmem>>, vector<32x16xbf16>
    tpu.vector_store %arg9[%c0_23, %c64], %37 {strides = array<i32>} : memref<32x144xbf16, #tpu.memory_space<vmem>>, vector<32x16xbf16>,
    %c31_i32 = arith.constant 31 : i32
    %39 = tpu.dynamic_rotate %16 by %c31_i32 dim 0 : vector<32x16xf32>, i32 -> vector<32x16xf32>
    %40 = vector.broadcast %9 : vector<32x1xf32> to vector<32x16xf32>
    %41 = arith.mulf %39, %40 : vector<32x16xf32>
    %42 = arith.truncf %41 : vector<32x16xf32> to vector<32x16xbf16>
    %c0_24 = arith.constant 0 : index
    %c80 = arith.constant 80 : index
    %43 = vector.load %arg9[%c0_24, %c80] : memref<32x144xbf16, #tpu.memory_space<vmem>>, vector<32x16xbf16>
    tpu.vector_store %arg9[%c0_24, %c80], %42 {strides = array<i32>} : memref<32x144xbf16, #tpu.memory_space<vmem>>, vector<32x16xbf16>,
    %c29_i32 = arith.constant 29 : i32
    %44 = tpu.dynamic_rotate %16 by %c29_i32 dim 0 : vector<32x16xf32>, i32 -> vector<32x16xf32>
    %45 = vector.broadcast %11 : vector<32x1xf32> to vector<32x16xf32>
    %46 = arith.mulf %44, %45 : vector<32x16xf32>
    %47 = arith.truncf %46 : vector<32x16xf32> to vector<32x16xbf16>
    %c0_25 = arith.constant 0 : index
    %c96 = arith.constant 96 : index
    %48 = vector.load %arg9[%c0_25, %c96] : memref<32x144xbf16, #tpu.memory_space<vmem>>, vector<32x16xbf16>
    tpu.vector_store %arg9[%c0_25, %c96], %47 {strides = array<i32>} : memref<32x144xbf16, #tpu.memory_space<vmem>>, vector<32x16xbf16>,
    %c28_i32 = arith.constant 28 : i32
    %49 = tpu.dynamic_rotate %16 by %c28_i32 dim 0 : vector<32x16xf32>, i32 -> vector<32x16xf32>
    %50 = vector.broadcast %13 : vector<32x1xf32> to vector<32x16xf32>
    %51 = arith.mulf %49, %50 : vector<32x16xf32>
    %52 = arith.truncf %51 : vector<32x16xf32> to vector<32x16xbf16>
    %c0_26 = arith.constant 0 : index
    %c112 = arith.constant 112 : index
    %53 = vector.load %arg9[%c0_26, %c112] : memref<32x144xbf16, #tpu.memory_space<vmem>>, vector<32x16xbf16>
    tpu.vector_store %arg9[%c0_26, %c112], %52 {strides = array<i32>} : memref<32x144xbf16, #tpu.memory_space<vmem>>, vector<32x16xbf16>,
    %c27_i32 = arith.constant 27 : i32
    %54 = tpu.dynamic_rotate %16 by %c27_i32 dim 0 : vector<32x16xf32>, i32 -> vector<32x16xf32>
    %55 = vector.broadcast %15 : vector<32x1xf32> to vector<32x16xf32>
    %56 = arith.mulf %54, %55 : vector<32x16xf32>
    %57 = arith.truncf %56 : vector<32x16xf32> to vector<32x16xbf16>
    %c0_27 = arith.constant 0 : index
    %c128 = arith.constant 128 : index
    %58 = vector.load %arg9[%c0_27, %c128] : memref<32x144xbf16, #tpu.memory_space<vmem>>, vector<32x16xbf16>
    tpu.vector_store %arg9[%c0_27, %c128], %57 {strides = array<i32>} : memref<32x144xbf16, #tpu.memory_space<vmem>>, vector<32x16xbf16>,
    %c0_28 = arith.constant 0 : index
    %c0_29 = arith.constant 0 : index
    %59 = vector.load %arg9[%c0_28, %c0_29] : memref<32x144xbf16, #tpu.memory_space<vmem>>, vector<32x144xbf16>
    %c0_30 = arith.constant 0 : index
    %c0_31 = arith.constant 0 : index
    %c0_32 = arith.constant 0 : index
    %60 = vector.load %arg3[%c0_30, %c0_31, %c0_32] : memref<5x144x16xbf16, #tpu.memory_space<vmem>>, vector<1x144x16xbf16>
    %61 = vector.shape_cast %60 : vector<1x144x16xbf16> to vector<144x16xbf16>
    %cst = arith.constant dense<0.000000e+00> : vector<32x16xf32>
    %62 = tpu.matmul %59, %61, %cst {dimension_numbers = #tpu.dot_dimension_numbers<[1], [0], [0], [1], [0, 0, 1, 1], [], []>} : vector<32x144xbf16>, vector<144x16xbf16>, vector<32x16xf32> -> vector<32x16xf32>
    %c0_33 = arith.constant 0 : index
    %c0_34 = arith.constant 0 : index
    %c0_35 = arith.constant 0 : index
    %63 = vector.load %arg4[%c0_33, %c0_34, %c0_35] : memref<5x1x16xf32, #tpu.memory_space<vmem>>, vector<1x1x16xf32>
    %64 = vector.shape_cast %63 : vector<1x1x16xf32> to vector<1x16xf32>
    %65 = vector.broadcast %64 : vector<1x16xf32> to vector<32x16xf32>
    %66 = arith.addf %62, %65 : vector<32x16xf32>
    %cst_36 = arith.constant 0.000000e+00 : f32
    %67 = vector.broadcast %cst_36 : f32 to vector<32x16xf32>
    %68 = arith.maximumf %66, %67 : vector<32x16xf32>
    %c5_i32_37 = arith.constant 5 : i32
    %69 = tpu.dynamic_rotate %68 by %c5_i32_37 dim 0 : vector<32x16xf32>, i32 -> vector<32x16xf32>
    %70 = vector.broadcast %1 : vector<32x1xf32> to vector<32x16xf32>
    %71 = arith.mulf %69, %70 : vector<32x16xf32>
    %72 = arith.truncf %71 : vector<32x16xf32> to vector<32x16xbf16>
    %c0_38 = arith.constant 0 : index
    %c0_39 = arith.constant 0 : index
    %73 = vector.load %arg9[%c0_38, %c0_39] : memref<32x144xbf16, #tpu.memory_space<vmem>>, vector<32x16xbf16>
    tpu.vector_store %arg9[%c0_38, %c0_39], %72 {strides = array<i32>} : memref<32x144xbf16, #tpu.memory_space<vmem>>, vector<32x16xbf16>,
    %c4_i32_40 = arith.constant 4 : i32
    %74 = tpu.dynamic_rotate %68 by %c4_i32_40 dim 0 : vector<32x16xf32>, i32 -> vector<32x16xf32>
    %75 = vector.broadcast %3 : vector<32x1xf32> to vector<32x16xf32>
    %76 = arith.mulf %74, %75 : vector<32x16xf32>
    %77 = arith.truncf %76 : vector<32x16xf32> to vector<32x16xbf16>
    %c0_41 = arith.constant 0 : index
    %c16_42 = arith.constant 16 : index
    %78 = vector.load %arg9[%c0_41, %c16_42] : memref<32x144xbf16, #tpu.memory_space<vmem>>, vector<32x16xbf16>
    tpu.vector_store %arg9[%c0_41, %c16_42], %77 {strides = array<i32>} : memref<32x144xbf16, #tpu.memory_space<vmem>>, vector<32x16xbf16>,
    %c3_i32_43 = arith.constant 3 : i32
    %79 = tpu.dynamic_rotate %68 by %c3_i32_43 dim 0 : vector<32x16xf32>, i32 -> vector<32x16xf32>
    %80 = vector.broadcast %5 : vector<32x1xf32> to vector<32x16xf32>
    %81 = arith.mulf %79, %80 : vector<32x16xf32>
    %82 = arith.truncf %81 : vector<32x16xf32> to vector<32x16xbf16>
    %c0_44 = arith.constant 0 : index
    %c32_45 = arith.constant 32 : index
    %83 = vector.load %arg9[%c0_44, %c32_45] : memref<32x144xbf16, #tpu.memory_space<vmem>>, vector<32x16xbf16>
    tpu.vector_store %arg9[%c0_44, %c32_45], %82 {strides = array<i32>} : memref<32x144xbf16, #tpu.memory_space<vmem>>, vector<32x16xbf16>,
    %c1_i32_46 = arith.constant 1 : i32
    %84 = tpu.dynamic_rotate %68 by %c1_i32_46 dim 0 : vector<32x16xf32>, i32 -> vector<32x16xf32>
    %85 = vector.broadcast %7 : vector<32x1xf32> to vector<32x16xf32>
    %86 = arith.mulf %84, %85 : vector<32x16xf32>
    %87 = arith.truncf %86 : vector<32x16xf32> to vector<32x16xbf16>
    %c0_47 = arith.constant 0 : index
    %c48_48 = arith.constant 48 : index
    %88 = vector.load %arg9[%c0_47, %c48_48] : memref<32x144xbf16, #tpu.memory_space<vmem>>, vector<32x16xbf16>
    tpu.vector_store %arg9[%c0_47, %c48_48], %87 {strides = array<i32>} : memref<32x144xbf16, #tpu.memory_space<vmem>>, vector<32x16xbf16>,
    %89 = arith.truncf %68 : vector<32x16xf32> to vector<32x16xbf16>
    %c0_49 = arith.constant 0 : index
    %c64_50 = arith.constant 64 : index
    %90 = vector.load %arg9[%c0_49, %c64_50] : memref<32x144xbf16, #tpu.memory_space<vmem>>, vector<32x16xbf16>
    tpu.vector_store %arg9[%c0_49, %c64_50], %89 {strides = array<i32>} : memref<32x144xbf16, #tpu.memory_space<vmem>>, vector<32x16xbf16>,
    %c31_i32_51 = arith.constant 31 : i32
    %91 = tpu.dynamic_rotate %68 by %c31_i32_51 dim 0 : vector<32x16xf32>, i32 -> vector<32x16xf32>
    %92 = vector.broadcast %9 : vector<32x1xf32> to vector<32x16xf32>
    %93 = arith.mulf %91, %92 : vector<32x16xf32>
    %94 = arith.truncf %93 : vector<32x16xf32> to vector<32x16xbf16>
    %c0_52 = arith.constant 0 : index
    %c80_53 = arith.constant 80 : index
    %95 = vector.load %arg9[%c0_52, %c80_53] : memref<32x144xbf16, #tpu.memory_space<vmem>>, vector<32x16xbf16>
    tpu.vector_store %arg9[%c0_52, %c80_53], %94 {strides = array<i32>} : memref<32x144xbf16, #tpu.memory_space<vmem>>, vector<32x16xbf16>,
    %c29_i32_54 = arith.constant 29 : i32
    %96 = tpu.dynamic_rotate %68 by %c29_i32_54 dim 0 : vector<32x16xf32>, i32 -> vector<32x16xf32>
    %97 = vector.broadcast %11 : vector<32x1xf32> to vector<32x16xf32>
    %98 = arith.mulf %96, %97 : vector<32x16xf32>
    %99 = arith.truncf %98 : vector<32x16xf32> to vector<32x16xbf16>
    %c0_55 = arith.constant 0 : index
    %c96_56 = arith.constant 96 : index
    %100 = vector.load %arg9[%c0_55, %c96_56] : memref<32x144xbf16, #tpu.memory_space<vmem>>, vector<32x16xbf16>
    tpu.vector_store %arg9[%c0_55, %c96_56], %99 {strides = array<i32>} : memref<32x144xbf16, #tpu.memory_space<vmem>>, vector<32x16xbf16>,
    %c28_i32_57 = arith.constant 28 : i32
    %101 = tpu.dynamic_rotate %68 by %c28_i32_57 dim 0 : vector<32x16xf32>, i32 -> vector<32x16xf32>
    %102 = vector.broadcast %13 : vector<32x1xf32> to vector<32x16xf32>
    %103 = arith.mulf %101, %102 : vector<32x16xf32>
    %104 = arith.truncf %103 : vector<32x16xf32> to vector<32x16xbf16>
    %c0_58 = arith.constant 0 : index
    %c112_59 = arith.constant 112 : index
    %105 = vector.load %arg9[%c0_58, %c112_59] : memref<32x144xbf16, #tpu.memory_space<vmem>>, vector<32x16xbf16>
    tpu.vector_store %arg9[%c0_58, %c112_59], %104 {strides = array<i32>} : memref<32x144xbf16, #tpu.memory_space<vmem>>, vector<32x16xbf16>,
    %c27_i32_60 = arith.constant 27 : i32
    %106 = tpu.dynamic_rotate %68 by %c27_i32_60 dim 0 : vector<32x16xf32>, i32 -> vector<32x16xf32>
    %107 = vector.broadcast %15 : vector<32x1xf32> to vector<32x16xf32>
    %108 = arith.mulf %106, %107 : vector<32x16xf32>
    %109 = arith.truncf %108 : vector<32x16xf32> to vector<32x16xbf16>
    %c0_61 = arith.constant 0 : index
    %c128_62 = arith.constant 128 : index
    %110 = vector.load %arg9[%c0_61, %c128_62] : memref<32x144xbf16, #tpu.memory_space<vmem>>, vector<32x16xbf16>
    tpu.vector_store %arg9[%c0_61, %c128_62], %109 {strides = array<i32>} : memref<32x144xbf16, #tpu.memory_space<vmem>>, vector<32x16xbf16>,
    %c0_63 = arith.constant 0 : index
    %c0_64 = arith.constant 0 : index
    %111 = vector.load %arg9[%c0_63, %c0_64] : memref<32x144xbf16, #tpu.memory_space<vmem>>, vector<32x144xbf16>
    %c1_65 = arith.constant 1 : index
    %c0_66 = arith.constant 0 : index
    %c0_67 = arith.constant 0 : index
    %112 = vector.load %arg3[%c1_65, %c0_66, %c0_67] : memref<5x144x16xbf16, #tpu.memory_space<vmem>>, vector<1x144x16xbf16>
    %113 = vector.shape_cast %112 : vector<1x144x16xbf16> to vector<144x16xbf16>
    %cst_68 = arith.constant dense<0.000000e+00> : vector<32x16xf32>
    %114 = tpu.matmul %111, %113, %cst_68 {dimension_numbers = #tpu.dot_dimension_numbers<[1], [0], [0], [1], [0, 0, 1, 1], [], []>} : vector<32x144xbf16>, vector<144x16xbf16>, vector<32x16xf32> -> vector<32x16xf32>
    %c1_69 = arith.constant 1 : index
    %c0_70 = arith.constant 0 : index
    %c0_71 = arith.constant 0 : index
    %115 = vector.load %arg4[%c1_69, %c0_70, %c0_71] : memref<5x1x16xf32, #tpu.memory_space<vmem>>, vector<1x1x16xf32>
    %116 = vector.shape_cast %115 : vector<1x1x16xf32> to vector<1x16xf32>
    %117 = vector.broadcast %116 : vector<1x16xf32> to vector<32x16xf32>
    %118 = arith.addf %114, %117 : vector<32x16xf32>
    %cst_72 = arith.constant 0.000000e+00 : f32
    %119 = vector.broadcast %cst_72 : f32 to vector<32x16xf32>
    %120 = arith.maximumf %118, %119 : vector<32x16xf32>
    %c5_i32_73 = arith.constant 5 : i32
    %121 = tpu.dynamic_rotate %120 by %c5_i32_73 dim 0 : vector<32x16xf32>, i32 -> vector<32x16xf32>
    %122 = vector.broadcast %1 : vector<32x1xf32> to vector<32x16xf32>
    %123 = arith.mulf %121, %122 : vector<32x16xf32>
    %124 = arith.truncf %123 : vector<32x16xf32> to vector<32x16xbf16>
    %c0_74 = arith.constant 0 : index
    %c0_75 = arith.constant 0 : index
    %125 = vector.load %arg9[%c0_74, %c0_75] : memref<32x144xbf16, #tpu.memory_space<vmem>>, vector<32x16xbf16>
    tpu.vector_store %arg9[%c0_74, %c0_75], %124 {strides = array<i32>} : memref<32x144xbf16, #tpu.memory_space<vmem>>, vector<32x16xbf16>,
    %c4_i32_76 = arith.constant 4 : i32
    %126 = tpu.dynamic_rotate %120 by %c4_i32_76 dim 0 : vector<32x16xf32>, i32 -> vector<32x16xf32>
    %127 = vector.broadcast %3 : vector<32x1xf32> to vector<32x16xf32>
    %128 = arith.mulf %126, %127 : vector<32x16xf32>
    %129 = arith.truncf %128 : vector<32x16xf32> to vector<32x16xbf16>
    %c0_77 = arith.constant 0 : index
    %c16_78 = arith.constant 16 : index
    %130 = vector.load %arg9[%c0_77, %c16_78] : memref<32x144xbf16, #tpu.memory_space<vmem>>, vector<32x16xbf16>
    tpu.vector_store %arg9[%c0_77, %c16_78], %129 {strides = array<i32>} : memref<32x144xbf16, #tpu.memory_space<vmem>>, vector<32x16xbf16>,
    %c3_i32_79 = arith.constant 3 : i32
    %131 = tpu.dynamic_rotate %120 by %c3_i32_79 dim 0 : vector<32x16xf32>, i32 -> vector<32x16xf32>
    %132 = vector.broadcast %5 : vector<32x1xf32> to vector<32x16xf32>
    %133 = arith.mulf %131, %132 : vector<32x16xf32>
    %134 = arith.truncf %133 : vector<32x16xf32> to vector<32x16xbf16>
    %c0_80 = arith.constant 0 : index
    %c32_81 = arith.constant 32 : index
    %135 = vector.load %arg9[%c0_80, %c32_81] : memref<32x144xbf16, #tpu.memory_space<vmem>>, vector<32x16xbf16>
    tpu.vector_store %arg9[%c0_80, %c32_81], %134 {strides = array<i32>} : memref<32x144xbf16, #tpu.memory_space<vmem>>, vector<32x16xbf16>,
    %c1_i32_82 = arith.constant 1 : i32
    %136 = tpu.dynamic_rotate %120 by %c1_i32_82 dim 0 : vector<32x16xf32>, i32 -> vector<32x16xf32>
    %137 = vector.broadcast %7 : vector<32x1xf32> to vector<32x16xf32>
    %138 = arith.mulf %136, %137 : vector<32x16xf32>
    %139 = arith.truncf %138 : vector<32x16xf32> to vector<32x16xbf16>
    %c0_83 = arith.constant 0 : index
    %c48_84 = arith.constant 48 : index
    %140 = vector.load %arg9[%c0_83, %c48_84] : memref<32x144xbf16, #tpu.memory_space<vmem>>, vector<32x16xbf16>
    tpu.vector_store %arg9[%c0_83, %c48_84], %139 {strides = array<i32>} : memref<32x144xbf16, #tpu.memory_space<vmem>>, vector<32x16xbf16>,
    %141 = arith.truncf %120 : vector<32x16xf32> to vector<32x16xbf16>
    %c0_85 = arith.constant 0 : index
    %c64_86 = arith.constant 64 : index
    %142 = vector.load %arg9[%c0_85, %c64_86] : memref<32x144xbf16, #tpu.memory_space<vmem>>, vector<32x16xbf16>
    tpu.vector_store %arg9[%c0_85, %c64_86], %141 {strides = array<i32>} : memref<32x144xbf16, #tpu.memory_space<vmem>>, vector<32x16xbf16>,
    %c31_i32_87 = arith.constant 31 : i32
    %143 = tpu.dynamic_rotate %120 by %c31_i32_87 dim 0 : vector<32x16xf32>, i32 -> vector<32x16xf32>
    %144 = vector.broadcast %9 : vector<32x1xf32> to vector<32x16xf32>
    %145 = arith.mulf %143, %144 : vector<32x16xf32>
    %146 = arith.truncf %145 : vector<32x16xf32> to vector<32x16xbf16>
    %c0_88 = arith.constant 0 : index
    %c80_89 = arith.constant 80 : index
    %147 = vector.load %arg9[%c0_88, %c80_89] : memref<32x144xbf16, #tpu.memory_space<vmem>>, vector<32x16xbf16>
    tpu.vector_store %arg9[%c0_88, %c80_89], %146 {strides = array<i32>} : memref<32x144xbf16, #tpu.memory_space<vmem>>, vector<32x16xbf16>,
    %c29_i32_90 = arith.constant 29 : i32
    %148 = tpu.dynamic_rotate %120 by %c29_i32_90 dim 0 : vector<32x16xf32>, i32 -> vector<32x16xf32>
    %149 = vector.broadcast %11 : vector<32x1xf32> to vector<32x16xf32>
    %150 = arith.mulf %148, %149 : vector<32x16xf32>
    %151 = arith.truncf %150 : vector<32x16xf32> to vector<32x16xbf16>
    %c0_91 = arith.constant 0 : index
    %c96_92 = arith.constant 96 : index
    %152 = vector.load %arg9[%c0_91, %c96_92] : memref<32x144xbf16, #tpu.memory_space<vmem>>, vector<32x16xbf16>
    tpu.vector_store %arg9[%c0_91, %c96_92], %151 {strides = array<i32>} : memref<32x144xbf16, #tpu.memory_space<vmem>>, vector<32x16xbf16>,
    %c28_i32_93 = arith.constant 28 : i32
    %153 = tpu.dynamic_rotate %120 by %c28_i32_93 dim 0 : vector<32x16xf32>, i32 -> vector<32x16xf32>
    %154 = vector.broadcast %13 : vector<32x1xf32> to vector<32x16xf32>
    %155 = arith.mulf %153, %154 : vector<32x16xf32>
    %156 = arith.truncf %155 : vector<32x16xf32> to vector<32x16xbf16>
    %c0_94 = arith.constant 0 : index
    %c112_95 = arith.constant 112 : index
    %157 = vector.load %arg9[%c0_94, %c112_95] : memref<32x144xbf16, #tpu.memory_space<vmem>>, vector<32x16xbf16>
    tpu.vector_store %arg9[%c0_94, %c112_95], %156 {strides = array<i32>} : memref<32x144xbf16, #tpu.memory_space<vmem>>, vector<32x16xbf16>,
    %c27_i32_96 = arith.constant 27 : i32
    %158 = tpu.dynamic_rotate %120 by %c27_i32_96 dim 0 : vector<32x16xf32>, i32 -> vector<32x16xf32>
    %159 = vector.broadcast %15 : vector<32x1xf32> to vector<32x16xf32>
    %160 = arith.mulf %158, %159 : vector<32x16xf32>
    %161 = arith.truncf %160 : vector<32x16xf32> to vector<32x16xbf16>
    %c0_97 = arith.constant 0 : index
    %c128_98 = arith.constant 128 : index
    %162 = vector.load %arg9[%c0_97, %c128_98] : memref<32x144xbf16, #tpu.memory_space<vmem>>, vector<32x16xbf16>
    tpu.vector_store %arg9[%c0_97, %c128_98], %161 {strides = array<i32>} : memref<32x144xbf16, #tpu.memory_space<vmem>>, vector<32x16xbf16>,
    %c0_99 = arith.constant 0 : index
    %c0_100 = arith.constant 0 : index
    %163 = vector.load %arg9[%c0_99, %c0_100] : memref<32x144xbf16, #tpu.memory_space<vmem>>, vector<32x144xbf16>
    %c2_101 = arith.constant 2 : index
    %c0_102 = arith.constant 0 : index
    %c0_103 = arith.constant 0 : index
    %164 = vector.load %arg3[%c2_101, %c0_102, %c0_103] : memref<5x144x16xbf16, #tpu.memory_space<vmem>>, vector<1x144x16xbf16>
    %165 = vector.shape_cast %164 : vector<1x144x16xbf16> to vector<144x16xbf16>
    %cst_104 = arith.constant dense<0.000000e+00> : vector<32x16xf32>
    %166 = tpu.matmul %163, %165, %cst_104 {dimension_numbers = #tpu.dot_dimension_numbers<[1], [0], [0], [1], [0, 0, 1, 1], [], []>} : vector<32x144xbf16>, vector<144x16xbf16>, vector<32x16xf32> -> vector<32x16xf32>
    %c2_105 = arith.constant 2 : index
    %c0_106 = arith.constant 0 : index
    %c0_107 = arith.constant 0 : index
    %167 = vector.load %arg4[%c2_105, %c0_106, %c0_107] : memref<5x1x16xf32, #tpu.memory_space<vmem>>, vector<1x1x16xf32>
    %168 = vector.shape_cast %167 : vector<1x1x16xf32> to vector<1x16xf32>
    %169 = vector.broadcast %168 : vector<1x16xf32> to vector<32x16xf32>
    %170 = arith.addf %166, %169 : vector<32x16xf32>
    %cst_108 = arith.constant 0.000000e+00 : f32
    %171 = vector.broadcast %cst_108 : f32 to vector<32x16xf32>
    %172 = arith.maximumf %170, %171 : vector<32x16xf32>
    %c5_i32_109 = arith.constant 5 : i32
    %173 = tpu.dynamic_rotate %172 by %c5_i32_109 dim 0 : vector<32x16xf32>, i32 -> vector<32x16xf32>
    %174 = vector.broadcast %1 : vector<32x1xf32> to vector<32x16xf32>
    %175 = arith.mulf %173, %174 : vector<32x16xf32>
    %176 = arith.truncf %175 : vector<32x16xf32> to vector<32x16xbf16>
    %c0_110 = arith.constant 0 : index
    %c0_111 = arith.constant 0 : index
    %177 = vector.load %arg9[%c0_110, %c0_111] : memref<32x144xbf16, #tpu.memory_space<vmem>>, vector<32x16xbf16>
    tpu.vector_store %arg9[%c0_110, %c0_111], %176 {strides = array<i32>} : memref<32x144xbf16, #tpu.memory_space<vmem>>, vector<32x16xbf16>,
    %c4_i32_112 = arith.constant 4 : i32
    %178 = tpu.dynamic_rotate %172 by %c4_i32_112 dim 0 : vector<32x16xf32>, i32 -> vector<32x16xf32>
    %179 = vector.broadcast %3 : vector<32x1xf32> to vector<32x16xf32>
    %180 = arith.mulf %178, %179 : vector<32x16xf32>
    %181 = arith.truncf %180 : vector<32x16xf32> to vector<32x16xbf16>
    %c0_113 = arith.constant 0 : index
    %c16_114 = arith.constant 16 : index
    %182 = vector.load %arg9[%c0_113, %c16_114] : memref<32x144xbf16, #tpu.memory_space<vmem>>, vector<32x16xbf16>
    tpu.vector_store %arg9[%c0_113, %c16_114], %181 {strides = array<i32>} : memref<32x144xbf16, #tpu.memory_space<vmem>>, vector<32x16xbf16>,
    %c3_i32_115 = arith.constant 3 : i32
    %183 = tpu.dynamic_rotate %172 by %c3_i32_115 dim 0 : vector<32x16xf32>, i32 -> vector<32x16xf32>
    %184 = vector.broadcast %5 : vector<32x1xf32> to vector<32x16xf32>
    %185 = arith.mulf %183, %184 : vector<32x16xf32>
    %186 = arith.truncf %185 : vector<32x16xf32> to vector<32x16xbf16>
    %c0_116 = arith.constant 0 : index
    %c32_117 = arith.constant 32 : index
    %187 = vector.load %arg9[%c0_116, %c32_117] : memref<32x144xbf16, #tpu.memory_space<vmem>>, vector<32x16xbf16>
    tpu.vector_store %arg9[%c0_116, %c32_117], %186 {strides = array<i32>} : memref<32x144xbf16, #tpu.memory_space<vmem>>, vector<32x16xbf16>,
    %c1_i32_118 = arith.constant 1 : i32
    %188 = tpu.dynamic_rotate %172 by %c1_i32_118 dim 0 : vector<32x16xf32>, i32 -> vector<32x16xf32>
    %189 = vector.broadcast %7 : vector<32x1xf32> to vector<32x16xf32>
    %190 = arith.mulf %188, %189 : vector<32x16xf32>
    %191 = arith.truncf %190 : vector<32x16xf32> to vector<32x16xbf16>
    %c0_119 = arith.constant 0 : index
    %c48_120 = arith.constant 48 : index
    %192 = vector.load %arg9[%c0_119, %c48_120] : memref<32x144xbf16, #tpu.memory_space<vmem>>, vector<32x16xbf16>
    tpu.vector_store %arg9[%c0_119, %c48_120], %191 {strides = array<i32>} : memref<32x144xbf16, #tpu.memory_space<vmem>>, vector<32x16xbf16>,
    %193 = arith.truncf %172 : vector<32x16xf32> to vector<32x16xbf16>
    %c0_121 = arith.constant 0 : index
    %c64_122 = arith.constant 64 : index
    %194 = vector.load %arg9[%c0_121, %c64_122] : memref<32x144xbf16, #tpu.memory_space<vmem>>, vector<32x16xbf16>
    tpu.vector_store %arg9[%c0_121, %c64_122], %193 {strides = array<i32>} : memref<32x144xbf16, #tpu.memory_space<vmem>>, vector<32x16xbf16>,
    %c31_i32_123 = arith.constant 31 : i32
    %195 = tpu.dynamic_rotate %172 by %c31_i32_123 dim 0 : vector<32x16xf32>, i32 -> vector<32x16xf32>
    %196 = vector.broadcast %9 : vector<32x1xf32> to vector<32x16xf32>
    %197 = arith.mulf %195, %196 : vector<32x16xf32>
    %198 = arith.truncf %197 : vector<32x16xf32> to vector<32x16xbf16>
    %c0_124 = arith.constant 0 : index
    %c80_125 = arith.constant 80 : index
    %199 = vector.load %arg9[%c0_124, %c80_125] : memref<32x144xbf16, #tpu.memory_space<vmem>>, vector<32x16xbf16>
    tpu.vector_store %arg9[%c0_124, %c80_125], %198 {strides = array<i32>} : memref<32x144xbf16, #tpu.memory_space<vmem>>, vector<32x16xbf16>,
    %c29_i32_126 = arith.constant 29 : i32
    %200 = tpu.dynamic_rotate %172 by %c29_i32_126 dim 0 : vector<32x16xf32>, i32 -> vector<32x16xf32>
    %201 = vector.broadcast %11 : vector<32x1xf32> to vector<32x16xf32>
    %202 = arith.mulf %200, %201 : vector<32x16xf32>
    %203 = arith.truncf %202 : vector<32x16xf32> to vector<32x16xbf16>
    %c0_127 = arith.constant 0 : index
    %c96_128 = arith.constant 96 : index
    %204 = vector.load %arg9[%c0_127, %c96_128] : memref<32x144xbf16, #tpu.memory_space<vmem>>, vector<32x16xbf16>
    tpu.vector_store %arg9[%c0_127, %c96_128], %203 {strides = array<i32>} : memref<32x144xbf16, #tpu.memory_space<vmem>>, vector<32x16xbf16>,
    %c28_i32_129 = arith.constant 28 : i32
    %205 = tpu.dynamic_rotate %172 by %c28_i32_129 dim 0 : vector<32x16xf32>, i32 -> vector<32x16xf32>
    %206 = vector.broadcast %13 : vector<32x1xf32> to vector<32x16xf32>
    %207 = arith.mulf %205, %206 : vector<32x16xf32>
    %208 = arith.truncf %207 : vector<32x16xf32> to vector<32x16xbf16>
    %c0_130 = arith.constant 0 : index
    %c112_131 = arith.constant 112 : index
    %209 = vector.load %arg9[%c0_130, %c112_131] : memref<32x144xbf16, #tpu.memory_space<vmem>>, vector<32x16xbf16>
    tpu.vector_store %arg9[%c0_130, %c112_131], %208 {strides = array<i32>} : memref<32x144xbf16, #tpu.memory_space<vmem>>, vector<32x16xbf16>,
    %c27_i32_132 = arith.constant 27 : i32
    %210 = tpu.dynamic_rotate %172 by %c27_i32_132 dim 0 : vector<32x16xf32>, i32 -> vector<32x16xf32>
    %211 = vector.broadcast %15 : vector<32x1xf32> to vector<32x16xf32>
    %212 = arith.mulf %210, %211 : vector<32x16xf32>
    %213 = arith.truncf %212 : vector<32x16xf32> to vector<32x16xbf16>
    %c0_133 = arith.constant 0 : index
    %c128_134 = arith.constant 128 : index
    %214 = vector.load %arg9[%c0_133, %c128_134] : memref<32x144xbf16, #tpu.memory_space<vmem>>, vector<32x16xbf16>
    tpu.vector_store %arg9[%c0_133, %c128_134], %213 {strides = array<i32>} : memref<32x144xbf16, #tpu.memory_space<vmem>>, vector<32x16xbf16>,
    %c0_135 = arith.constant 0 : index
    %c0_136 = arith.constant 0 : index
    %215 = vector.load %arg9[%c0_135, %c0_136] : memref<32x144xbf16, #tpu.memory_space<vmem>>, vector<32x144xbf16>
    %c3_137 = arith.constant 3 : index
    %c0_138 = arith.constant 0 : index
    %c0_139 = arith.constant 0 : index
    %216 = vector.load %arg3[%c3_137, %c0_138, %c0_139] : memref<5x144x16xbf16, #tpu.memory_space<vmem>>, vector<1x144x16xbf16>
    %217 = vector.shape_cast %216 : vector<1x144x16xbf16> to vector<144x16xbf16>
    %cst_140 = arith.constant dense<0.000000e+00> : vector<32x16xf32>
    %218 = tpu.matmul %215, %217, %cst_140 {dimension_numbers = #tpu.dot_dimension_numbers<[1], [0], [0], [1], [0, 0, 1, 1], [], []>} : vector<32x144xbf16>, vector<144x16xbf16>, vector<32x16xf32> -> vector<32x16xf32>
    %c3_141 = arith.constant 3 : index
    %c0_142 = arith.constant 0 : index
    %c0_143 = arith.constant 0 : index
    %219 = vector.load %arg4[%c3_141, %c0_142, %c0_143] : memref<5x1x16xf32, #tpu.memory_space<vmem>>, vector<1x1x16xf32>
    %220 = vector.shape_cast %219 : vector<1x1x16xf32> to vector<1x16xf32>
    %221 = vector.broadcast %220 : vector<1x16xf32> to vector<32x16xf32>
    %222 = arith.addf %218, %221 : vector<32x16xf32>
    %cst_144 = arith.constant 0.000000e+00 : f32
    %223 = vector.broadcast %cst_144 : f32 to vector<32x16xf32>
    %224 = arith.maximumf %222, %223 : vector<32x16xf32>
    %c5_i32_145 = arith.constant 5 : i32
    %225 = tpu.dynamic_rotate %224 by %c5_i32_145 dim 0 : vector<32x16xf32>, i32 -> vector<32x16xf32>
    %226 = vector.broadcast %1 : vector<32x1xf32> to vector<32x16xf32>
    %227 = arith.mulf %225, %226 : vector<32x16xf32>
    %228 = arith.truncf %227 : vector<32x16xf32> to vector<32x16xbf16>
    %c0_146 = arith.constant 0 : index
    %c0_147 = arith.constant 0 : index
    %229 = vector.load %arg9[%c0_146, %c0_147] : memref<32x144xbf16, #tpu.memory_space<vmem>>, vector<32x16xbf16>
    tpu.vector_store %arg9[%c0_146, %c0_147], %228 {strides = array<i32>} : memref<32x144xbf16, #tpu.memory_space<vmem>>, vector<32x16xbf16>,
    %c4_i32_148 = arith.constant 4 : i32
    %230 = tpu.dynamic_rotate %224 by %c4_i32_148 dim 0 : vector<32x16xf32>, i32 -> vector<32x16xf32>
    %231 = vector.broadcast %3 : vector<32x1xf32> to vector<32x16xf32>
    %232 = arith.mulf %230, %231 : vector<32x16xf32>
    %233 = arith.truncf %232 : vector<32x16xf32> to vector<32x16xbf16>
    %c0_149 = arith.constant 0 : index
    %c16_150 = arith.constant 16 : index
    %234 = vector.load %arg9[%c0_149, %c16_150] : memref<32x144xbf16, #tpu.memory_space<vmem>>, vector<32x16xbf16>
    tpu.vector_store %arg9[%c0_149, %c16_150], %233 {strides = array<i32>} : memref<32x144xbf16, #tpu.memory_space<vmem>>, vector<32x16xbf16>,
    %c3_i32_151 = arith.constant 3 : i32
    %235 = tpu.dynamic_rotate %224 by %c3_i32_151 dim 0 : vector<32x16xf32>, i32 -> vector<32x16xf32>
    %236 = vector.broadcast %5 : vector<32x1xf32> to vector<32x16xf32>
    %237 = arith.mulf %235, %236 : vector<32x16xf32>
    %238 = arith.truncf %237 : vector<32x16xf32> to vector<32x16xbf16>
    %c0_152 = arith.constant 0 : index
    %c32_153 = arith.constant 32 : index
    %239 = vector.load %arg9[%c0_152, %c32_153] : memref<32x144xbf16, #tpu.memory_space<vmem>>, vector<32x16xbf16>
    tpu.vector_store %arg9[%c0_152, %c32_153], %238 {strides = array<i32>} : memref<32x144xbf16, #tpu.memory_space<vmem>>, vector<32x16xbf16>,
    %c1_i32_154 = arith.constant 1 : i32
    %240 = tpu.dynamic_rotate %224 by %c1_i32_154 dim 0 : vector<32x16xf32>, i32 -> vector<32x16xf32>
    %241 = vector.broadcast %7 : vector<32x1xf32> to vector<32x16xf32>
    %242 = arith.mulf %240, %241 : vector<32x16xf32>
    %243 = arith.truncf %242 : vector<32x16xf32> to vector<32x16xbf16>
    %c0_155 = arith.constant 0 : index
    %c48_156 = arith.constant 48 : index
    %244 = vector.load %arg9[%c0_155, %c48_156] : memref<32x144xbf16, #tpu.memory_space<vmem>>, vector<32x16xbf16>
    tpu.vector_store %arg9[%c0_155, %c48_156], %243 {strides = array<i32>} : memref<32x144xbf16, #tpu.memory_space<vmem>>, vector<32x16xbf16>,
    %245 = arith.truncf %224 : vector<32x16xf32> to vector<32x16xbf16>
    %c0_157 = arith.constant 0 : index
    %c64_158 = arith.constant 64 : index
    %246 = vector.load %arg9[%c0_157, %c64_158] : memref<32x144xbf16, #tpu.memory_space<vmem>>, vector<32x16xbf16>
    tpu.vector_store %arg9[%c0_157, %c64_158], %245 {strides = array<i32>} : memref<32x144xbf16, #tpu.memory_space<vmem>>, vector<32x16xbf16>,
    %c31_i32_159 = arith.constant 31 : i32
    %247 = tpu.dynamic_rotate %224 by %c31_i32_159 dim 0 : vector<32x16xf32>, i32 -> vector<32x16xf32>
    %248 = vector.broadcast %9 : vector<32x1xf32> to vector<32x16xf32>
    %249 = arith.mulf %247, %248 : vector<32x16xf32>
    %250 = arith.truncf %249 : vector<32x16xf32> to vector<32x16xbf16>
    %c0_160 = arith.constant 0 : index
    %c80_161 = arith.constant 80 : index
    %251 = vector.load %arg9[%c0_160, %c80_161] : memref<32x144xbf16, #tpu.memory_space<vmem>>, vector<32x16xbf16>
    tpu.vector_store %arg9[%c0_160, %c80_161], %250 {strides = array<i32>} : memref<32x144xbf16, #tpu.memory_space<vmem>>, vector<32x16xbf16>,
    %c29_i32_162 = arith.constant 29 : i32
    %252 = tpu.dynamic_rotate %224 by %c29_i32_162 dim 0 : vector<32x16xf32>, i32 -> vector<32x16xf32>
    %253 = vector.broadcast %11 : vector<32x1xf32> to vector<32x16xf32>
    %254 = arith.mulf %252, %253 : vector<32x16xf32>
    %255 = arith.truncf %254 : vector<32x16xf32> to vector<32x16xbf16>
    %c0_163 = arith.constant 0 : index
    %c96_164 = arith.constant 96 : index
    %256 = vector.load %arg9[%c0_163, %c96_164] : memref<32x144xbf16, #tpu.memory_space<vmem>>, vector<32x16xbf16>
    tpu.vector_store %arg9[%c0_163, %c96_164], %255 {strides = array<i32>} : memref<32x144xbf16, #tpu.memory_space<vmem>>, vector<32x16xbf16>,
    %c28_i32_165 = arith.constant 28 : i32
    %257 = tpu.dynamic_rotate %224 by %c28_i32_165 dim 0 : vector<32x16xf32>, i32 -> vector<32x16xf32>
    %258 = vector.broadcast %13 : vector<32x1xf32> to vector<32x16xf32>
    %259 = arith.mulf %257, %258 : vector<32x16xf32>
    %260 = arith.truncf %259 : vector<32x16xf32> to vector<32x16xbf16>
    %c0_166 = arith.constant 0 : index
    %c112_167 = arith.constant 112 : index
    %261 = vector.load %arg9[%c0_166, %c112_167] : memref<32x144xbf16, #tpu.memory_space<vmem>>, vector<32x16xbf16>
    tpu.vector_store %arg9[%c0_166, %c112_167], %260 {strides = array<i32>} : memref<32x144xbf16, #tpu.memory_space<vmem>>, vector<32x16xbf16>,
    %c27_i32_168 = arith.constant 27 : i32
    %262 = tpu.dynamic_rotate %224 by %c27_i32_168 dim 0 : vector<32x16xf32>, i32 -> vector<32x16xf32>
    %263 = vector.broadcast %15 : vector<32x1xf32> to vector<32x16xf32>
    %264 = arith.mulf %262, %263 : vector<32x16xf32>
    %265 = arith.truncf %264 : vector<32x16xf32> to vector<32x16xbf16>
    %c0_169 = arith.constant 0 : index
    %c128_170 = arith.constant 128 : index
    %266 = vector.load %arg9[%c0_169, %c128_170] : memref<32x144xbf16, #tpu.memory_space<vmem>>, vector<32x16xbf16>
    tpu.vector_store %arg9[%c0_169, %c128_170], %265 {strides = array<i32>} : memref<32x144xbf16, #tpu.memory_space<vmem>>, vector<32x16xbf16>,
    %c0_171 = arith.constant 0 : index
    %c0_172 = arith.constant 0 : index
    %267 = vector.load %arg9[%c0_171, %c0_172] : memref<32x144xbf16, #tpu.memory_space<vmem>>, vector<32x144xbf16>
    %c4 = arith.constant 4 : index
    %c0_173 = arith.constant 0 : index
    %c0_174 = arith.constant 0 : index
    %268 = vector.load %arg3[%c4, %c0_173, %c0_174] : memref<5x144x16xbf16, #tpu.memory_space<vmem>>, vector<1x144x16xbf16>
    %269 = vector.shape_cast %268 : vector<1x144x16xbf16> to vector<144x16xbf16>
    %cst_175 = arith.constant dense<0.000000e+00> : vector<32x16xf32>
    %270 = tpu.matmul %267, %269, %cst_175 {dimension_numbers = #tpu.dot_dimension_numbers<[1], [0], [0], [1], [0, 0, 1, 1], [], []>} : vector<32x144xbf16>, vector<144x16xbf16>, vector<32x16xf32> -> vector<32x16xf32>
    %c4_176 = arith.constant 4 : index
    %c0_177 = arith.constant 0 : index
    %c0_178 = arith.constant 0 : index
    %271 = vector.load %arg4[%c4_176, %c0_177, %c0_178] : memref<5x1x16xf32, #tpu.memory_space<vmem>>, vector<1x1x16xf32>
    %272 = vector.shape_cast %271 : vector<1x1x16xf32> to vector<1x16xf32>
    %273 = vector.broadcast %272 : vector<1x16xf32> to vector<32x16xf32>
    %274 = arith.addf %270, %273 : vector<32x16xf32>
    %cst_179 = arith.constant 0.000000e+00 : f32
    %275 = vector.broadcast %cst_179 : f32 to vector<32x16xf32>
    %276 = arith.maximumf %274, %275 : vector<32x16xf32>
    %c0_180 = arith.constant 0 : index
    %c0_181 = arith.constant 0 : index
    %277 = vector.load %arg10[%c0_180, %c0_181] : memref<32x16xf32, #tpu.memory_space<vmem>>, vector<32x16xf32>
    tpu.vector_store %arg10[%c0_180, %c0_181], %276 {strides = array<i32>} : memref<32x16xf32, #tpu.memory_space<vmem>>, vector<32x16xf32>,
    %c0_182 = arith.constant 0 : index
    %c0_183 = arith.constant 0 : index
    %278 = tpu.strided_load %arg10[%c0_182, %c0_183] {strides = array<i32: 16, 1>} : memref<32x16xf32, #tpu.memory_space<vmem>>, vector<2x16xf32>
    %279 = arith.truncf %278 : vector<2x16xf32> to vector<2x16xbf16>
    %c0_184 = arith.constant 0 : index
    %c0_185 = arith.constant 0 : index
    %280 = vector.load %arg11[%c0_184, %c0_185] : memref<2x256xbf16, #tpu.memory_space<vmem>>, vector<2x16xbf16>
    tpu.vector_store %arg11[%c0_184, %c0_185], %279 {strides = array<i32>} : memref<2x256xbf16, #tpu.memory_space<vmem>>, vector<2x16xbf16>,
    %c1_186 = arith.constant 1 : index
    %c0_187 = arith.constant 0 : index
    %281 = tpu.strided_load %arg10[%c1_186, %c0_187] {strides = array<i32: 16, 1>} : memref<32x16xf32, #tpu.memory_space<vmem>>, vector<2x16xf32>
    %282 = arith.truncf %281 : vector<2x16xf32> to vector<2x16xbf16>
    %c0_188 = arith.constant 0 : index
    %c16_189 = arith.constant 16 : index
    %283 = vector.load %arg11[%c0_188, %c16_189] : memref<2x256xbf16, #tpu.memory_space<vmem>>, vector<2x16xbf16>
    tpu.vector_store %arg11[%c0_188, %c16_189], %282 {strides = array<i32>} : memref<2x256xbf16, #tpu.memory_space<vmem>>, vector<2x16xbf16>,
    %c2_190 = arith.constant 2 : index
    %c0_191 = arith.constant 0 : index
    %284 = tpu.strided_load %arg10[%c2_190, %c0_191] {strides = array<i32: 16, 1>} : memref<32x16xf32, #tpu.memory_space<vmem>>, vector<2x16xf32>
    %285 = arith.truncf %284 : vector<2x16xf32> to vector<2x16xbf16>
    %c0_192 = arith.constant 0 : index
    %c32_193 = arith.constant 32 : index
    %286 = vector.load %arg11[%c0_192, %c32_193] : memref<2x256xbf16, #tpu.memory_space<vmem>>, vector<2x16xbf16>
    tpu.vector_store %arg11[%c0_192, %c32_193], %285 {strides = array<i32>} : memref<2x256xbf16, #tpu.memory_space<vmem>>, vector<2x16xbf16>,
    %c3_194 = arith.constant 3 : index
    %c0_195 = arith.constant 0 : index
    %287 = tpu.strided_load %arg10[%c3_194, %c0_195] {strides = array<i32: 16, 1>} : memref<32x16xf32, #tpu.memory_space<vmem>>, vector<2x16xf32>
    %288 = arith.truncf %287 : vector<2x16xf32> to vector<2x16xbf16>
    %c0_196 = arith.constant 0 : index
    %c48_197 = arith.constant 48 : index
    %289 = vector.load %arg11[%c0_196, %c48_197] : memref<2x256xbf16, #tpu.memory_space<vmem>>, vector<2x16xbf16>
    tpu.vector_store %arg11[%c0_196, %c48_197], %288 {strides = array<i32>} : memref<2x256xbf16, #tpu.memory_space<vmem>>, vector<2x16xbf16>,
    %c4_198 = arith.constant 4 : index
    %c0_199 = arith.constant 0 : index
    %290 = tpu.strided_load %arg10[%c4_198, %c0_199] {strides = array<i32: 16, 1>} : memref<32x16xf32, #tpu.memory_space<vmem>>, vector<2x16xf32>
    %291 = arith.truncf %290 : vector<2x16xf32> to vector<2x16xbf16>
    %c0_200 = arith.constant 0 : index
    %c64_201 = arith.constant 64 : index
    %292 = vector.load %arg11[%c0_200, %c64_201] : memref<2x256xbf16, #tpu.memory_space<vmem>>, vector<2x16xbf16>
    tpu.vector_store %arg11[%c0_200, %c64_201], %291 {strides = array<i32>} : memref<2x256xbf16, #tpu.memory_space<vmem>>, vector<2x16xbf16>,
    %c5_202 = arith.constant 5 : index
    %c0_203 = arith.constant 0 : index
    %293 = tpu.strided_load %arg10[%c5_202, %c0_203] {strides = array<i32: 16, 1>} : memref<32x16xf32, #tpu.memory_space<vmem>>, vector<2x16xf32>
    %294 = arith.truncf %293 : vector<2x16xf32> to vector<2x16xbf16>
    %c0_204 = arith.constant 0 : index
    %c80_205 = arith.constant 80 : index
    %295 = vector.load %arg11[%c0_204, %c80_205] : memref<2x256xbf16, #tpu.memory_space<vmem>>, vector<2x16xbf16>
    tpu.vector_store %arg11[%c0_204, %c80_205], %294 {strides = array<i32>} : memref<2x256xbf16, #tpu.memory_space<vmem>>, vector<2x16xbf16>,
    %c6_206 = arith.constant 6 : index
    %c0_207 = arith.constant 0 : index
    %296 = tpu.strided_load %arg10[%c6_206, %c0_207] {strides = array<i32: 16, 1>} : memref<32x16xf32, #tpu.memory_space<vmem>>, vector<2x16xf32>
    %297 = arith.truncf %296 : vector<2x16xf32> to vector<2x16xbf16>
    %c0_208 = arith.constant 0 : index
    %c96_209 = arith.constant 96 : index
    %298 = vector.load %arg11[%c0_208, %c96_209] : memref<2x256xbf16, #tpu.memory_space<vmem>>, vector<2x16xbf16>
    tpu.vector_store %arg11[%c0_208, %c96_209], %297 {strides = array<i32>} : memref<2x256xbf16, #tpu.memory_space<vmem>>, vector<2x16xbf16>,
    %c7_210 = arith.constant 7 : index
    %c0_211 = arith.constant 0 : index
    %299 = tpu.strided_load %arg10[%c7_210, %c0_211] {strides = array<i32: 16, 1>} : memref<32x16xf32, #tpu.memory_space<vmem>>, vector<2x16xf32>
    %300 = arith.truncf %299 : vector<2x16xf32> to vector<2x16xbf16>
    %c0_212 = arith.constant 0 : index
    %c112_213 = arith.constant 112 : index
    %301 = vector.load %arg11[%c0_212, %c112_213] : memref<2x256xbf16, #tpu.memory_space<vmem>>, vector<2x16xbf16>
    tpu.vector_store %arg11[%c0_212, %c112_213], %300 {strides = array<i32>} : memref<2x256xbf16, #tpu.memory_space<vmem>>, vector<2x16xbf16>,
    %c8_214 = arith.constant 8 : index
    %c0_215 = arith.constant 0 : index
    %302 = tpu.strided_load %arg10[%c8_214, %c0_215] {strides = array<i32: 16, 1>} : memref<32x16xf32, #tpu.memory_space<vmem>>, vector<2x16xf32>
    %303 = arith.truncf %302 : vector<2x16xf32> to vector<2x16xbf16>
    %c0_216 = arith.constant 0 : index
    %c128_217 = arith.constant 128 : index
    %304 = vector.load %arg11[%c0_216, %c128_217] : memref<2x256xbf16, #tpu.memory_space<vmem>>, vector<2x16xbf16>
    tpu.vector_store %arg11[%c0_216, %c128_217], %303 {strides = array<i32>} : memref<2x256xbf16, #tpu.memory_space<vmem>>, vector<2x16xbf16>,
    %c9 = arith.constant 9 : index
    %c0_218 = arith.constant 0 : index
    %305 = tpu.strided_load %arg10[%c9, %c0_218] {strides = array<i32: 16, 1>} : memref<32x16xf32, #tpu.memory_space<vmem>>, vector<2x16xf32>
    %306 = arith.truncf %305 : vector<2x16xf32> to vector<2x16xbf16>
    %c0_219 = arith.constant 0 : index
    %c144 = arith.constant 144 : index
    %307 = vector.load %arg11[%c0_219, %c144] : memref<2x256xbf16, #tpu.memory_space<vmem>>, vector<2x16xbf16>
    tpu.vector_store %arg11[%c0_219, %c144], %306 {strides = array<i32>} : memref<2x256xbf16, #tpu.memory_space<vmem>>, vector<2x16xbf16>,
    %c10 = arith.constant 10 : index
    %c0_220 = arith.constant 0 : index
    %308 = tpu.strided_load %arg10[%c10, %c0_220] {strides = array<i32: 16, 1>} : memref<32x16xf32, #tpu.memory_space<vmem>>, vector<2x16xf32>
    %309 = arith.truncf %308 : vector<2x16xf32> to vector<2x16xbf16>
    %c0_221 = arith.constant 0 : index
    %c160 = arith.constant 160 : index
    %310 = vector.load %arg11[%c0_221, %c160] : memref<2x256xbf16, #tpu.memory_space<vmem>>, vector<2x16xbf16>
    tpu.vector_store %arg11[%c0_221, %c160], %309 {strides = array<i32>} : memref<2x256xbf16, #tpu.memory_space<vmem>>, vector<2x16xbf16>,
    %c11 = arith.constant 11 : index
    %c0_222 = arith.constant 0 : index
    %311 = tpu.strided_load %arg10[%c11, %c0_222] {strides = array<i32: 16, 1>} : memref<32x16xf32, #tpu.memory_space<vmem>>, vector<2x16xf32>
    %312 = arith.truncf %311 : vector<2x16xf32> to vector<2x16xbf16>
    %c0_223 = arith.constant 0 : index
    %c176 = arith.constant 176 : index
    %313 = vector.load %arg11[%c0_223, %c176] : memref<2x256xbf16, #tpu.memory_space<vmem>>, vector<2x16xbf16>
    tpu.vector_store %arg11[%c0_223, %c176], %312 {strides = array<i32>} : memref<2x256xbf16, #tpu.memory_space<vmem>>, vector<2x16xbf16>,
    %c12 = arith.constant 12 : index
    %c0_224 = arith.constant 0 : index
    %314 = tpu.strided_load %arg10[%c12, %c0_224] {strides = array<i32: 16, 1>} : memref<32x16xf32, #tpu.memory_space<vmem>>, vector<2x16xf32>
    %315 = arith.truncf %314 : vector<2x16xf32> to vector<2x16xbf16>
    %c0_225 = arith.constant 0 : index
    %c192 = arith.constant 192 : index
    %316 = vector.load %arg11[%c0_225, %c192] : memref<2x256xbf16, #tpu.memory_space<vmem>>, vector<2x16xbf16>
    tpu.vector_store %arg11[%c0_225, %c192], %315 {strides = array<i32>} : memref<2x256xbf16, #tpu.memory_space<vmem>>, vector<2x16xbf16>,
    %c13 = arith.constant 13 : index
    %c0_226 = arith.constant 0 : index
    %317 = tpu.strided_load %arg10[%c13, %c0_226] {strides = array<i32: 16, 1>} : memref<32x16xf32, #tpu.memory_space<vmem>>, vector<2x16xf32>
    %318 = arith.truncf %317 : vector<2x16xf32> to vector<2x16xbf16>
    %c0_227 = arith.constant 0 : index
    %c208 = arith.constant 208 : index
    %319 = vector.load %arg11[%c0_227, %c208] : memref<2x256xbf16, #tpu.memory_space<vmem>>, vector<2x16xbf16>
    tpu.vector_store %arg11[%c0_227, %c208], %318 {strides = array<i32>} : memref<2x256xbf16, #tpu.memory_space<vmem>>, vector<2x16xbf16>,
    %c14 = arith.constant 14 : index
    %c0_228 = arith.constant 0 : index
    %320 = tpu.strided_load %arg10[%c14, %c0_228] {strides = array<i32: 16, 1>} : memref<32x16xf32, #tpu.memory_space<vmem>>, vector<2x16xf32>
    %321 = arith.truncf %320 : vector<2x16xf32> to vector<2x16xbf16>
    %c0_229 = arith.constant 0 : index
    %c224 = arith.constant 224 : index
    %322 = vector.load %arg11[%c0_229, %c224] : memref<2x256xbf16, #tpu.memory_space<vmem>>, vector<2x16xbf16>
    tpu.vector_store %arg11[%c0_229, %c224], %321 {strides = array<i32>} : memref<2x256xbf16, #tpu.memory_space<vmem>>, vector<2x16xbf16>,
    %c15 = arith.constant 15 : index
    %c0_230 = arith.constant 0 : index
    %323 = tpu.strided_load %arg10[%c15, %c0_230] {strides = array<i32: 16, 1>} : memref<32x16xf32, #tpu.memory_space<vmem>>, vector<2x16xf32>
    %324 = arith.truncf %323 : vector<2x16xf32> to vector<2x16xbf16>
    %c0_231 = arith.constant 0 : index
    %c240 = arith.constant 240 : index
    %325 = vector.load %arg11[%c0_231, %c240] : memref<2x256xbf16, #tpu.memory_space<vmem>>, vector<2x16xbf16>
    tpu.vector_store %arg11[%c0_231, %c240], %324 {strides = array<i32>} : memref<2x256xbf16, #tpu.memory_space<vmem>>, vector<2x16xbf16>,
    %c0_232 = arith.constant 0 : index
    %c0_233 = arith.constant 0 : index
    %326 = vector.load %arg11[%c0_232, %c0_233] : memref<2x256xbf16, #tpu.memory_space<vmem>>, vector<2x256xbf16>
    %c0_234 = arith.constant 0 : index
    %c0_235 = arith.constant 0 : index
    %327 = vector.load %arg5[%c0_234, %c0_235] : memref<256x8xbf16, #tpu.memory_space<vmem>>, vector<256x8xbf16>
    %cst_236 = arith.constant dense<0.000000e+00> : vector<2x8xf32>
    %328 = tpu.matmul %326, %327, %cst_236 {dimension_numbers = #tpu.dot_dimension_numbers<[1], [0], [0], [1], [0, 0, 1, 1], [], []>} : vector<2x256xbf16>, vector<256x8xbf16>, vector<2x8xf32> -> vector<2x8xf32>
    %c0_237 = arith.constant 0 : index
    %c0_238 = arith.constant 0 : index
    %329 = vector.load %arg7[%c0_237, %c0_238] : memref<1x18xf32, #tpu.memory_space<vmem>>, vector<1x8xf32>
    %330 = vector.broadcast %329 : vector<1x8xf32> to vector<2x8xf32>
    %331 = arith.addf %328, %330 : vector<2x8xf32>
    %cst_239 = arith.constant 0.000000e+00 : f32
    %332 = vector.broadcast %cst_239 : f32 to vector<2x8xf32>
    %333 = arith.maximumf %331, %332 : vector<2x8xf32>
    %334 = arith.truncf %333 : vector<2x8xf32> to vector<2x8xbf16>
    %c0_240 = arith.constant 0 : index
    %c0_241 = arith.constant 0 : index
    %335 = vector.load %arg6[%c0_240, %c0_241] : memref<8x10xbf16, #tpu.memory_space<vmem>>, vector<8x8xbf16>
    %cst_242 = arith.constant dense<0.000000e+00> : vector<2x8xf32>
    %336 = tpu.matmul %334, %335, %cst_242 {dimension_numbers = #tpu.dot_dimension_numbers<[1], [0], [0], [1], [0, 0, 1, 1], [], []>} : vector<2x8xbf16>, vector<8x8xbf16>, vector<2x8xf32> -> vector<2x8xf32>
    %c0_243 = arith.constant 0 : index
    %c8_244 = arith.constant 8 : index
    %337 = vector.load %arg7[%c0_243, %c8_244] : memref<1x18xf32, #tpu.memory_space<vmem>>, vector<1x8xf32>
    %338 = vector.broadcast %337 : vector<1x8xf32> to vector<2x8xf32>
    %339 = arith.addf %336, %338 : vector<2x8xf32>
    %cst_245 = arith.constant 0.000000e+00 : f32
    %340 = vector.broadcast %cst_245 : f32 to vector<2x8xf32>
    %341 = arith.maximumf %339, %340 : vector<2x8xf32>
    %342 = arith.truncf %341 : vector<2x8xf32> to vector<2x8xbf16>
    %c0_246 = arith.constant 0 : index
    %c8_247 = arith.constant 8 : index
    %343 = vector.load %arg6[%c0_246, %c8_247] : memref<8x10xbf16, #tpu.memory_space<vmem>>, vector<8x2xbf16>
    %cst_248 = arith.constant dense<0.000000e+00> : vector<2x2xf32>
    %344 = tpu.matmul %342, %343, %cst_248 {dimension_numbers = #tpu.dot_dimension_numbers<[1], [0], [0], [1], [0, 0, 1, 1], [], []>} : vector<2x8xbf16>, vector<8x2xbf16>, vector<2x2xf32> -> vector<2x2xf32>
    %c0_249 = arith.constant 0 : index
    %c16_250 = arith.constant 16 : index
    %345 = vector.load %arg7[%c0_249, %c16_250] : memref<1x18xf32, #tpu.memory_space<vmem>>, vector<1x2xf32>
    %346 = vector.broadcast %345 : vector<1x2xf32> to vector<2x2xf32>
    %347 = arith.addf %344, %346 : vector<2x2xf32>
    %cst_251 = arith.constant dense<0xFF800000> : vector<2xf32>
    %348 = vector.multi_reduction <maximumf>, %347, %cst_251 [1] : vector<2x2xf32> to vector<2xf32>
    %349 = vector.shape_cast %348 : vector<2xf32> to vector<2x1xf32>
    %350 = vector.broadcast %349 : vector<2x1xf32> to vector<2x2xf32>
    %351 = arith.subf %347, %350 : vector<2x2xf32>
    %352 = math.exp %351 : vector<2x2xf32>
    %cst_252 = arith.constant dense<0.000000e+00> : vector<2xf32>
    %353 = vector.multi_reduction <add>, %352, %cst_252 [1] : vector<2x2xf32> to vector<2xf32>
    %354 = vector.shape_cast %353 : vector<2xf32> to vector<2x1xf32>
    %355 = math.log %354 : vector<2x1xf32>
    %356 = vector.broadcast %355 : vector<2x1xf32> to vector<2x2xf32>
    %357 = arith.subf %351, %356 : vector<2x2xf32>
    %c0_253 = arith.constant 0 : index
    %c0_254 = arith.constant 0 : index
    %358 = vector.load %arg8[%c0_253, %c0_254] : memref<2x2xf32, #tpu.memory_space<vmem>>, vector<2x2xf32>
    tpu.vector_store %arg8[%c0_253, %c0_254], %357 {strides = array<i32>} : memref<2x2xf32, #tpu.memory_space<vmem>>, vector<2x2xf32>,
    return
  }
  func.func @transform_0(%arg0: i32) -> (i32, i32) {
    %c0_i32 = arith.constant 0 : i32
    %c0_i32_0 = arith.constant 0 : i32
    return %arg0, %c0_i32 : i32, i32
  }
  func.func @transform_1(%arg0: i32) -> (i32, i32, i32) {
    %c0_i32 = arith.constant 0 : i32
    %c0_i32_0 = arith.constant 0 : i32
    %c0_i32_1 = arith.constant 0 : i32
    %c0_i32_2 = arith.constant 0 : i32
    return %c0_i32, %c0_i32_0, %c0_i32_1 : i32, i32, i32
  }
  func.func @transform_2(%arg0: i32) -> (i32, i32, i32) {
    %c0_i32 = arith.constant 0 : i32
    %c0_i32_0 = arith.constant 0 : i32
    %c0_i32_1 = arith.constant 0 : i32
    %c0_i32_2 = arith.constant 0 : i32
    return %c0_i32, %c0_i32_0, %c0_i32_1 : i32, i32, i32
  }
  func.func @transform_3(%arg0: i32) -> (i32, i32, i32) {
    %c0_i32 = arith.constant 0 : i32
    %c0_i32_0 = arith.constant 0 : i32
    %c0_i32_1 = arith.constant 0 : i32
    %c0_i32_2 = arith.constant 0 : i32
    return %c0_i32, %c0_i32_0, %c0_i32_1 : i32, i32, i32
  }
  func.func @transform_4(%arg0: i32) -> (i32, i32) {
    %c0_i32 = arith.constant 0 : i32
    %c0_i32_0 = arith.constant 0 : i32
    %c0_i32_1 = arith.constant 0 : i32
    return %c0_i32, %c0_i32_0 : i32, i32
  }
  func.func @transform_5(%arg0: i32) -> (i32, i32) {
    %c0_i32 = arith.constant 0 : i32
    %c0_i32_0 = arith.constant 0 : i32
    %c0_i32_1 = arith.constant 0 : i32
    return %c0_i32, %c0_i32_0 : i32, i32
  }
  func.func @transform_6(%arg0: i32) -> (i32, i32) {
    %c0_i32 = arith.constant 0 : i32
    %c0_i32_0 = arith.constant 0 : i32
    %c0_i32_1 = arith.constant 0 : i32
    return %c0_i32, %c0_i32_0 : i32, i32
  }
  func.func @transform_7(%arg0: i32) -> (i32, i32) {
    %c0_i32 = arith.constant 0 : i32
    %c0_i32_0 = arith.constant 0 : i32
    return %arg0, %c0_i32 : i32, i32
  }
}

</mosaic_0001>

<llo_original>
// kernel: discriminator_forward.1
$region0: #{discriminator_forward.1}
  #allocation0 [shape = 'u32[]', space=smem, size = 0x4, offset = 0x4, fixed_abs, tag = 'smem constant byte address 0x4 - core index']
  #allocation1 [shape = 'u32[72,128]{1,0:T(1,128)}', space=vmem, size = 0x9000, scoped, tag = 'internal scratch']
  #allocation2 [shape = 'bf16[32,144]{1,0:T(8,128)(2,1)}', space=vmem, size = 0x4000, scoped, tag = 'scratch operand']
  #allocation3 [shape = 'f32[32,16]{1,0:T(8,128)}', space=vmem, size = 0x4000, scoped, tag = 'scratch operand']
  #allocation4 [shape = 'bf16[2,256]{1,0:T(2,128)(2,1)}', space=vmem, size = 0x400, scoped, tag = 'scratch operand']
  %s0 = inlined_call_operand.vmem [shape: f32[32,16], index: 0, kind: input, shape index: {}]
  %s1 = inlined_call_operand.vmem [shape: f32[9,32,1], index: 1, kind: input, shape index: {}]
  %s2 = inlined_call_operand.vmem [shape: bf16[5,144,16], index: 2, kind: input, shape index: {}]
  %s3 = inlined_call_operand.vmem [shape: f32[5,1,16], index: 3, kind: input, shape index: {}]
  %s4 = inlined_call_operand.vmem [shape: bf16[256,8], index: 4, kind: input, shape index: {}]
  %s5 = inlined_call_operand.vmem [shape: bf16[8,10], index: 5, kind: input, shape index: {}]
  %s6 = inlined_call_operand.vmem [shape: f32[1,18], index: 6, kind: input, shape index: {}]
  %s7 = inlined_call_operand.hbm [shape: f32[2,2], index: 7, kind: output, shape index: {}]
  %s8 = sld [smem:[#allocation0]]
  $region38: #{discriminator_forward.1} parent=0
    _
  %s10 = ssub.s32 1, %s8
  %s11 = scalar_select 0, %s10, %s8
  $region1: #{discriminator_forward.1} parent=0
    #allocation5 [shape = 'u8[1024]{0}', space=vmem, size = 0x400, scoped, tag = 'output window, operand 0, single buffered']
    #allocation6 [shape = 's32[1]{0}', space=sflag, size = 0x4, scoped, tag = 'scoped memory for discriminator_forward.1']
    %12 = vsyncpa [#allocation6], 0
    // Predicated region
    $region2: #{discriminator_forward.1} parent=1 // pred_check
      _
    $region3: #{discriminator_forward.1} parent=1 // pred_check_branch
      %14 = sbr.rel (0) target = $region5
    $region4: #{discriminator_forward.1} parent=1 // pred_region
      _
    $region5: #{discriminator_forward.1} parent=1 // pred_fallthru
      _
    // Predicated region
    $region6: #{discriminator_forward.1} parent=1 // pred_check
      _
    $region7: #{discriminator_forward.1} parent=1 // pred_check_branch
      %16 = sbr.rel (0) target = $region9
    $region8: #{discriminator_forward.1} parent=1 // pred_region
      _
    $region9: #{discriminator_forward.1} parent=1 // pred_fallthru
      _
    // Predicated region
    $region10: #{discriminator_forward.1} parent=1 // pred_check
      _
    $region11: #{discriminator_forward.1} parent=1 // pred_check_branch
      %18 = sbr.rel (0) target = $region13
    $region12: #{discriminator_forward.1} parent=1 // pred_region
      _
    $region13: #{discriminator_forward.1} parent=1 // pred_fallthru
      _
    // Predicated region
    $region14: #{discriminator_forward.1} parent=1 // pred_check
      _
    $region15: #{discriminator_forward.1} parent=1 // pred_check_branch
      %20 = sbr.rel (0) target = $region17
    $region16: #{discriminator_forward.1} parent=1 // pred_region
      _
    $region17: #{discriminator_forward.1} parent=1 // pred_fallthru
      _
    // Predicated region
    $region18: #{discriminator_forward.1} parent=1 // pred_check
      _
    $region19: #{discriminator_forward.1} parent=1 // pred_check_branch
      %22 = sbr.rel (0) target = $region21
    $region20: #{discriminator_forward.1} parent=1 // pred_region
      _
    $region21: #{discriminator_forward.1} parent=1 // pred_fallthru
      _
    // Predicated region
    $region22: #{discriminator_forward.1} parent=1 // pred_check
      _
    $region23: #{discriminator_forward.1} parent=1 // pred_check_branch
      %24 = sbr.rel (0) target = $region25
    $region24: #{discriminator_forward.1} parent=1 // pred_region
      _
    $region25: #{discriminator_forward.1} parent=1 // pred_fallthru
      _
    // Predicated region
    $region26: #{discriminator_forward.1} parent=1 // pred_check
      _
    $region27: #{discriminator_forward.1} parent=1 // pred_check_branch
      %26 = sbr.rel (0) target = $region29
    $region28: #{discriminator_forward.1} parent=1 // pred_region
      _
    $region29: #{discriminator_forward.1} parent=1 // pred_fallthru
      _
    %v28 = vld [vmem:[%s1] sm:$0xff]
    %v29 = vld [vmem:[%s1 + $0x8] sm:$0xff]
    %v30 = vld [vmem:[%s1 + $0x10] sm:$0xff]
    %v31 = vld [vmem:[%s1 + $0x18] sm:$0xff]
    %s32 = scalar_lea.vmem %s1, 32
    %v33 = vld [vmem:[%s32] sm:$0xff]
    %v34 = vld [vmem:[%s32 + $0x8] sm:$0xff]
    %v35 = vld [vmem:[%s32 + $0x10] sm:$0xff]
    %v36 = vld [vmem:[%s32 + $0x18] sm:$0xff]
    %s37 = scalar_lea.vmem %s1, 64
    %v38 = vld [vmem:[%s37] sm:$0xff]
    %v39 = vld [vmem:[%s37 + $0x8] sm:$0xff]
    %v40 = vld [vmem:[%s37 + $0x10] sm:$0xff]
    %v41 = vld [vmem:[%s37 + $0x18] sm:$0xff]
    %s42 = scalar_lea.vmem %s1, 96
    %v43 = vld [vmem:[%s42] sm:$0xff]
    %v44 = vld [vmem:[%s42 + $0x8] sm:$0xff]
    %v45 = vld [vmem:[%s42 + $0x10] sm:$0xff]
    %v46 = vld [vmem:[%s42 + $0x18] sm:$0xff]
    %s47 = scalar_lea.vmem %s1, 160
    %v48 = vld [vmem:[%s47] sm:$0xff]
    %v49 = vld [vmem:[%s47 + $0x8] sm:$0xff]
    %v50 = vld [vmem:[%s47 + $0x10] sm:$0xff]
    %v51 = vld [vmem:[%s47 + $0x18] sm:$0xff]
    %s52 = scalar_lea.vmem %s1, 192
    %v53 = vld [vmem:[%s52] sm:$0xff]
    %v54 = vld [vmem:[%s52 + $0x8] sm:$0xff]
    %v55 = vld [vmem:[%s52 + $0x10] sm:$0xff]
    %v56 = vld [vmem:[%s52 + $0x18] sm:$0xff]
    %s57 = scalar_lea.vmem %s1, 224
    %v58 = vld [vmem:[%s57] sm:$0xff]
    %v59 = vld [vmem:[%s57 + $0x8] sm:$0xff]
    %v60 = vld [vmem:[%s57 + $0x10] sm:$0xff]
    %v61 = vld [vmem:[%s57 + $0x18] sm:$0xff]
    %s62 = scalar_lea.vmem %s1, 256
    %v63 = vld [vmem:[%s62] sm:$0xff]
    %v64 = vld [vmem:[%s62 + $0x8] sm:$0xff]
    %v65 = vld [vmem:[%s62 + $0x10] sm:$0xff]
    %v66 = vld [vmem:[%s62 + $0x18] sm:$0xff]
    %v67 = vld [vmem:[%s0] sm:$0xff]
    %v68 = vld [vmem:[%s0 + $0x8] sm:$0xff]
    %v69 = vld [vmem:[%s0 + $0x10] sm:$0xff]
    %v70 = vld [vmem:[%s0 + $0x18] sm:$0xff]
    %v71 = vrot.slane %v67, 3
    %v72 = vrot.slane %v68, 3
    %v73 = vrot.slane %v69, 3
    %v74 = vrot.slane %v70, 3
    %v75 = vlaneseq
    %v76 = vshrl.u32 %v75, 7
    %vm77 = vcmp.lt.s32.totalorder %v76, 5
    %v78 = vsel %vm77, %v73, %v74
    %v79 = vsel %vm77, %v72, %v73
    %v80 = vsel %vm77, %v71, %v72
    %v81 = vsel %vm77, %v74, %v71
    %83 = vset.pattern.permute.xlu0 0
    %84 = vperm.xlu0 %83, %v28
    %v85 = vpop.permute.xlu0 %84
    %88 = vset.pattern.permute.xlu0 0
    %89 = vperm.xlu0 %88, %v29
    %v90 = vpop.permute.xlu0 %89
    %93 = vset.pattern.permute.xlu0 0
    %94 = vperm.xlu0 %93, %v30
    %v95 = vpop.permute.xlu0 %94
    %98 = vset.pattern.permute.xlu0 0
    %99 = vperm.xlu0 %98, %v31
    %v100 = vpop.permute.xlu0 %99
    %v102 = vmul.f32 %v81, %v85
    %v103 = vmul.f32 %v80, %v90
    %v104 = vmul.f32 %v79, %v95
    %v105 = vmul.f32 %v78, %v100
    %v106 = vpack.c.bf16 %v102, %v102
    %v107 = vpack.c.bf16 %v103, %v103
    %v108 = vpack.c.bf16 %v104, %v104
    %v109 = vpack.c.bf16 %v105, %v105
    %vm110 = vcmask 125952
    %111 = vst.msk [vmem:[#allocation2] sm:$0xf] %vm110, %v106
    %112 = vst.msk [vmem:[#allocation2 + $0x8] sm:$0xf] %vm110, %v107
    %113 = vst.msk [vmem:[#allocation2 + $0x10] sm:$0xf] %vm110, %v108
    %114 = vst.msk [vmem:[#allocation2 + $0x18] sm:$0xf] %vm110, %v109
    %v115 = vrot.slane %v67, 4
    %v116 = vrot.slane %v68, 4
    %v117 = vrot.slane %v69, 4
    %v118 = vrot.slane %v70, 4
    %vm119 = vcmp.lt.s32.totalorder %v76, 4
    %v120 = vsel %vm119, %v117, %v118
    %v121 = vsel %vm119, %v116, %v117
    %v122 = vsel %vm119, %v115, %v116
    %v123 = vsel %vm119, %v118, %v115
    %125 = vset.pattern.permute.xlu0 0
    %126 = vperm.xlu0 %125, %v33
    %v127 = vpop.permute.xlu0 %126
    %130 = vset.pattern.permute.xlu0 0
    %131 = vperm.xlu0 %130, %v34
    %v132 = vpop.permute.xlu0 %131
    %135 = vset.pattern.permute.xlu0 0
    %136 = vperm.xlu0 %135, %v35
    %v137 = vpop.permute.xlu0 %136
    %140 = vset.pattern.permute.xlu0 0
    %141 = vperm.xlu0 %140, %v36
    %v142 = vpop.permute.xlu0 %141
    %v144 = vmul.f32 %v123, %v127
    %v145 = vmul.f32 %v122, %v132
    %v146 = vmul.f32 %v121, %v137
    %v147 = vmul.f32 %v120, %v142
    %v148 = vpack.c.bf16 %v144, %v144
    %v149 = vpack.c.bf16 %v145, %v145
    %v150 = vpack.c.bf16 %v146, %v146
    %v151 = vpack.c.bf16 %v147, %v147
    %156 = vrot.lane.b32.xlu0 %v148, 16
    %v157 = vpop.permute.xlu0 %156
    %158 = vrot.lane.b32.xlu0 %v149, 16
    %v159 = vpop.permute.xlu0 %158
    %160 = vrot.lane.b32.xlu0 %v150, 16
    %v161 = vpop.permute.xlu0 %160
    %162 = vrot.lane.b32.xlu0 %v151, 16
    %v163 = vpop.permute.xlu0 %162
    %vm168 = vcmask 257152
    %169 = vst.msk [vmem:[#allocation2] sm:$0xf] %vm168, %v157
    %170 = vst.msk [vmem:[#allocation2 + $0x8] sm:$0xf] %vm168, %v159
    %171 = vst.msk [vmem:[#allocation2 + $0x10] sm:$0xf] %vm168, %v161
    %172 = vst.msk [vmem:[#allocation2 + $0x18] sm:$0xf] %vm168, %v163
    %v173 = vrot.slane %v67, 5
    %v174 = vrot.slane %v68, 5
    %v175 = vrot.slane %v69, 5
    %v176 = vrot.slane %v70, 5
    %vm177 = vcmp.lt.s32.totalorder %v76, 3
    %v178 = vsel %vm177, %v175, %v176
    %v179 = vsel %vm177, %v174, %v175
    %v180 = vsel %vm177, %v173, %v174
    %v181 = vsel %vm177, %v176, %v173
    %183 = vset.pattern.permute.xlu0 0
    %184 = vperm.xlu0 %183, %v38
    %v185 = vpop.permute.xlu0 %184
    %188 = vset.pattern.permute.xlu0 0
    %189 = vperm.xlu0 %188, %v39
    %v190 = vpop.permute.xlu0 %189
    %193 = vset.pattern.permute.xlu0 0
    %194 = vperm.xlu0 %193, %v40
    %v195 = vpop.permute.xlu0 %194
    %198 = vset.pattern.permute.xlu0 0
    %199 = vperm.xlu0 %198, %v41
    %v200 = vpop.permute.xlu0 %199
    %v202 = vmul.f32 %v181, %v185
    %v203 = vmul.f32 %v180, %v190
    %v204 = vmul.f32 %v179, %v195
    %v205 = vmul.f32 %v178, %v200
    %v206 = vpack.c.bf16 %v202, %v202
    %v207 = vpack.c.bf16 %v203, %v203
    %v208 = vpack.c.bf16 %v204, %v204
    %v209 = vpack.c.bf16 %v205, %v205
    %214 = vrot.lane.b32.xlu0 %v206, 32
    %v215 = vpop.permute.xlu0 %214
    %216 = vrot.lane.b32.xlu0 %v207, 32
    %v217 = vpop.permute.xlu0 %216
    %218 = vrot.lane.b32.xlu0 %v208, 32
    %v219 = vpop.permute.xlu0 %218
    %220 = vrot.lane.b32.xlu0 %v209, 32
    %v221 = vpop.permute.xlu0 %220
    %vm226 = vcmask 388352
    %227 = vst.msk [vmem:[#allocation2] sm:$0xf] %vm226, %v215
    %228 = vst.msk [vmem:[#allocation2 + $0x8] sm:$0xf] %vm226, %v217
    %229 = vst.msk [vmem:[#allocation2 + $0x10] sm:$0xf] %vm226, %v219
    %230 = vst.msk [vmem:[#allocation2 + $0x18] sm:$0xf] %vm226, %v221
    %v231 = vrot.slane %v67, 7
    %v232 = vrot.slane %v68, 7
    %v233 = vrot.slane %v69, 7
    %v234 = vrot.slane %v70, 7
    %vm235 = vcmp.lt.s32.totalorder %v76, 1
    %v236 = vsel %vm235, %v233, %v234
    %v237 = vsel %vm235, %v232, %v233
    %v238 = vsel %vm235, %v231, %v232
    %v239 = vsel %vm235, %v234, %v231
    %241 = vset.pattern.permute.xlu0 0
    %242 = vperm.xlu0 %241, %v43
    %v243 = vpop.permute.xlu0 %242
    %246 = vset.pattern.permute.xlu0 0
    %247 = vperm.xlu0 %246, %v44
    %v248 = vpop.permute.xlu0 %247
    %251 = vset.pattern.permute.xlu0 0
    %252 = vperm.xlu0 %251, %v45
    %v253 = vpop.permute.xlu0 %252
    %256 = vset.pattern.permute.xlu0 0
    %257 = vperm.xlu0 %256, %v46
    %v258 = vpop.permute.xlu0 %257
    %v260 = vmul.f32 %v239, %v243
    %v261 = vmul.f32 %v238, %v248
    %v262 = vmul.f32 %v237, %v253
    %v263 = vmul.f32 %v236, %v258
    %v264 = vpack.c.bf16 %v260, %v260
    %v265 = vpack.c.bf16 %v261, %v261
    %v266 = vpack.c.bf16 %v262, %v262
    %v267 = vpack.c.bf16 %v263, %v263
    %272 = vrot.lane.b32.xlu0 %v264, 48
    %v273 = vpop.permute.xlu0 %272
    %274 = vrot.lane.b32.xlu0 %v265, 48
    %v275 = vpop.permute.xlu0 %274
    %276 = vrot.lane.b32.xlu0 %v266, 48
    %v277 = vpop.permute.xlu0 %276
    %278 = vrot.lane.b32.xlu0 %v267, 48
    %v279 = vpop.permute.xlu0 %278
    %vm284 = vcmask 519552
    %285 = vst.msk [vmem:[#allocation2] sm:$0xf] %vm284, %v273
    %286 = vst.msk [vmem:[#allocation2 + $0x8] sm:$0xf] %vm284, %v275
    %287 = vst.msk [vmem:[#allocation2 + $0x10] sm:$0xf] %vm284, %v277
    %288 = vst.msk [vmem:[#allocation2 + $0x18] sm:$0xf] %vm284, %v279
    %v289 = vpack.c.bf16 %v67, %v67
    %v290 = vpack.c.bf16 %v68, %v68
    %v291 = vpack.c.bf16 %v69, %v69
    %v292 = vpack.c.bf16 %v70, %v70
    %297 = vrot.lane.b32.xlu0 %v289, 64
    %v298 = vpop.permute.xlu0 %297
    %299 = vrot.lane.b32.xlu0 %v290, 64
    %v300 = vpop.permute.xlu0 %299
    %301 = vrot.lane.b32.xlu0 %v291, 64
    %v302 = vpop.permute.xlu0 %301
    %303 = vrot.lane.b32.xlu0 %v292, 64
    %v304 = vpop.permute.xlu0 %303
    %vm309 = vcmask 650752
    %310 = vst.msk [vmem:[#allocation2] sm:$0xf] %vm309, %v298
    %311 = vst.msk [vmem:[#allocation2 + $0x8] sm:$0xf] %vm309, %v300
    %312 = vst.msk [vmem:[#allocation2 + $0x10] sm:$0xf] %vm309, %v302
    %313 = vst.msk [vmem:[#allocation2 + $0x18] sm:$0xf] %vm309, %v304
    %v314 = vrot.slane %v67, 1
    %v315 = vrot.slane %v68, 1
    %v316 = vrot.slane %v69, 1
    %v317 = vrot.slane %v70, 1
    %vm318 = vcmp.lt.s32.totalorder %v76, 7
    %v319 = vsel %vm318, %v316, %v317
    %v320 = vsel %vm318, %v315, %v316
    %v321 = vsel %vm318, %v314, %v315
    %v322 = vsel %vm318, %v317, %v314
    %324 = vset.pattern.permute.xlu0 0
    %325 = vperm.xlu0 %324, %v48
    %v326 = vpop.permute.xlu0 %325
    %329 = vset.pattern.permute.xlu0 0
    %330 = vperm.xlu0 %329, %v49
    %v331 = vpop.permute.xlu0 %330
    %334 = vset.pattern.permute.xlu0 0
    %335 = vperm.xlu0 %334, %v50
    %v336 = vpop.permute.xlu0 %335
    %339 = vset.pattern.permute.xlu0 0
    %340 = vperm.xlu0 %339, %v51
    %v341 = vpop.permute.xlu0 %340
    %v343 = vmul.f32 %v321, %v326
    %v344 = vmul.f32 %v320, %v331
    %v345 = vmul.f32 %v319, %v336
    %v346 = vmul.f32 %v322, %v341
    %v347 = vpack.c.bf16 %v343, %v343
    %v348 = vpack.c.bf16 %v344, %v344
    %v349 = vpack.c.bf16 %v345, %v345
    %v350 = vpack.c.bf16 %v346, %v346
    %355 = vrot.lane.b32.xlu0 %v347, 80
    %v356 = vpop.permute.xlu0 %355
    %357 = vrot.lane.b32.xlu0 %v348, 80
    %v358 = vpop.permute.xlu0 %357
    %359 = vrot.lane.b32.xlu0 %v349, 80
    %v360 = vpop.permute.xlu0 %359
    %361 = vrot.lane.b32.xlu0 %v350, 80
    %v362 = vpop.permute.xlu0 %361
    %vm367 = vcmask 781952
    %368 = vst.msk [vmem:[#allocation2] sm:$0xf] %vm367, %v356
    %369 = vst.msk [vmem:[#allocation2 + $0x8] sm:$0xf] %vm367, %v358
    %370 = vst.msk [vmem:[#allocation2 + $0x10] sm:$0xf] %vm367, %v360
    %371 = vst.msk [vmem:[#allocation2 + $0x18] sm:$0xf] %vm367, %v362
    %373 = vset.pattern.permute.xlu0 0
    %374 = vperm.xlu0 %373, %v53
    %v375 = vpop.permute.xlu0 %374
    %378 = vset.pattern.permute.xlu0 0
    %379 = vperm.xlu0 %378, %v54
    %v380 = vpop.permute.xlu0 %379
    %383 = vset.pattern.permute.xlu0 0
    %384 = vperm.xlu0 %383, %v55
    %v385 = vpop.permute.xlu0 %384
    %388 = vset.pattern.permute.xlu0 0
    %389 = vperm.xlu0 %388, %v56
    %v390 = vpop.permute.xlu0 %389
    %v392 = vmul.f32 %v80, %v375
    %v393 = vmul.f32 %v79, %v380
    %v394 = vmul.f32 %v78, %v385
    %v395 = vmul.f32 %v81, %v390
    %v396 = vpack.c.bf16 %v392, %v392
    %v397 = vpack.c.bf16 %v393, %v393
    %v398 = vpack.c.bf16 %v394, %v394
    %v399 = vpack.c.bf16 %v395, %v395
    %404 = vrot.lane.b32.xlu0 %v396, 96
    %v405 = vpop.permute.xlu0 %404
    %406 = vrot.lane.b32.xlu0 %v397, 96
    %v407 = vpop.permute.xlu0 %406
    %408 = vrot.lane.b32.xlu0 %v398, 96
    %v409 = vpop.permute.xlu0 %408
    %410 = vrot.lane.b32.xlu0 %v399, 96
    %v411 = vpop.permute.xlu0 %410
    %vm416 = vcmask 913152
    %417 = vst.msk [vmem:[#allocation2] sm:$0xf] %vm416, %v405
    %418 = vst.msk [vmem:[#allocation2 + $0x8] sm:$0xf] %vm416, %v407
    %419 = vst.msk [vmem:[#allocation2 + $0x10] sm:$0xf] %vm416, %v409
    %420 = vst.msk [vmem:[#allocation2 + $0x18] sm:$0xf] %vm416, %v411
    %422 = vset.pattern.permute.xlu0 0
    %423 = vperm.xlu0 %422, %v58
    %v424 = vpop.permute.xlu0 %423
    %427 = vset.pattern.permute.xlu0 0
    %428 = vperm.xlu0 %427, %v59
    %v429 = vpop.permute.xlu0 %428
    %432 = vset.pattern.permute.xlu0 0
    %433 = vperm.xlu0 %432, %v60
    %v434 = vpop.permute.xlu0 %433
    %437 = vset.pattern.permute.xlu0 0
    %438 = vperm.xlu0 %437, %v61
    %v439 = vpop.permute.xlu0 %438
    %v441 = vmul.f32 %v122, %v424
    %v442 = vmul.f32 %v121, %v429
    %v443 = vmul.f32 %v120, %v434
    %v444 = vmul.f32 %v123, %v439
    %v445 = vpack.c.bf16 %v441, %v441
    %v446 = vpack.c.bf16 %v442, %v442
    %v447 = vpack.c.bf16 %v443, %v443
    %v448 = vpack.c.bf16 %v444, %v444
    %453 = vrot.lane.b32.xlu0 %v445, 112
    %v454 = vpop.permute.xlu0 %453
    %455 = vrot.lane.b32.xlu0 %v446, 112
    %v456 = vpop.permute.xlu0 %455
    %457 = vrot.lane.b32.xlu0 %v447, 112
    %v458 = vpop.permute.xlu0 %457
    %459 = vrot.lane.b32.xlu0 %v448, 112
    %v460 = vpop.permute.xlu0 %459
    %vm465 = vcmask 1044352
    %466 = vst.msk [vmem:[#allocation2] sm:$0xf] %vm465, %v454
    %467 = vst.msk [vmem:[#allocation2 + $0x8] sm:$0xf] %vm465, %v456
    %468 = vst.msk [vmem:[#allocation2 + $0x10] sm:$0xf] %vm465, %v458
    %469 = vst.msk [vmem:[#allocation2 + $0x18] sm:$0xf] %vm465, %v460
    %471 = vset.pattern.permute.xlu0 0
    %472 = vperm.xlu0 %471, %v63
    %v473 = vpop.permute.xlu0 %472
    %476 = vset.pattern.permute.xlu0 0
    %477 = vperm.xlu0 %476, %v64
    %v478 = vpop.permute.xlu0 %477
    %481 = vset.pattern.permute.xlu0 0
    %482 = vperm.xlu0 %481, %v65
    %v483 = vpop.permute.xlu0 %482
    %486 = vset.pattern.permute.xlu0 0
    %487 = vperm.xlu0 %486, %v66
    %v488 = vpop.permute.xlu0 %487
    %v490 = vmul.f32 %v180, %v473
    %v491 = vmul.f32 %v179, %v478
    %v492 = vmul.f32 %v178, %v483
    %v493 = vmul.f32 %v181, %v488
    %v494 = vpack.c.bf16 %v490, %v490
    %v495 = vpack.c.bf16 %v491, %v491
    %v496 = vpack.c.bf16 %v492, %v492
    %v497 = vpack.c.bf16 %v493, %v493
    %498 = vst.msk [vmem:[#allocation2 + $0x4] sm:$0xf] %vm110, %v494
    %499 = vst.msk [vmem:[#allocation2 + $0xc] sm:$0xf] %vm110, %v495
    %500 = vst.msk [vmem:[#allocation2 + $0x14] sm:$0xf] %vm110, %v496
    %501 = vst.msk [vmem:[#allocation2 + $0x1c] sm:$0xf] %vm110, %v497
    %v502 = vld [vmem:[#allocation2] sm:$0xff]
    %v503 = vld [vmem:[#allocation2 + $0x8] sm:$0xff]
    %v504 = vld [vmem:[#allocation2 + $0x10] sm:$0xff]
    %v505 = vld [vmem:[#allocation2 + $0x18] sm:$0xff]
    %v506 = vld [vmem:[%s2] sm:$0xf]
    %v507 = vld [vmem:[%s2 + $0x4] sm:$0xf]
    %v508 = vld [vmem:[%s2 + $0x8] sm:$0xf]
    %v509 = vld [vmem:[%s2 + $0xc] sm:$0xf]
    %v510 = vld [vmem:[%s2 + $0x10] sm:$0xf]
    %v511 = vld [vmem:[%s2 + $0x14] sm:$0xf]
    %v512 = vld [vmem:[%s2 + $0x18] sm:$0xf]
    %v513 = vld [vmem:[%s2 + $0x1c] sm:$0xf]
    %v514 = vld [vmem:[%s2 + $0x20] sm:$0xf]
    %v515 = vld [vmem:[%s2 + $0x24] sm:$0xf]
    %v516 = vld [vmem:[%s2 + $0x28] sm:$0xf]
    %v517 = vld [vmem:[%s2 + $0x2c] sm:$0xf]
    %v518 = vld [vmem:[%s2 + $0x30] sm:$0xf]
    %v519 = vld [vmem:[%s2 + $0x34] sm:$0xf]
    %v520 = vld [vmem:[%s2 + $0x38] sm:$0xf]
    %v521 = vld [vmem:[%s2 + $0x3c] sm:$0xf]
    %v522 = vld [vmem:[%s2 + $0x40] sm:$0xf]
    %v523 = vld [vmem:[%s2 + $0x44] sm:$0xf]
    %v524 = vld [vmem:[%s3] sm:$0x1]
    %v526 = vperm.slane %v524, 0
    %v532 = vunpack.c.l.b16 %v502
    %v533 = vunpack.c.h.b16 %v502
    %v534 = vunpack.c.l.b16 %v503
    %v535 = vunpack.c.h.b16 %v503
    %v536 = vunpack.c.l.b16 %v504
    %v537 = vunpack.c.h.b16 %v504
    %v538 = vunpack.c.l.b16 %v505
    %v539 = vunpack.c.h.b16 %v505
    %v540 = vpack.c.b16 %v534, %v532
    %v541 = vpack.c.b16 %v535, %v533
    %v542 = vpack.c.b16 %v538, %v536
    %v543 = vpack.c.b16 %v539, %v537
    %v564 = vunpack.c.l.b16 %v506
    %v565 = vunpack.c.l.b16 %v507
    %v566 = vunpack.c.l.b16 %v508
    %v567 = vunpack.c.l.b16 %v509
    %v568 = vunpack.c.l.b16 %v510
    %v569 = vunpack.c.l.b16 %v511
    %v570 = vunpack.c.l.b16 %v512
    %v571 = vunpack.c.l.b16 %v513
    %v572 = vunpack.c.l.b16 %v514
    %v573 = vunpack.c.l.b16 %v515
    %v574 = vunpack.c.l.b16 %v516
    %v575 = vunpack.c.l.b16 %v517
    %v576 = vunpack.c.l.b16 %v518
    %v577 = vunpack.c.l.b16 %v519
    %v578 = vunpack.c.l.b16 %v520
    %v579 = vunpack.c.l.b16 %v521
    %v580 = vunpack.c.l.b16 %v522
    %v581 = vunpack.c.l.b16 %v523
    %v582 = vpack.c.b16 %v565, %v564
    %v583 = vpack.c.b16 %v567, %v566
    %v584 = vpack.c.b16 %v569, %v568
    %v585 = vpack.c.b16 %v571, %v570
    %v586 = vpack.c.b16 %v573, %v572
    %v587 = vpack.c.b16 %v575, %v574
    %v588 = vpack.c.b16 %v577, %v576
    %v589 = vpack.c.b16 %v579, %v578
    %v590 = vpack.c.b16 %v581, %v580
    %vm600 = vcmask 130048
    %v602 = vsel %vm600, %v541, 0
    %v605 = vsel %vm600, %v543, 0
    %607 = vmatpush.bf16.msra.mxu0 %v589
    %608 = vmatpush.bf16.msra.mxu0 %v588
    %609 = vmatpush.bf16.msra.mxu0 %v587
    %610 = vmatpush.bf16.msra.mxu0 %v586
    %611 = vmatpush.bf16.msra.mxu0 %v585
    %612 = vmatpush.bf16.msra.mxu0 %v584
    %613 = vmatpush.bf16.msra.mxu0 %v583
    %614 = vmatpush.bf16.msra.mxu0 %v582
    %615 = vmatmul.bf16.gmra.mxu0 %v540
    %v616 = vpop.f32.mrf.mxu0
    %v617 = vadd.f32 %v526, %v616
    %v618 = vpop.f32.mrf.mxu0
    %v619 = vadd.f32 %v526, %v618
    %620 = vmatmul.bf16.gmra.mxu0 %v542
    %v621 = vpop.f32.mrf.mxu0
    %v622 = vadd.f32 %v526, %v621
    %v623 = vpop.f32.mrf.mxu0
    %v624 = vadd.f32 %v526, %v623
    %625 = vdwg.mxu0
    %626 = vmatpush.bf16.msra.mxu0 0
    %627 = vmatpush.bf16.msra.mxu0 0
    %628 = vmatpush.bf16.msra.mxu0 0
    %629 = vmatpush.bf16.msra.mxu0 0
    %630 = vmatpush.bf16.msra.mxu0 0
    %631 = vmatpush.bf16.msra.mxu0 0
    %632 = vmatpush.bf16.msra.mxu0 0
    %633 = vmatpush.bf16.msra.mxu0 %v590
    %634 = vmatmul.bf16.gmra.mxu0 %v602
    %v635 = vpop.f32.mrf.mxu0
    %v636 = vadd.f32 %v617, %v635
    %v637 = vpop.f32.mrf.mxu0
    %v638 = vadd.f32 %v619, %v637
    %639 = vmatmul.bf16.gmra.mxu0 %v605
    %v640 = vpop.f32.mrf.mxu0
    %v641 = vadd.f32 %v622, %v640
    %v642 = vpop.f32.mrf.mxu0
    %v643 = vadd.f32 %v624, %v642
    %644 = vdwg.mxu0
    %v645 = vmax.f32 %v636, 0.0
    %v646 = vmax.f32 %v638, 0.0
    %v647 = vmax.f32 %v641, 0.0
    %v648 = vmax.f32 %v643, 0.0
    %v649 = vrot.slane %v645, 3
    %v650 = vrot.slane %v646, 3
    %v651 = vrot.slane %v647, 3
    %v652 = vrot.slane %v648, 3
    %v653 = vsel %vm77, %v651, %v652
    %v654 = vsel %vm77, %v650, %v651
    %v655 = vsel %vm77, %v649, %v650
    %v656 = vsel %vm77, %v652, %v649
    %v657 = vmul.f32 %v656, %v85
    %v658 = vmul.f32 %v655, %v90
    %v659 = vmul.f32 %v654, %v95
    %v660 = vmul.f32 %v653, %v100
    %v661 = vpack.c.bf16 %v657, %v657
    %v662 = vpack.c.bf16 %v658, %v658
    %v663 = vpack.c.bf16 %v659, %v659
    %v664 = vpack.c.bf16 %v660, %v660
    %665 = vst.msk [vmem:[#allocation2] sm:$0xf] %vm110, %v661
    %666 = vst.msk [vmem:[#allocation2 + $0x8] sm:$0xf] %vm110, %v662
    %667 = vst.msk [vmem:[#allocation2 + $0x10] sm:$0xf] %vm110, %v663
    %668 = vst.msk [vmem:[#allocation2 + $0x18] sm:$0xf] %vm110, %v664
    %v669 = vrot.slane %v645, 4
    %v670 = vrot.slane %v646, 4
    %v671 = vrot.slane %v647, 4
    %v672 = vrot.slane %v648, 4
    %v673 = vsel %vm119, %v671, %v672
    %v674 = vsel %vm119, %v670, %v671
    %v675 = vsel %vm119, %v669, %v670
    %v676 = vsel %vm119, %v672, %v669
    %v677 = vmul.f32 %v676, %v127
    %v678 = vmul.f32 %v675, %v132
    %v679 = vmul.f32 %v674, %v137
    %v680 = vmul.f32 %v673, %v142
    %v681 = vpack.c.bf16 %v677, %v677
    %v682 = vpack.c.bf16 %v678, %v678
    %v683 = vpack.c.bf16 %v679, %v679
    %v684 = vpack.c.bf16 %v680, %v680
    %689 = vrot.lane.b32.xlu0 %v681, 16
    %v690 = vpop.permute.xlu0 %689
    %691 = vrot.lane.b32.xlu0 %v682, 16
    %v692 = vpop.permute.xlu0 %691
    %693 = vrot.lane.b32.xlu0 %v683, 16
    %v694 = vpop.permute.xlu0 %693
    %695 = vrot.lane.b32.xlu0 %v684, 16
    %v696 = vpop.permute.xlu0 %695
    %701 = vst.msk [vmem:[#allocation2] sm:$0xf] %vm168, %v690
    %702 = vst.msk [vmem:[#allocation2 + $0x8] sm:$0xf] %vm168, %v692
    %703 = vst.msk [vmem:[#allocation2 + $0x10] sm:$0xf] %vm168, %v694
    %704 = vst.msk [vmem:[#allocation2 + $0x18] sm:$0xf] %vm168, %v696
    %v705 = vrot.slane %v645, 5
    %v706 = vrot.slane %v646, 5
    %v707 = vrot.slane %v647, 5
    %v708 = vrot.slane %v648, 5
    %v709 = vsel %vm177, %v707, %v708
    %v710 = vsel %vm177, %v706, %v707
    %v711 = vsel %vm177, %v705, %v706
    %v712 = vsel %vm177, %v708, %v705
    %v713 = vmul.f32 %v712, %v185
    %v714 = vmul.f32 %v711, %v190
    %v715 = vmul.f32 %v710, %v195
    %v716 = vmul.f32 %v709, %v200
    %v717 = vpack.c.bf16 %v713, %v713
    %v718 = vpack.c.bf16 %v714, %v714
    %v719 = vpack.c.bf16 %v715, %v715
    %v720 = vpack.c.bf16 %v716, %v716
    %725 = vrot.lane.b32.xlu0 %v717, 32
    %v726 = vpop.permute.xlu0 %725
    %727 = vrot.lane.b32.xlu0 %v718, 32
    %v728 = vpop.permute.xlu0 %727
    %729 = vrot.lane.b32.xlu0 %v719, 32
    %v730 = vpop.permute.xlu0 %729
    %731 = vrot.lane.b32.xlu0 %v720, 32
    %v732 = vpop.permute.xlu0 %731
    %737 = vst.msk [vmem:[#allocation2] sm:$0xf] %vm226, %v726
    %738 = vst.msk [vmem:[#allocation2 + $0x8] sm:$0xf] %vm226, %v728
    %739 = vst.msk [vmem:[#allocation2 + $0x10] sm:$0xf] %vm226, %v730
    %740 = vst.msk [vmem:[#allocation2 + $0x18] sm:$0xf] %vm226, %v732
    %v741 = vrot.slane %v645, 7
    %v742 = vrot.slane %v646, 7
    %v743 = vrot.slane %v647, 7
    %v744 = vrot.slane %v648, 7
    %v745 = vsel %vm235, %v743, %v744
    %v746 = vsel %vm235, %v742, %v743
    %v747 = vsel %vm235, %v741, %v742
    %v748 = vsel %vm235, %v744, %v741
    %v749 = vmul.f32 %v748, %v243
    %v750 = vmul.f32 %v747, %v248
    %v751 = vmul.f32 %v746, %v253
    %v752 = vmul.f32 %v745, %v258
    %v753 = vpack.c.bf16 %v749, %v749
    %v754 = vpack.c.bf16 %v750, %v750
    %v755 = vpack.c.bf16 %v751, %v751
    %v756 = vpack.c.bf16 %v752, %v752
    %761 = vrot.lane.b32.xlu0 %v753, 48
    %v762 = vpop.permute.xlu0 %761
    %763 = vrot.lane.b32.xlu0 %v754, 48
    %v764 = vpop.permute.xlu0 %763
    %765 = vrot.lane.b32.xlu0 %v755, 48
    %v766 = vpop.permute.xlu0 %765
    %767 = vrot.lane.b32.xlu0 %v756, 48
    %v768 = vpop.permute.xlu0 %767
    %773 = vst.msk [vmem:[#allocation2] sm:$0xf] %vm284, %v762
    %774 = vst.msk [vmem:[#allocation2 + $0x8] sm:$0xf] %vm284, %v764
    %775 = vst.msk [vmem:[#allocation2 + $0x10] sm:$0xf] %vm284, %v766
    %776 = vst.msk [vmem:[#allocation2 + $0x18] sm:$0xf] %vm284, %v768
    %v777 = vpack.c.bf16 %v645, %v645
    %v778 = vpack.c.bf16 %v646, %v646
    %v779 = vpack.c.bf16 %v647, %v647
    %v780 = vpack.c.bf16 %v648, %v648
    %785 = vrot.lane.b32.xlu0 %v777, 64
    %v786 = vpop.permute.xlu0 %785
    %787 = vrot.lane.b32.xlu0 %v778, 64
    %v788 = vpop.permute.xlu0 %787
    %789 = vrot.lane.b32.xlu0 %v779, 64
    %v790 = vpop.permute.xlu0 %789
    %791 = vrot.lane.b32.xlu0 %v780, 64
    %v792 = vpop.permute.xlu0 %791
    %797 = vst.msk [vmem:[#allocation2] sm:$0xf] %vm309, %v786
    %798 = vst.msk [vmem:[#allocation2 + $0x8] sm:$0xf] %vm309, %v788
    %799 = vst.msk [vmem:[#allocation2 + $0x10] sm:$0xf] %vm309, %v790
    %800 = vst.msk [vmem:[#allocation2 + $0x18] sm:$0xf] %vm309, %v792
    %v801 = vrot.slane %v645, 1
    %v802 = vrot.slane %v646, 1
    %v803 = vrot.slane %v647, 1
    %v804 = vrot.slane %v648, 1
    %v805 = vsel %vm318, %v803, %v804
    %v806 = vsel %vm318, %v802, %v803
    %v807 = vsel %vm318, %v801, %v802
    %v808 = vsel %vm318, %v804, %v801
    %v809 = vmul.f32 %v807, %v326
    %v810 = vmul.f32 %v806, %v331
    %v811 = vmul.f32 %v805, %v336
    %v812 = vmul.f32 %v808, %v341
    %v813 = vpack.c.bf16 %v809, %v809
    %v814 = vpack.c.bf16 %v810, %v810
    %v815 = vpack.c.bf16 %v811, %v811
    %v816 = vpack.c.bf16 %v812, %v812
    %821 = vrot.lane.b32.xlu0 %v813, 80
    %v822 = vpop.permute.xlu0 %821
    %823 = vrot.lane.b32.xlu0 %v814, 80
    %v824 = vpop.permute.xlu0 %823
    %825 = vrot.lane.b32.xlu0 %v815, 80
    %v826 = vpop.permute.xlu0 %825
    %827 = vrot.lane.b32.xlu0 %v816, 80
    %v828 = vpop.permute.xlu0 %827
    %833 = vst.msk [vmem:[#allocation2] sm:$0xf] %vm367, %v822
    %834 = vst.msk [vmem:[#allocation2 + $0x8] sm:$0xf] %vm367, %v824
    %835 = vst.msk [vmem:[#allocation2 + $0x10] sm:$0xf] %vm367, %v826
    %836 = vst.msk [vmem:[#allocation2 + $0x18] sm:$0xf] %vm367, %v828
    %v837 = vmul.f32 %v655, %v375
    %v838 = vmul.f32 %v654, %v380
    %v839 = vmul.f32 %v653, %v385
    %v840 = vmul.f32 %v656, %v390
    %v841 = vpack.c.bf16 %v837, %v837
    %v842 = vpack.c.bf16 %v838, %v838
    %v843 = vpack.c.bf16 %v839, %v839
    %v844 = vpack.c.bf16 %v840, %v840
    %849 = vrot.lane.b32.xlu0 %v841, 96
    %v850 = vpop.permute.xlu0 %849
    %851 = vrot.lane.b32.xlu0 %v842, 96
    %v852 = vpop.permute.xlu0 %851
    %853 = vrot.lane.b32.xlu0 %v843, 96
    %v854 = vpop.permute.xlu0 %853
    %855 = vrot.lane.b32.xlu0 %v844, 96
    %v856 = vpop.permute.xlu0 %855
    %861 = vst.msk [vmem:[#allocation2] sm:$0xf] %vm416, %v850
    %862 = vst.msk [vmem:[#allocation2 + $0x8] sm:$0xf] %vm416, %v852
    %863 = vst.msk [vmem:[#allocation2 + $0x10] sm:$0xf] %vm416, %v854
    %864 = vst.msk [vmem:[#allocation2 + $0x18] sm:$0xf] %vm416, %v856
    %v865 = vmul.f32 %v675, %v424
    %v866 = vmul.f32 %v674, %v429
    %v867 = vmul.f32 %v673, %v434
    %v868 = vmul.f32 %v676, %v439
    %v869 = vpack.c.bf16 %v865, %v865
    %v870 = vpack.c.bf16 %v866, %v866
    %v871 = vpack.c.bf16 %v867, %v867
    %v872 = vpack.c.bf16 %v868, %v868
    %877 = vrot.lane.b32.xlu0 %v869, 112
    %v878 = vpop.permute.xlu0 %877
    %879 = vrot.lane.b32.xlu0 %v870, 112
    %v880 = vpop.permute.xlu0 %879
    %881 = vrot.lane.b32.xlu0 %v871, 112
    %v882 = vpop.permute.xlu0 %881
    %883 = vrot.lane.b32.xlu0 %v872, 112
    %v884 = vpop.permute.xlu0 %883
    %889 = vst.msk [vmem:[#allocation2] sm:$0xf] %vm465, %v878
    %890 = vst.msk [vmem:[#allocation2 + $0x8] sm:$0xf] %vm465, %v880
    %891 = vst.msk [vmem:[#allocation2 + $0x10] sm:$0xf] %vm465, %v882
    %892 = vst.msk [vmem:[#allocation2 + $0x18] sm:$0xf] %vm465, %v884
    %v893 = vmul.f32 %v711, %v473
    %v894 = vmul.f32 %v710, %v478
    %v895 = vmul.f32 %v709, %v483
    %v896 = vmul.f32 %v712, %v488
    %v897 = vpack.c.bf16 %v893, %v893
    %v898 = vpack.c.bf16 %v894, %v894
    %v899 = vpack.c.bf16 %v895, %v895
    %v900 = vpack.c.bf16 %v896, %v896
    %901 = vst.msk [vmem:[#allocation2 + $0x4] sm:$0xf] %vm110, %v897
    %902 = vst.msk [vmem:[#allocation2 + $0xc] sm:$0xf] %vm110, %v898
    %903 = vst.msk [vmem:[#allocation2 + $0x14] sm:$0xf] %vm110, %v899
    %904 = vst.msk [vmem:[#allocation2 + $0x1c] sm:$0xf] %vm110, %v900
    %v905 = vld [vmem:[#allocation2] sm:$0xff]
    %v906 = vld [vmem:[#allocation2 + $0x8] sm:$0xff]
    %v907 = vld [vmem:[#allocation2 + $0x10] sm:$0xff]
    %v908 = vld [vmem:[#allocation2 + $0x18] sm:$0xff]
    %s909 = scalar_lea.vmem %s2, 72
    %v910 = vld [vmem:[%s909] sm:$0xf]
    %v911 = vld [vmem:[%s909 + $0x4] sm:$0xf]
    %v912 = vld [vmem:[%s909 + $0x8] sm:$0xf]
    %v913 = vld [vmem:[%s909 + $0xc] sm:$0xf]
    %v914 = vld [vmem:[%s909 + $0x10] sm:$0xf]
    %v915 = vld [vmem:[%s909 + $0x14] sm:$0xf]
    %v916 = vld [vmem:[%s909 + $0x18] sm:$0xf]
    %v917 = vld [vmem:[%s909 + $0x1c] sm:$0xf]
    %v918 = vld [vmem:[%s909 + $0x20] sm:$0xf]
    %v919 = vld [vmem:[%s909 + $0x24] sm:$0xf]
    %v920 = vld [vmem:[%s909 + $0x28] sm:$0xf]
    %v921 = vld [vmem:[%s909 + $0x2c] sm:$0xf]
    %v922 = vld [vmem:[%s909 + $0x30] sm:$0xf]
    %v923 = vld [vmem:[%s909 + $0x34] sm:$0xf]
    %v924 = vld [vmem:[%s909 + $0x38] sm:$0xf]
    %v925 = vld [vmem:[%s909 + $0x3c] sm:$0xf]
    %v926 = vld [vmem:[%s909 + $0x40] sm:$0xf]
    %v927 = vld [vmem:[%s909 + $0x44] sm:$0xf]
    %s928 = scalar_lea.vmem %s3, 1
    %v929 = vld [vmem:[%s928] sm:$0x1]
    %v931 = vperm.slane %v929, 0
    %v937 = vunpack.c.l.b16 %v905
    %v938 = vunpack.c.h.b16 %v905
    %v939 = vunpack.c.l.b16 %v906
    %v940 = vunpack.c.h.b16 %v906
    %v941 = vunpack.c.l.b16 %v907
    %v942 = vunpack.c.h.b16 %v907
    %v943 = vunpack.c.l.b16 %v908
    %v944 = vunpack.c.h.b16 %v908
    %v945 = vpack.c.b16 %v939, %v937
    %v946 = vpack.c.b16 %v940, %v938
    %v947 = vpack.c.b16 %v943, %v941
    %v948 = vpack.c.b16 %v944, %v942
    %v969 = vunpack.c.l.b16 %v910
    %v970 = vunpack.c.l.b16 %v911
    %v971 = vunpack.c.l.b16 %v912
    %v972 = vunpack.c.l.b16 %v913
    %v973 = vunpack.c.l.b16 %v914
    %v974 = vunpack.c.l.b16 %v915
    %v975 = vunpack.c.l.b16 %v916
    %v976 = vunpack.c.l.b16 %v917
    %v977 = vunpack.c.l.b16 %v918
    %v978 = vunpack.c.l.b16 %v919
    %v979 = vunpack.c.l.b16 %v920
    %v980 = vunpack.c.l.b16 %v921
    %v981 = vunpack.c.l.b16 %v922
    %v982 = vunpack.c.l.b16 %v923
    %v983 = vunpack.c.l.b16 %v924
    %v984 = vunpack.c.l.b16 %v925
    %v985 = vunpack.c.l.b16 %v926
    %v986 = vunpack.c.l.b16 %v927
    %v987 = vpack.c.b16 %v970, %v969
    %v988 = vpack.c.b16 %v972, %v971
    %v989 = vpack.c.b16 %v974, %v973
    %v990 = vpack.c.b16 %v976, %v975
    %v991 = vpack.c.b16 %v978, %v977
    %v992 = vpack.c.b16 %v980, %v979
    %v993 = vpack.c.b16 %v982, %v981
    %v994 = vpack.c.b16 %v984, %v983
    %v995 = vpack.c.b16 %v986, %v985
    %v1006 = vsel %vm600, %v946, 0
    %v1009 = vsel %vm600, %v948, 0
    %1011 = vmatpush.bf16.msra.mxu0 %v994
    %1012 = vmatpush.bf16.msra.mxu0 %v993
    %1013 = vmatpush.bf16.msra.mxu0 %v992
    %1014 = vmatpush.bf16.msra.mxu0 %v991
    %1015 = vmatpush.bf16.msra.mxu0 %v990
    %1016 = vmatpush.bf16.msra.mxu0 %v989
    %1017 = vmatpush.bf16.msra.mxu0 %v988
    %1018 = vmatpush.bf16.msra.mxu0 %v987
    %1019 = vmatmul.bf16.gmra.mxu0 %v945
    %v1020 = vpop.f32.mrf.mxu0
    %v1021 = vadd.f32 %v931, %v1020
    %v1022 = vpop.f32.mrf.mxu0
    %v1023 = vadd.f32 %v931, %v1022
    %1024 = vmatmul.bf16.gmra.mxu0 %v947
    %v1025 = vpop.f32.mrf.mxu0
    %v1026 = vadd.f32 %v931, %v1025
    %v1027 = vpop.f32.mrf.mxu0
    %v1028 = vadd.f32 %v931, %v1027
    %1029 = vdwg.mxu0
    %1030 = vmatpush.bf16.msra.mxu0 0
    %1031 = vmatpush.bf16.msra.mxu0 0
    %1032 = vmatpush.bf16.msra.mxu0 0
    %1033 = vmatpush.bf16.msra.mxu0 0
    %1034 = vmatpush.bf16.msra.mxu0 0
    %1035 = vmatpush.bf16.msra.mxu0 0
    %1036 = vmatpush.bf16.msra.mxu0 0
    %1037 = vmatpush.bf16.msra.mxu0 %v995
    %1038 = vmatmul.bf16.gmra.mxu0 %v1006
    %v1039 = vpop.f32.mrf.mxu0
    %v1040 = vadd.f32 %v1021, %v1039
    %v1041 = vpop.f32.mrf.mxu0
    %v1042 = vadd.f32 %v1023, %v1041
    %1043 = vmatmul.bf16.gmra.mxu0 %v1009
    %v1044 = vpop.f32.mrf.mxu0
    %v1045 = vadd.f32 %v1026, %v1044
    %v1046 = vpop.f32.mrf.mxu0
    %v1047 = vadd.f32 %v1028, %v1046
    %1048 = vdwg.mxu0
    %v1049 = vmax.f32 %v1040, 0.0
    %v1050 = vmax.f32 %v1042, 0.0
    %v1051 = vmax.f32 %v1045, 0.0
    %v1052 = vmax.f32 %v1047, 0.0
    %v1053 = vrot.slane %v1049, 3
    %v1054 = vrot.slane %v1050, 3
    %v1055 = vrot.slane %v1051, 3
    %v1056 = vrot.slane %v1052, 3
    %v1057 = vsel %vm77, %v1055, %v1056
    %v1058 = vsel %vm77, %v1054, %v1055
    %v1059 = vsel %vm77, %v1053, %v1054
    %v1060 = vsel %vm77, %v1056, %v1053
    %v1061 = vmul.f32 %v1060, %v85
    %v1062 = vmul.f32 %v1059, %v90
    %v1063 = vmul.f32 %v1058, %v95
    %v1064 = vmul.f32 %v1057, %v100
    %v1065 = vpack.c.bf16 %v1061, %v1061
    %v1066 = vpack.c.bf16 %v1062, %v1062
    %v1067 = vpack.c.bf16 %v1063, %v1063
    %v1068 = vpack.c.bf16 %v1064, %v1064
    %1069 = vst.msk [vmem:[#allocation2] sm:$0xf] %vm110, %v1065
    %1070 = vst.msk [vmem:[#allocation2 + $0x8] sm:$0xf] %vm110, %v1066
    %1071 = vst.msk [vmem:[#allocation2 + $0x10] sm:$0xf] %vm110, %v1067
    %1072 = vst.msk [vmem:[#allocation2 + $0x18] sm:$0xf] %vm110, %v1068
    %v1073 = vrot.slane %v1049, 4
    %v1074 = vrot.slane %v1050, 4
    %v1075 = vrot.slane %v1051, 4
    %v1076 = vrot.slane %v1052, 4
    %v1077 = vsel %vm119, %v1075, %v1076
    %v1078 = vsel %vm119, %v1074, %v1075
    %v1079 = vsel %vm119, %v1073, %v1074
    %v1080 = vsel %vm119, %v1076, %v1073
    %v1081 = vmul.f32 %v1080, %v127
    %v1082 = vmul.f32 %v1079, %v132
    %v1083 = vmul.f32 %v1078, %v137
    %v1084 = vmul.f32 %v1077, %v142
    %v1085 = vpack.c.bf16 %v1081, %v1081
    %v1086 = vpack.c.bf16 %v1082, %v1082
    %v1087 = vpack.c.bf16 %v1083, %v1083
    %v1088 = vpack.c.bf16 %v1084, %v1084
    %1093 = vrot.lane.b32.xlu0 %v1085, 16
    %v1094 = vpop.permute.xlu0 %1093
    %1095 = vrot.lane.b32.xlu0 %v1086, 16
    %v1096 = vpop.permute.xlu0 %1095
    %1097 = vrot.lane.b32.xlu0 %v1087, 16
    %v1098 = vpop.permute.xlu0 %1097
    %1099 = vrot.lane.b32.xlu0 %v1088, 16
    %v1100 = vpop.permute.xlu0 %1099
    %1105 = vst.msk [vmem:[#allocation2] sm:$0xf] %vm168, %v1094
    %1106 = vst.msk [vmem:[#allocation2 + $0x8] sm:$0xf] %vm168, %v1096
    %1107 = vst.msk [vmem:[#allocation2 + $0x10] sm:$0xf] %vm168, %v1098
    %1108 = vst.msk [vmem:[#allocation2 + $0x18] sm:$0xf] %vm168, %v1100
    %v1109 = vrot.slane %v1049, 5
    %v1110 = vrot.slane %v1050, 5
    %v1111 = vrot.slane %v1051, 5
    %v1112 = vrot.slane %v1052, 5
    %v1113 = vsel %vm177, %v1111, %v1112
    %v1114 = vsel %vm177, %v1110, %v1111
    %v1115 = vsel %vm177, %v1109, %v1110
    %v1116 = vsel %vm177, %v1112, %v1109
    %v1117 = vmul.f32 %v1116, %v185
    %v1118 = vmul.f32 %v1115, %v190
    %v1119 = vmul.f32 %v1114, %v195
    %v1120 = vmul.f32 %v1113, %v200
    %v1121 = vpack.c.bf16 %v1117, %v1117
    %v1122 = vpack.c.bf16 %v1118, %v1118
    %v1123 = vpack.c.bf16 %v1119, %v1119
    %v1124 = vpack.c.bf16 %v1120, %v1120
    %1129 = vrot.lane.b32.xlu0 %v1121, 32
    %v1130 = vpop.permute.xlu0 %1129
    %1131 = vrot.lane.b32.xlu0 %v1122, 32
    %v1132 = vpop.permute.xlu0 %1131
    %1133 = vrot.lane.b32.xlu0 %v1123, 32
    %v1134 = vpop.permute.xlu0 %1133
    %1135 = vrot.lane.b32.xlu0 %v1124, 32
    %v1136 = vpop.permute.xlu0 %1135
    %1141 = vst.msk [vmem:[#allocation2] sm:$0xf] %vm226, %v1130
    %1142 = vst.msk [vmem:[#allocation2 + $0x8] sm:$0xf] %vm226, %v1132
    %1143 = vst.msk [vmem:[#allocation2 + $0x10] sm:$0xf] %vm226, %v1134
    %1144 = vst.msk [vmem:[#allocation2 + $0x18] sm:$0xf] %vm226, %v1136
    %v1145 = vrot.slane %v1049, 7
    %v1146 = vrot.slane %v1050, 7
    %v1147 = vrot.slane %v1051, 7
    %v1148 = vrot.slane %v1052, 7
    %v1149 = vsel %vm235, %v1147, %v1148
    %v1150 = vsel %vm235, %v1146, %v1147
    %v1151 = vsel %vm235, %v1145, %v1146
    %v1152 = vsel %vm235, %v1148, %v1145
    %v1153 = vmul.f32 %v1152, %v243
    %v1154 = vmul.f32 %v1151, %v248
    %v1155 = vmul.f32 %v1150, %v253
    %v1156 = vmul.f32 %v1149, %v258
    %v1157 = vpack.c.bf16 %v1153, %v1153
    %v1158 = vpack.c.bf16 %v1154, %v1154
    %v1159 = vpack.c.bf16 %v1155, %v1155
    %v1160 = vpack.c.bf16 %v1156, %v1156
    %1165 = vrot.lane.b32.xlu0 %v1157, 48
    %v1166 = vpop.permute.xlu0 %1165
    %1167 = vrot.lane.b32.xlu0 %v1158, 48
    %v1168 = vpop.permute.xlu0 %1167
    %1169 = vrot.lane.b32.xlu0 %v1159, 48
    %v1170 = vpop.permute.xlu0 %1169
    %1171 = vrot.lane.b32.xlu0 %v1160, 48
    %v1172 = vpop.permute.xlu0 %1171
    %1177 = vst.msk [vmem:[#allocation2] sm:$0xf] %vm284, %v1166
    %1178 = vst.msk [vmem:[#allocation2 + $0x8] sm:$0xf] %vm284, %v1168
    %1179 = vst.msk [vmem:[#allocation2 + $0x10] sm:$0xf] %vm284, %v1170
    %1180 = vst.msk [vmem:[#allocation2 + $0x18] sm:$0xf] %vm284, %v1172
    %v1181 = vpack.c.bf16 %v1049, %v1049
    %v1182 = vpack.c.bf16 %v1050, %v1050
    %v1183 = vpack.c.bf16 %v1051, %v1051
    %v1184 = vpack.c.bf16 %v1052, %v1052
    %1189 = vrot.lane.b32.xlu0 %v1181, 64
    %v1190 = vpop.permute.xlu0 %1189
    %1191 = vrot.lane.b32.xlu0 %v1182, 64
    %v1192 = vpop.permute.xlu0 %1191
    %1193 = vrot.lane.b32.xlu0 %v1183, 64
    %v1194 = vpop.permute.xlu0 %1193
    %1195 = vrot.lane.b32.xlu0 %v1184, 64
    %v1196 = vpop.permute.xlu0 %1195
    %1201 = vst.msk [vmem:[#allocation2] sm:$0xf] %vm309, %v1190
    %1202 = vst.msk [vmem:[#allocation2 + $0x8] sm:$0xf] %vm309, %v1192
    %1203 = vst.msk [vmem:[#allocation2 + $0x10] sm:$0xf] %vm309, %v1194
    %1204 = vst.msk [vmem:[#allocation2 + $0x18] sm:$0xf] %vm309, %v1196
    %v1205 = vrot.slane %v1049, 1
    %v1206 = vrot.slane %v1050, 1
    %v1207 = vrot.slane %v1051, 1
    %v1208 = vrot.slane %v1052, 1
    %v1209 = vsel %vm318, %v1207, %v1208
    %v1210 = vsel %vm318, %v1206, %v1207
    %v1211 = vsel %vm318, %v1205, %v1206
    %v1212 = vsel %vm318, %v1208, %v1205
    %v1213 = vmul.f32 %v1211, %v326
    %v1214 = vmul.f32 %v1210, %v331
    %v1215 = vmul.f32 %v1209, %v336
    %v1216 = vmul.f32 %v1212, %v341
    %v1217 = vpack.c.bf16 %v1213, %v1213
    %v1218 = vpack.c.bf16 %v1214, %v1214
    %v1219 = vpack.c.bf16 %v1215, %v1215
    %v1220 = vpack.c.bf16 %v1216, %v1216
    %1225 = vrot.lane.b32.xlu0 %v1217, 80
    %v1226 = vpop.permute.xlu0 %1225
    %1227 = vrot.lane.b32.xlu0 %v1218, 80
    %v1228 = vpop.permute.xlu0 %1227
    %1229 = vrot.lane.b32.xlu0 %v1219, 80
    %v1230 = vpop.permute.xlu0 %1229
    %1231 = vrot.lane.b32.xlu0 %v1220, 80
    %v1232 = vpop.permute.xlu0 %1231
    %1237 = vst.msk [vmem:[#allocation2] sm:$0xf] %vm367, %v1226
    %1238 = vst.msk [vmem:[#allocation2 + $0x8] sm:$0xf] %vm367, %v1228
    %1239 = vst.msk [vmem:[#allocation2 + $0x10] sm:$0xf] %vm367, %v1230
    %1240 = vst.msk [vmem:[#allocation2 + $0x18] sm:$0xf] %vm367, %v1232
    %v1241 = vmul.f32 %v1059, %v375
    %v1242 = vmul.f32 %v1058, %v380
    %v1243 = vmul.f32 %v1057, %v385
    %v1244 = vmul.f32 %v1060, %v390
    %v1245 = vpack.c.bf16 %v1241, %v1241
    %v1246 = vpack.c.bf16 %v1242, %v1242
    %v1247 = vpack.c.bf16 %v1243, %v1243
    %v1248 = vpack.c.bf16 %v1244, %v1244
    %1253 = vrot.lane.b32.xlu0 %v1245, 96
    %v1254 = vpop.permute.xlu0 %1253
    %1255 = vrot.lane.b32.xlu0 %v1246, 96
    %v1256 = vpop.permute.xlu0 %1255
    %1257 = vrot.lane.b32.xlu0 %v1247, 96
    %v1258 = vpop.permute.xlu0 %1257
    %1259 = vrot.lane.b32.xlu0 %v1248, 96
    %v1260 = vpop.permute.xlu0 %1259
    %1265 = vst.msk [vmem:[#allocation2] sm:$0xf] %vm416, %v1254
    %1266 = vst.msk [vmem:[#allocation2 + $0x8] sm:$0xf] %vm416, %v1256
    %1267 = vst.msk [vmem:[#allocation2 + $0x10] sm:$0xf] %vm416, %v1258
    %1268 = vst.msk [vmem:[#allocation2 + $0x18] sm:$0xf] %vm416, %v1260
    %v1269 = vmul.f32 %v1079, %v424
    %v1270 = vmul.f32 %v1078, %v429
    %v1271 = vmul.f32 %v1077, %v434
    %v1272 = vmul.f32 %v1080, %v439
    %v1273 = vpack.c.bf16 %v1269, %v1269
    %v1274 = vpack.c.bf16 %v1270, %v1270
    %v1275 = vpack.c.bf16 %v1271, %v1271
    %v1276 = vpack.c.bf16 %v1272, %v1272
    %1281 = vrot.lane.b32.xlu0 %v1273, 112
    %v1282 = vpop.permute.xlu0 %1281
    %1283 = vrot.lane.b32.xlu0 %v1274, 112
    %v1284 = vpop.permute.xlu0 %1283
    %1285 = vrot.lane.b32.xlu0 %v1275, 112
    %v1286 = vpop.permute.xlu0 %1285
    %1287 = vrot.lane.b32.xlu0 %v1276, 112
    %v1288 = vpop.permute.xlu0 %1287
    %1293 = vst.msk [vmem:[#allocation2] sm:$0xf] %vm465, %v1282
    %1294 = vst.msk [vmem:[#allocation2 + $0x8] sm:$0xf] %vm465, %v1284
    %1295 = vst.msk [vmem:[#allocation2 + $0x10] sm:$0xf] %vm465, %v1286
    %1296 = vst.msk [vmem:[#allocation2 + $0x18] sm:$0xf] %vm465, %v1288
    %v1297 = vmul.f32 %v1115, %v473
    %v1298 = vmul.f32 %v1114, %v478
    %v1299 = vmul.f32 %v1113, %v483
    %v1300 = vmul.f32 %v1116, %v488
    %v1301 = vpack.c.bf16 %v1297, %v1297
    %v1302 = vpack.c.bf16 %v1298, %v1298
    %v1303 = vpack.c.bf16 %v1299, %v1299
    %v1304 = vpack.c.bf16 %v1300, %v1300
    %1305 = vst.msk [vmem:[#allocation2 + $0x4] sm:$0xf] %vm110, %v1301
    %1306 = vst.msk [vmem:[#allocation2 + $0xc] sm:$0xf] %vm110, %v1302
    %1307 = vst.msk [vmem:[#allocation2 + $0x14] sm:$0xf] %vm110, %v1303
    %1308 = vst.msk [vmem:[#allocation2 + $0x1c] sm:$0xf] %vm110, %v1304
    %v1309 = vld [vmem:[#allocation2] sm:$0xff]
    %v1310 = vld [vmem:[#allocation2 + $0x8] sm:$0xff]
    %v1311 = vld [vmem:[#allocation2 + $0x10] sm:$0xff]
    %v1312 = vld [vmem:[#allocation2 + $0x18] sm:$0xff]
    %s1313 = scalar_lea.vmem %s2, 144
    %v1314 = vld [vmem:[%s1313] sm:$0xf]
    %v1315 = vld [vmem:[%s1313 + $0x4] sm:$0xf]
    %v1316 = vld [vmem:[%s1313 + $0x8] sm:$0xf]
    %v1317 = vld [vmem:[%s1313 + $0xc] sm:$0xf]
    %v1318 = vld [vmem:[%s1313 + $0x10] sm:$0xf]
    %v1319 = vld [vmem:[%s1313 + $0x14] sm:$0xf]
    %v1320 = vld [vmem:[%s1313 + $0x18] sm:$0xf]
    %v1321 = vld [vmem:[%s1313 + $0x1c] sm:$0xf]
    %v1322 = vld [vmem:[%s1313 + $0x20] sm:$0xf]
    %v1323 = vld [vmem:[%s1313 + $0x24] sm:$0xf]
    %v1324 = vld [vmem:[%s1313 + $0x28] sm:$0xf]
    %v1325 = vld [vmem:[%s1313 + $0x2c] sm:$0xf]
    %v1326 = vld [vmem:[%s1313 + $0x30] sm:$0xf]
    %v1327 = vld [vmem:[%s1313 + $0x34] sm:$0xf]
    %v1328 = vld [vmem:[%s1313 + $0x38] sm:$0xf]
    %v1329 = vld [vmem:[%s1313 + $0x3c] sm:$0xf]
    %v1330 = vld [vmem:[%s1313 + $0x40] sm:$0xf]
    %v1331 = vld [vmem:[%s1313 + $0x44] sm:$0xf]
    %s1332 = scalar_lea.vmem %s3, 2
    %v1333 = vld [vmem:[%s1332] sm:$0x1]
    %v1335 = vperm.slane %v1333, 0
    %v1341 = vunpack.c.l.b16 %v1309
    %v1342 = vunpack.c.h.b16 %v1309
    %v1343 = vunpack.c.l.b16 %v1310
    %v1344 = vunpack.c.h.b16 %v1310
    %v1345 = vunpack.c.l.b16 %v1311
    %v1346 = vunpack.c.h.b16 %v1311
    %v1347 = vunpack.c.l.b16 %v1312
    %v1348 = vunpack.c.h.b16 %v1312
    %v1349 = vpack.c.b16 %v1343, %v1341
    %v1350 = vpack.c.b16 %v1344, %v1342
    %v1351 = vpack.c.b16 %v1347, %v1345
    %v1352 = vpack.c.b16 %v1348, %v1346
    %v1373 = vunpack.c.l.b16 %v1314
    %v1374 = vunpack.c.l.b16 %v1315
    %v1375 = vunpack.c.l.b16 %v1316
    %v1376 = vunpack.c.l.b16 %v1317
    %v1377 = vunpack.c.l.b16 %v1318
    %v1378 = vunpack.c.l.b16 %v1319
    %v1379 = vunpack.c.l.b16 %v1320
    %v1380 = vunpack.c.l.b16 %v1321
    %v1381 = vunpack.c.l.b16 %v1322
    %v1382 = vunpack.c.l.b16 %v1323
    %v1383 = vunpack.c.l.b16 %v1324
    %v1384 = vunpack.c.l.b16 %v1325
    %v1385 = vunpack.c.l.b16 %v1326
    %v1386 = vunpack.c.l.b16 %v1327
    %v1387 = vunpack.c.l.b16 %v1328
    %v1388 = vunpack.c.l.b16 %v1329
    %v1389 = vunpack.c.l.b16 %v1330
    %v1390 = vunpack.c.l.b16 %v1331
    %v1391 = vpack.c.b16 %v1374, %v1373
    %v1392 = vpack.c.b16 %v1376, %v1375
    %v1393 = vpack.c.b16 %v1378, %v1377
    %v1394 = vpack.c.b16 %v1380, %v1379
    %v1395 = vpack.c.b16 %v1382, %v1381
    %v1396 = vpack.c.b16 %v1384, %v1383
    %v1397 = vpack.c.b16 %v1386, %v1385
    %v1398 = vpack.c.b16 %v1388, %v1387
    %v1399 = vpack.c.b16 %v1390, %v1389
    %v1410 = vsel %vm600, %v1350, 0
    %v1413 = vsel %vm600, %v1352, 0
    %1415 = vmatpush.bf16.msra.mxu0 %v1398
    %1416 = vmatpush.bf16.msra.mxu0 %v1397
    %1417 = vmatpush.bf16.msra.mxu0 %v1396
    %1418 = vmatpush.bf16.msra.mxu0 %v1395
    %1419 = vmatpush.bf16.msra.mxu0 %v1394
    %1420 = vmatpush.bf16.msra.mxu0 %v1393
    %1421 = vmatpush.bf16.msra.mxu0 %v1392
    %1422 = vmatpush.bf16.msra.mxu0 %v1391
    %1423 = vmatmul.bf16.gmra.mxu0 %v1349
    %v1424 = vpop.f32.mrf.mxu0
    %v1425 = vadd.f32 %v1335, %v1424
    %v1426 = vpop.f32.mrf.mxu0
    %v1427 = vadd.f32 %v1335, %v1426
    %1428 = vmatmul.bf16.gmra.mxu0 %v1351
    %v1429 = vpop.f32.mrf.mxu0
    %v1430 = vadd.f32 %v1335, %v1429
    %v1431 = vpop.f32.mrf.mxu0
    %v1432 = vadd.f32 %v1335, %v1431
    %1433 = vdwg.mxu0
    %1434 = vmatpush.bf16.msra.mxu0 0
    %1435 = vmatpush.bf16.msra.mxu0 0
    %1436 = vmatpush.bf16.msra.mxu0 0
    %1437 = vmatpush.bf16.msra.mxu0 0
    %1438 = vmatpush.bf16.msra.mxu0 0
    %1439 = vmatpush.bf16.msra.mxu0 0
    %1440 = vmatpush.bf16.msra.mxu0 0
    %1441 = vmatpush.bf16.msra.mxu0 %v1399
    %1442 = vmatmul.bf16.gmra.mxu0 %v1410
    %v1443 = vpop.f32.mrf.mxu0
    %v1444 = vadd.f32 %v1425, %v1443
    %v1445 = vpop.f32.mrf.mxu0
    %v1446 = vadd.f32 %v1427, %v1445
    %1447 = vmatmul.bf16.gmra.mxu0 %v1413
    %v1448 = vpop.f32.mrf.mxu0
    %v1449 = vadd.f32 %v1430, %v1448
    %v1450 = vpop.f32.mrf.mxu0
    %v1451 = vadd.f32 %v1432, %v1450
    %1452 = vdwg.mxu0
    %v1453 = vmax.f32 %v1444, 0.0
    %v1454 = vmax.f32 %v1446, 0.0
    %v1455 = vmax.f32 %v1449, 0.0
    %v1456 = vmax.f32 %v1451, 0.0
    %v1457 = vrot.slane %v1453, 3
    %v1458 = vrot.slane %v1454, 3
    %v1459 = vrot.slane %v1455, 3
    %v1460 = vrot.slane %v1456, 3
    %v1461 = vsel %vm77, %v1459, %v1460
    %v1462 = vsel %vm77, %v1458, %v1459
    %v1463 = vsel %vm77, %v1457, %v1458
    %v1464 = vsel %vm77, %v1460, %v1457
    %v1465 = vmul.f32 %v1464, %v85
    %v1466 = vmul.f32 %v1463, %v90
    %v1467 = vmul.f32 %v1462, %v95
    %v1468 = vmul.f32 %v1461, %v100
    %v1469 = vpack.c.bf16 %v1465, %v1465
    %v1470 = vpack.c.bf16 %v1466, %v1466
    %v1471 = vpack.c.bf16 %v1467, %v1467
    %v1472 = vpack.c.bf16 %v1468, %v1468
    %1473 = vst.msk [vmem:[#allocation2] sm:$0xf] %vm110, %v1469
    %1474 = vst.msk [vmem:[#allocation2 + $0x8] sm:$0xf] %vm110, %v1470
    %1475 = vst.msk [vmem:[#allocation2 + $0x10] sm:$0xf] %vm110, %v1471
    %1476 = vst.msk [vmem:[#allocation2 + $0x18] sm:$0xf] %vm110, %v1472
    %v1477 = vrot.slane %v1453, 4
    %v1478 = vrot.slane %v1454, 4
    %v1479 = vrot.slane %v1455, 4
    %v1480 = vrot.slane %v1456, 4
    %v1481 = vsel %vm119, %v1479, %v1480
    %v1482 = vsel %vm119, %v1478, %v1479
    %v1483 = vsel %vm119, %v1477, %v1478
    %v1484 = vsel %vm119, %v1480, %v1477
    %v1485 = vmul.f32 %v1484, %v127
    %v1486 = vmul.f32 %v1483, %v132
    %v1487 = vmul.f32 %v1482, %v137
    %v1488 = vmul.f32 %v1481, %v142
    %v1489 = vpack.c.bf16 %v1485, %v1485
    %v1490 = vpack.c.bf16 %v1486, %v1486
    %v1491 = vpack.c.bf16 %v1487, %v1487
    %v1492 = vpack.c.bf16 %v1488, %v1488
    %1497 = vrot.lane.b32.xlu0 %v1489, 16
    %v1498 = vpop.permute.xlu0 %1497
    %1499 = vrot.lane.b32.xlu0 %v1490, 16
    %v1500 = vpop.permute.xlu0 %1499
    %1501 = vrot.lane.b32.xlu0 %v1491, 16
    %v1502 = vpop.permute.xlu0 %1501
    %1503 = vrot.lane.b32.xlu0 %v1492, 16
    %v1504 = vpop.permute.xlu0 %1503
    %1509 = vst.msk [vmem:[#allocation2] sm:$0xf] %vm168, %v1498
    %1510 = vst.msk [vmem:[#allocation2 + $0x8] sm:$0xf] %vm168, %v1500
    %1511 = vst.msk [vmem:[#allocation2 + $0x10] sm:$0xf] %vm168, %v1502
    %1512 = vst.msk [vmem:[#allocation2 + $0x18] sm:$0xf] %vm168, %v1504
    %v1513 = vrot.slane %v1453, 5
    %v1514 = vrot.slane %v1454, 5
    %v1515 = vrot.slane %v1455, 5
    %v1516 = vrot.slane %v1456, 5
    %v1517 = vsel %vm177, %v1515, %v1516
    %v1518 = vsel %vm177, %v1514, %v1515
    %v1519 = vsel %vm177, %v1513, %v1514
    %v1520 = vsel %vm177, %v1516, %v1513
    %v1521 = vmul.f32 %v1520, %v185
    %v1522 = vmul.f32 %v1519, %v190
    %v1523 = vmul.f32 %v1518, %v195
    %v1524 = vmul.f32 %v1517, %v200
    %v1525 = vpack.c.bf16 %v1521, %v1521
    %v1526 = vpack.c.bf16 %v1522, %v1522
    %v1527 = vpack.c.bf16 %v1523, %v1523
    %v1528 = vpack.c.bf16 %v1524, %v1524
    %1533 = vrot.lane.b32.xlu0 %v1525, 32
    %v1534 = vpop.permute.xlu0 %1533
    %1535 = vrot.lane.b32.xlu0 %v1526, 32
    %v1536 = vpop.permute.xlu0 %1535
    %1537 = vrot.lane.b32.xlu0 %v1527, 32
    %v1538 = vpop.permute.xlu0 %1537
    %1539 = vrot.lane.b32.xlu0 %v1528, 32
    %v1540 = vpop.permute.xlu0 %1539
    %1545 = vst.msk [vmem:[#allocation2] sm:$0xf] %vm226, %v1534
    %1546 = vst.msk [vmem:[#allocation2 + $0x8] sm:$0xf] %vm226, %v1536
    %1547 = vst.msk [vmem:[#allocation2 + $0x10] sm:$0xf] %vm226, %v1538
    %1548 = vst.msk [vmem:[#allocation2 + $0x18] sm:$0xf] %vm226, %v1540
    %v1549 = vrot.slane %v1453, 7
    %v1550 = vrot.slane %v1454, 7
    %v1551 = vrot.slane %v1455, 7
    %v1552 = vrot.slane %v1456, 7
    %v1553 = vsel %vm235, %v1551, %v1552
    %v1554 = vsel %vm235, %v1550, %v1551
    %v1555 = vsel %vm235, %v1549, %v1550
    %v1556 = vsel %vm235, %v1552, %v1549
    %v1557 = vmul.f32 %v1556, %v243
    %v1558 = vmul.f32 %v1555, %v248
    %v1559 = vmul.f32 %v1554, %v253
    %v1560 = vmul.f32 %v1553, %v258
    %v1561 = vpack.c.bf16 %v1557, %v1557
    %v1562 = vpack.c.bf16 %v1558, %v1558
    %v1563 = vpack.c.bf16 %v1559, %v1559
    %v1564 = vpack.c.bf16 %v1560, %v1560
    %1569 = vrot.lane.b32.xlu0 %v1561, 48
    %v1570 = vpop.permute.xlu0 %1569
    %1571 = vrot.lane.b32.xlu0 %v1562, 48
    %v1572 = vpop.permute.xlu0 %1571
    %1573 = vrot.lane.b32.xlu0 %v1563, 48
    %v1574 = vpop.permute.xlu0 %1573
    %1575 = vrot.lane.b32.xlu0 %v1564, 48
    %v1576 = vpop.permute.xlu0 %1575
    %1581 = vst.msk [vmem:[#allocation2] sm:$0xf] %vm284, %v1570
    %1582 = vst.msk [vmem:[#allocation2 + $0x8] sm:$0xf] %vm284, %v1572
    %1583 = vst.msk [vmem:[#allocation2 + $0x10] sm:$0xf] %vm284, %v1574
    %1584 = vst.msk [vmem:[#allocation2 + $0x18] sm:$0xf] %vm284, %v1576
    %v1585 = vpack.c.bf16 %v1453, %v1453
    %v1586 = vpack.c.bf16 %v1454, %v1454
    %v1587 = vpack.c.bf16 %v1455, %v1455
    %v1588 = vpack.c.bf16 %v1456, %v1456
    %1593 = vrot.lane.b32.xlu0 %v1585, 64
    %v1594 = vpop.permute.xlu0 %1593
    %1595 = vrot.lane.b32.xlu0 %v1586, 64
    %v1596 = vpop.permute.xlu0 %1595
    %1597 = vrot.lane.b32.xlu0 %v1587, 64
    %v1598 = vpop.permute.xlu0 %1597
    %1599 = vrot.lane.b32.xlu0 %v1588, 64
    %v1600 = vpop.permute.xlu0 %1599
    %1605 = vst.msk [vmem:[#allocation2] sm:$0xf] %vm309, %v1594
    %1606 = vst.msk [vmem:[#allocation2 + $0x8] sm:$0xf] %vm309, %v1596
    %1607 = vst.msk [vmem:[#allocation2 + $0x10] sm:$0xf] %vm309, %v1598
    %1608 = vst.msk [vmem:[#allocation2 + $0x18] sm:$0xf] %vm309, %v1600
    %v1609 = vrot.slane %v1453, 1
    %v1610 = vrot.slane %v1454, 1
    %v1611 = vrot.slane %v1455, 1
    %v1612 = vrot.slane %v1456, 1
    %v1613 = vsel %vm318, %v1611, %v1612
    %v1614 = vsel %vm318, %v1610, %v1611
    %v1615 = vsel %vm318, %v1609, %v1610
    %v1616 = vsel %vm318, %v1612, %v1609
    %v1617 = vmul.f32 %v1615, %v326
    %v1618 = vmul.f32 %v1614, %v331
    %v1619 = vmul.f32 %v1613, %v336
    %v1620 = vmul.f32 %v1616, %v341
    %v1621 = vpack.c.bf16 %v1617, %v1617
    %v1622 = vpack.c.bf16 %v1618, %v1618
    %v1623 = vpack.c.bf16 %v1619, %v1619
    %v1624 = vpack.c.bf16 %v1620, %v1620
    %1629 = vrot.lane.b32.xlu0 %v1621, 80
    %v1630 = vpop.permute.xlu0 %1629
    %1631 = vrot.lane.b32.xlu0 %v1622, 80
    %v1632 = vpop.permute.xlu0 %1631
    %1633 = vrot.lane.b32.xlu0 %v1623, 80
    %v1634 = vpop.permute.xlu0 %1633
    %1635 = vrot.lane.b32.xlu0 %v1624, 80
    %v1636 = vpop.permute.xlu0 %1635
    %1641 = vst.msk [vmem:[#allocation2] sm:$0xf] %vm367, %v1630
    %1642 = vst.msk [vmem:[#allocation2 + $0x8] sm:$0xf] %vm367, %v1632
    %1643 = vst.msk [vmem:[#allocation2 + $0x10] sm:$0xf] %vm367, %v1634
    %1644 = vst.msk [vmem:[#allocation2 + $0x18] sm:$0xf] %vm367, %v1636
    %v1645 = vmul.f32 %v1463, %v375
    %v1646 = vmul.f32 %v1462, %v380
    %v1647 = vmul.f32 %v1461, %v385
    %v1648 = vmul.f32 %v1464, %v390
    %v1649 = vpack.c.bf16 %v1645, %v1645
    %v1650 = vpack.c.bf16 %v1646, %v1646
    %v1651 = vpack.c.bf16 %v1647, %v1647
    %v1652 = vpack.c.bf16 %v1648, %v1648
    %1657 = vrot.lane.b32.xlu0 %v1649, 96
    %v1658 = vpop.permute.xlu0 %1657
    %1659 = vrot.lane.b32.xlu0 %v1650, 96
    %v1660 = vpop.permute.xlu0 %1659
    %1661 = vrot.lane.b32.xlu0 %v1651, 96
    %v1662 = vpop.permute.xlu0 %1661
    %1663 = vrot.lane.b32.xlu0 %v1652, 96
    %v1664 = vpop.permute.xlu0 %1663
    %1669 = vst.msk [vmem:[#allocation2] sm:$0xf] %vm416, %v1658
    %1670 = vst.msk [vmem:[#allocation2 + $0x8] sm:$0xf] %vm416, %v1660
    %1671 = vst.msk [vmem:[#allocation2 + $0x10] sm:$0xf] %vm416, %v1662
    %1672 = vst.msk [vmem:[#allocation2 + $0x18] sm:$0xf] %vm416, %v1664
    %v1673 = vmul.f32 %v1483, %v424
    %v1674 = vmul.f32 %v1482, %v429
    %v1675 = vmul.f32 %v1481, %v434
    %v1676 = vmul.f32 %v1484, %v439
    %v1677 = vpack.c.bf16 %v1673, %v1673
    %v1678 = vpack.c.bf16 %v1674, %v1674
    %v1679 = vpack.c.bf16 %v1675, %v1675
    %v1680 = vpack.c.bf16 %v1676, %v1676
    %1685 = vrot.lane.b32.xlu0 %v1677, 112
    %v1686 = vpop.permute.xlu0 %1685
    %1687 = vrot.lane.b32.xlu0 %v1678, 112
    %v1688 = vpop.permute.xlu0 %1687
    %1689 = vrot.lane.b32.xlu0 %v1679, 112
    %v1690 = vpop.permute.xlu0 %1689
    %1691 = vrot.lane.b32.xlu0 %v1680, 112
    %v1692 = vpop.permute.xlu0 %1691
    %1697 = vst.msk [vmem:[#allocation2] sm:$0xf] %vm465, %v1686
    %1698 = vst.msk [vmem:[#allocation2 + $0x8] sm:$0xf] %vm465, %v1688
    %1699 = vst.msk [vmem:[#allocation2 + $0x10] sm:$0xf] %vm465, %v1690
    %1700 = vst.msk [vmem:[#allocation2 + $0x18] sm:$0xf] %vm465, %v1692
    %v1701 = vmul.f32 %v1519, %v473
    %v1702 = vmul.f32 %v1518, %v478
    %v1703 = vmul.f32 %v1517, %v483
    %v1704 = vmul.f32 %v1520, %v488
    %v1705 = vpack.c.bf16 %v1701, %v1701
    %v1706 = vpack.c.bf16 %v1702, %v1702
    %v1707 = vpack.c.bf16 %v1703, %v1703
    %v1708 = vpack.c.bf16 %v1704, %v1704
    %1709 = vst.msk [vmem:[#allocation2 + $0x4] sm:$0xf] %vm110, %v1705
    %1710 = vst.msk [vmem:[#allocation2 + $0xc] sm:$0xf] %vm110, %v1706
    %1711 = vst.msk [vmem:[#allocation2 + $0x14] sm:$0xf] %vm110, %v1707
    %1712 = vst.msk [vmem:[#allocation2 + $0x1c] sm:$0xf] %vm110, %v1708
    %v1713 = vld [vmem:[#allocation2] sm:$0xff]
    %v1714 = vld [vmem:[#allocation2 + $0x8] sm:$0xff]
    %v1715 = vld [vmem:[#allocation2 + $0x10] sm:$0xff]
    %v1716 = vld [vmem:[#allocation2 + $0x18] sm:$0xff]
    %s1717 = scalar_lea.vmem %s2, 216
    %v1718 = vld [vmem:[%s1717] sm:$0xf]
    %v1719 = vld [vmem:[%s1717 + $0x4] sm:$0xf]
    %v1720 = vld [vmem:[%s1717 + $0x8] sm:$0xf]
    %v1721 = vld [vmem:[%s1717 + $0xc] sm:$0xf]
    %v1722 = vld [vmem:[%s1717 + $0x10] sm:$0xf]
    %v1723 = vld [vmem:[%s1717 + $0x14] sm:$0xf]
    %v1724 = vld [vmem:[%s1717 + $0x18] sm:$0xf]
    %v1725 = vld [vmem:[%s1717 + $0x1c] sm:$0xf]
    %v1726 = vld [vmem:[%s1717 + $0x20] sm:$0xf]
    %v1727 = vld [vmem:[%s1717 + $0x24] sm:$0xf]
    %v1728 = vld [vmem:[%s1717 + $0x28] sm:$0xf]
    %v1729 = vld [vmem:[%s1717 + $0x2c] sm:$0xf]
    %v1730 = vld [vmem:[%s1717 + $0x30] sm:$0xf]
    %v1731 = vld [vmem:[%s1717 + $0x34] sm:$0xf]
    %v1732 = vld [vmem:[%s1717 + $0x38] sm:$0xf]
    %v1733 = vld [vmem:[%s1717 + $0x3c] sm:$0xf]
    %v1734 = vld [vmem:[%s1717 + $0x40] sm:$0xf]
    %v1735 = vld [vmem:[%s1717 + $0x44] sm:$0xf]
    %s1736 = scalar_lea.vmem %s3, 3
    %v1737 = vld [vmem:[%s1736] sm:$0x1]
    %v1739 = vperm.slane %v1737, 0
    %v1745 = vunpack.c.l.b16 %v1713
    %v1746 = vunpack.c.h.b16 %v1713
    %v1747 = vunpack.c.l.b16 %v1714
    %v1748 = vunpack.c.h.b16 %v1714
    %v1749 = vunpack.c.l.b16 %v1715
    %v1750 = vunpack.c.h.b16 %v1715
    %v1751 = vunpack.c.l.b16 %v1716
    %v1752 = vunpack.c.h.b16 %v1716
    %v1753 = vpack.c.b16 %v1747, %v1745
    %v1754 = vpack.c.b16 %v1748, %v1746
    %v1755 = vpack.c.b16 %v1751, %v1749
    %v1756 = vpack.c.b16 %v1752, %v1750
    %v1777 = vunpack.c.l.b16 %v1718
    %v1778 = vunpack.c.l.b16 %v1719
    %v1779 = vunpack.c.l.b16 %v1720
    %v1780 = vunpack.c.l.b16 %v1721
    %v1781 = vunpack.c.l.b16 %v1722
    %v1782 = vunpack.c.l.b16 %v1723
    %v1783 = vunpack.c.l.b16 %v1724
    %v1784 = vunpack.c.l.b16 %v1725
    %v1785 = vunpack.c.l.b16 %v1726
    %v1786 = vunpack.c.l.b16 %v1727
    %v1787 = vunpack.c.l.b16 %v1728
    %v1788 = vunpack.c.l.b16 %v1729
    %v1789 = vunpack.c.l.b16 %v1730
    %v1790 = vunpack.c.l.b16 %v1731
    %v1791 = vunpack.c.l.b16 %v1732
    %v1792 = vunpack.c.l.b16 %v1733
    %v1793 = vunpack.c.l.b16 %v1734
    %v1794 = vunpack.c.l.b16 %v1735
    %v1795 = vpack.c.b16 %v1778, %v1777
    %v1796 = vpack.c.b16 %v1780, %v1779
    %v1797 = vpack.c.b16 %v1782, %v1781
    %v1798 = vpack.c.b16 %v1784, %v1783
    %v1799 = vpack.c.b16 %v1786, %v1785
    %v1800 = vpack.c.b16 %v1788, %v1787
    %v1801 = vpack.c.b16 %v1790, %v1789
    %v1802 = vpack.c.b16 %v1792, %v1791
    %v1803 = vpack.c.b16 %v1794, %v1793
    %v1814 = vsel %vm600, %v1754, 0
    %v1817 = vsel %vm600, %v1756, 0
    %1819 = vmatpush.bf16.msra.mxu0 %v1802
    %1820 = vmatpush.bf16.msra.mxu0 %v1801
    %1821 = vmatpush.bf16.msra.mxu0 %v1800
    %1822 = vmatpush.bf16.msra.mxu0 %v1799
    %1823 = vmatpush.bf16.msra.mxu0 %v1798
    %1824 = vmatpush.bf16.msra.mxu0 %v1797
    %1825 = vmatpush.bf16.msra.mxu0 %v1796
    %1826 = vmatpush.bf16.msra.mxu0 %v1795
    %1827 = vmatmul.bf16.gmra.mxu0 %v1753
    %v1828 = vpop.f32.mrf.mxu0
    %v1829 = vadd.f32 %v1739, %v1828
    %v1830 = vpop.f32.mrf.mxu0
    %v1831 = vadd.f32 %v1739, %v1830
    %1832 = vmatmul.bf16.gmra.mxu0 %v1755
    %v1833 = vpop.f32.mrf.mxu0
    %v1834 = vadd.f32 %v1739, %v1833
    %v1835 = vpop.f32.mrf.mxu0
    %v1836 = vadd.f32 %v1739, %v1835
    %1837 = vdwg.mxu0
    %1838 = vmatpush.bf16.msra.mxu0 0
    %1839 = vmatpush.bf16.msra.mxu0 0
    %1840 = vmatpush.bf16.msra.mxu0 0
    %1841 = vmatpush.bf16.msra.mxu0 0
    %1842 = vmatpush.bf16.msra.mxu0 0
    %1843 = vmatpush.bf16.msra.mxu0 0
    %1844 = vmatpush.bf16.msra.mxu0 0
    %1845 = vmatpush.bf16.msra.mxu0 %v1803
    %1846 = vmatmul.bf16.gmra.mxu0 %v1814
    %v1847 = vpop.f32.mrf.mxu0
    %v1848 = vadd.f32 %v1829, %v1847
    %v1849 = vpop.f32.mrf.mxu0
    %v1850 = vadd.f32 %v1831, %v1849
    %1851 = vmatmul.bf16.gmra.mxu0 %v1817
    %v1852 = vpop.f32.mrf.mxu0
    %v1853 = vadd.f32 %v1834, %v1852
    %v1854 = vpop.f32.mrf.mxu0
    %v1855 = vadd.f32 %v1836, %v1854
    %1856 = vdwg.mxu0
    %v1857 = vmax.f32 %v1848, 0.0
    %v1858 = vmax.f32 %v1850, 0.0
    %v1859 = vmax.f32 %v1853, 0.0
    %v1860 = vmax.f32 %v1855, 0.0
    %v1861 = vrot.slane %v1857, 3
    %v1862 = vrot.slane %v1858, 3
    %v1863 = vrot.slane %v1859, 3
    %v1864 = vrot.slane %v1860, 3
    %v1865 = vsel %vm77, %v1863, %v1864
    %v1866 = vsel %vm77, %v1862, %v1863
    %v1867 = vsel %vm77, %v1861, %v1862
    %v1868 = vsel %vm77, %v1864, %v1861
    %v1869 = vmul.f32 %v1868, %v85
    %v1870 = vmul.f32 %v1867, %v90
    %v1871 = vmul.f32 %v1866, %v95
    %v1872 = vmul.f32 %v1865, %v100
    %v1873 = vpack.c.bf16 %v1869, %v1869
    %v1874 = vpack.c.bf16 %v1870, %v1870
    %v1875 = vpack.c.bf16 %v1871, %v1871
    %v1876 = vpack.c.bf16 %v1872, %v1872
    %1877 = vst.msk [vmem:[#allocation2] sm:$0xf] %vm110, %v1873
    %1878 = vst.msk [vmem:[#allocation2 + $0x8] sm:$0xf] %vm110, %v1874
    %1879 = vst.msk [vmem:[#allocation2 + $0x10] sm:$0xf] %vm110, %v1875
    %1880 = vst.msk [vmem:[#allocation2 + $0x18] sm:$0xf] %vm110, %v1876
    %v1881 = vrot.slane %v1857, 4
    %v1882 = vrot.slane %v1858, 4
    %v1883 = vrot.slane %v1859, 4
    %v1884 = vrot.slane %v1860, 4
    %v1885 = vsel %vm119, %v1883, %v1884
    %v1886 = vsel %vm119, %v1882, %v1883
    %v1887 = vsel %vm119, %v1881, %v1882
    %v1888 = vsel %vm119, %v1884, %v1881
    %v1889 = vmul.f32 %v1888, %v127
    %v1890 = vmul.f32 %v1887, %v132
    %v1891 = vmul.f32 %v1886, %v137
    %v1892 = vmul.f32 %v1885, %v142
    %v1893 = vpack.c.bf16 %v1889, %v1889
    %v1894 = vpack.c.bf16 %v1890, %v1890
    %v1895 = vpack.c.bf16 %v1891, %v1891
    %v1896 = vpack.c.bf16 %v1892, %v1892
    %1901 = vrot.lane.b32.xlu0 %v1893, 16
    %v1902 = vpop.permute.xlu0 %1901
    %1903 = vrot.lane.b32.xlu0 %v1894, 16
    %v1904 = vpop.permute.xlu0 %1903
    %1905 = vrot.lane.b32.xlu0 %v1895, 16
    %v1906 = vpop.permute.xlu0 %1905
    %1907 = vrot.lane.b32.xlu0 %v1896, 16
    %v1908 = vpop.permute.xlu0 %1907
    %1913 = vst.msk [vmem:[#allocation2] sm:$0xf] %vm168, %v1902
    %1914 = vst.msk [vmem:[#allocation2 + $0x8] sm:$0xf] %vm168, %v1904
    %1915 = vst.msk [vmem:[#allocation2 + $0x10] sm:$0xf] %vm168, %v1906
    %1916 = vst.msk [vmem:[#allocation2 + $0x18] sm:$0xf] %vm168, %v1908
    %v1917 = vrot.slane %v1857, 5
    %v1918 = vrot.slane %v1858, 5
    %v1919 = vrot.slane %v1859, 5
    %v1920 = vrot.slane %v1860, 5
    %v1921 = vsel %vm177, %v1919, %v1920
    %v1922 = vsel %vm177, %v1918, %v1919
    %v1923 = vsel %vm177, %v1917, %v1918
    %v1924 = vsel %vm177, %v1920, %v1917
    %v1925 = vmul.f32 %v1924, %v185
    %v1926 = vmul.f32 %v1923, %v190
    %v1927 = vmul.f32 %v1922, %v195
    %v1928 = vmul.f32 %v1921, %v200
    %v1929 = vpack.c.bf16 %v1925, %v1925
    %v1930 = vpack.c.bf16 %v1926, %v1926
    %v1931 = vpack.c.bf16 %v1927, %v1927
    %v1932 = vpack.c.bf16 %v1928, %v1928
    %1937 = vrot.lane.b32.xlu0 %v1929, 32
    %v1938 = vpop.permute.xlu0 %1937
    %1939 = vrot.lane.b32.xlu0 %v1930, 32
    %v1940 = vpop.permute.xlu0 %1939
    %1941 = vrot.lane.b32.xlu0 %v1931, 32
    %v1942 = vpop.permute.xlu0 %1941
    %1943 = vrot.lane.b32.xlu0 %v1932, 32
    %v1944 = vpop.permute.xlu0 %1943
    %1949 = vst.msk [vmem:[#allocation2] sm:$0xf] %vm226, %v1938
    %1950 = vst.msk [vmem:[#allocation2 + $0x8] sm:$0xf] %vm226, %v1940
    %1951 = vst.msk [vmem:[#allocation2 + $0x10] sm:$0xf] %vm226, %v1942
    %1952 = vst.msk [vmem:[#allocation2 + $0x18] sm:$0xf] %vm226, %v1944
    %v1953 = vrot.slane %v1857, 7
    %v1954 = vrot.slane %v1858, 7
    %v1955 = vrot.slane %v1859, 7
    %v1956 = vrot.slane %v1860, 7
    %v1957 = vsel %vm235, %v1955, %v1956
    %v1958 = vsel %vm235, %v1954, %v1955
    %v1959 = vsel %vm235, %v1953, %v1954
    %v1960 = vsel %vm235, %v1956, %v1953
    %v1961 = vmul.f32 %v1960, %v243
    %v1962 = vmul.f32 %v1959, %v248
    %v1963 = vmul.f32 %v1958, %v253
    %v1964 = vmul.f32 %v1957, %v258
    %v1965 = vpack.c.bf16 %v1961, %v1961
    %v1966 = vpack.c.bf16 %v1962, %v1962
    %v1967 = vpack.c.bf16 %v1963, %v1963
    %v1968 = vpack.c.bf16 %v1964, %v1964
    %1973 = vrot.lane.b32.xlu0 %v1965, 48
    %v1974 = vpop.permute.xlu0 %1973
    %1975 = vrot.lane.b32.xlu0 %v1966, 48
    %v1976 = vpop.permute.xlu0 %1975
    %1977 = vrot.lane.b32.xlu0 %v1967, 48
    %v1978 = vpop.permute.xlu0 %1977
    %1979 = vrot.lane.b32.xlu0 %v1968, 48
    %v1980 = vpop.permute.xlu0 %1979
    %1985 = vst.msk [vmem:[#allocation2] sm:$0xf] %vm284, %v1974
    %1986 = vst.msk [vmem:[#allocation2 + $0x8] sm:$0xf] %vm284, %v1976
    %1987 = vst.msk [vmem:[#allocation2 + $0x10] sm:$0xf] %vm284, %v1978
    %1988 = vst.msk [vmem:[#allocation2 + $0x18] sm:$0xf] %vm284, %v1980
    %v1989 = vpack.c.bf16 %v1857, %v1857
    %v1990 = vpack.c.bf16 %v1858, %v1858
    %v1991 = vpack.c.bf16 %v1859, %v1859
    %v1992 = vpack.c.bf16 %v1860, %v1860
    %1997 = vrot.lane.b32.xlu0 %v1989, 64
    %v1998 = vpop.permute.xlu0 %1997
    %1999 = vrot.lane.b32.xlu0 %v1990, 64
    %v2000 = vpop.permute.xlu0 %1999
    %2001 = vrot.lane.b32.xlu0 %v1991, 64
    %v2002 = vpop.permute.xlu0 %2001
    %2003 = vrot.lane.b32.xlu0 %v1992, 64
    %v2004 = vpop.permute.xlu0 %2003
    %2009 = vst.msk [vmem:[#allocation2] sm:$0xf] %vm309, %v1998
    %2010 = vst.msk [vmem:[#allocation2 + $0x8] sm:$0xf] %vm309, %v2000
    %2011 = vst.msk [vmem:[#allocation2 + $0x10] sm:$0xf] %vm309, %v2002
    %2012 = vst.msk [vmem:[#allocation2 + $0x18] sm:$0xf] %vm309, %v2004
    %v2013 = vrot.slane %v1857, 1
    %v2014 = vrot.slane %v1858, 1
    %v2015 = vrot.slane %v1859, 1
    %v2016 = vrot.slane %v1860, 1
    %v2017 = vsel %vm318, %v2015, %v2016
    %v2018 = vsel %vm318, %v2014, %v2015
    %v2019 = vsel %vm318, %v2013, %v2014
    %v2020 = vsel %vm318, %v2016, %v2013
    %v2021 = vmul.f32 %v2019, %v326
    %v2022 = vmul.f32 %v2018, %v331
    %v2023 = vmul.f32 %v2017, %v336
    %v2024 = vmul.f32 %v2020, %v341
    %v2025 = vpack.c.bf16 %v2021, %v2021
    %v2026 = vpack.c.bf16 %v2022, %v2022
    %v2027 = vpack.c.bf16 %v2023, %v2023
    %v2028 = vpack.c.bf16 %v2024, %v2024
    %2033 = vrot.lane.b32.xlu0 %v2025, 80
    %v2034 = vpop.permute.xlu0 %2033
    %2035 = vrot.lane.b32.xlu0 %v2026, 80
    %v2036 = vpop.permute.xlu0 %2035
    %2037 = vrot.lane.b32.xlu0 %v2027, 80
    %v2038 = vpop.permute.xlu0 %2037
    %2039 = vrot.lane.b32.xlu0 %v2028, 80
    %v2040 = vpop.permute.xlu0 %2039
    %2045 = vst.msk [vmem:[#allocation2] sm:$0xf] %vm367, %v2034
    %2046 = vst.msk [vmem:[#allocation2 + $0x8] sm:$0xf] %vm367, %v2036
    %2047 = vst.msk [vmem:[#allocation2 + $0x10] sm:$0xf] %vm367, %v2038
    %2048 = vst.msk [vmem:[#allocation2 + $0x18] sm:$0xf] %vm367, %v2040
    %v2049 = vmul.f32 %v1867, %v375
    %v2050 = vmul.f32 %v1866, %v380
    %v2051 = vmul.f32 %v1865, %v385
    %v2052 = vmul.f32 %v1868, %v390
    %v2053 = vpack.c.bf16 %v2049, %v2049
    %v2054 = vpack.c.bf16 %v2050, %v2050
    %v2055 = vpack.c.bf16 %v2051, %v2051
    %v2056 = vpack.c.bf16 %v2052, %v2052
    %2061 = vrot.lane.b32.xlu0 %v2053, 96
    %v2062 = vpop.permute.xlu0 %2061
    %2063 = vrot.lane.b32.xlu0 %v2054, 96
    %v2064 = vpop.permute.xlu0 %2063
    %2065 = vrot.lane.b32.xlu0 %v2055, 96
    %v2066 = vpop.permute.xlu0 %2065
    %2067 = vrot.lane.b32.xlu0 %v2056, 96
    %v2068 = vpop.permute.xlu0 %2067
    %2073 = vst.msk [vmem:[#allocation2] sm:$0xf] %vm416, %v2062
    %2074 = vst.msk [vmem:[#allocation2 + $0x8] sm:$0xf] %vm416, %v2064
    %2075 = vst.msk [vmem:[#allocation2 + $0x10] sm:$0xf] %vm416, %v2066
    %2076 = vst.msk [vmem:[#allocation2 + $0x18] sm:$0xf] %vm416, %v2068
    %v2077 = vmul.f32 %v1887, %v424
    %v2078 = vmul.f32 %v1886, %v429
    %v2079 = vmul.f32 %v1885, %v434
    %v2080 = vmul.f32 %v1888, %v439
    %v2081 = vpack.c.bf16 %v2077, %v2077
    %v2082 = vpack.c.bf16 %v2078, %v2078
    %v2083 = vpack.c.bf16 %v2079, %v2079
    %v2084 = vpack.c.bf16 %v2080, %v2080
    %2089 = vrot.lane.b32.xlu0 %v2081, 112
    %v2090 = vpop.permute.xlu0 %2089
    %2091 = vrot.lane.b32.xlu0 %v2082, 112
    %v2092 = vpop.permute.xlu0 %2091
    %2093 = vrot.lane.b32.xlu0 %v2083, 112
    %v2094 = vpop.permute.xlu0 %2093
    %2095 = vrot.lane.b32.xlu0 %v2084, 112
    %v2096 = vpop.permute.xlu0 %2095
    %2101 = vst.msk [vmem:[#allocation2] sm:$0xf] %vm465, %v2090
    %2102 = vst.msk [vmem:[#allocation2 + $0x8] sm:$0xf] %vm465, %v2092
    %2103 = vst.msk [vmem:[#allocation2 + $0x10] sm:$0xf] %vm465, %v2094
    %2104 = vst.msk [vmem:[#allocation2 + $0x18] sm:$0xf] %vm465, %v2096
    %v2105 = vmul.f32 %v1923, %v473
    %v2106 = vmul.f32 %v1922, %v478
    %v2107 = vmul.f32 %v1921, %v483
    %v2108 = vmul.f32 %v1924, %v488
    %v2109 = vpack.c.bf16 %v2105, %v2105
    %v2110 = vpack.c.bf16 %v2106, %v2106
    %v2111 = vpack.c.bf16 %v2107, %v2107
    %v2112 = vpack.c.bf16 %v2108, %v2108
    %2113 = vst.msk [vmem:[#allocation2 + $0x4] sm:$0xf] %vm110, %v2109
    %2114 = vst.msk [vmem:[#allocation2 + $0xc] sm:$0xf] %vm110, %v2110
    %2115 = vst.msk [vmem:[#allocation2 + $0x14] sm:$0xf] %vm110, %v2111
    %2116 = vst.msk [vmem:[#allocation2 + $0x1c] sm:$0xf] %vm110, %v2112
    %v2117 = vld [vmem:[#allocation2] sm:$0xff]
    %v2118 = vld [vmem:[#allocation2 + $0x8] sm:$0xff]
    %v2119 = vld [vmem:[#allocation2 + $0x10] sm:$0xff]
    %v2120 = vld [vmem:[#allocation2 + $0x18] sm:$0xff]
    %s2121 = scalar_lea.vmem %s2, 288
    %v2122 = vld [vmem:[%s2121] sm:$0xf]
    %v2123 = vld [vmem:[%s2121 + $0x4] sm:$0xf]
    %v2124 = vld [vmem:[%s2121 + $0x8] sm:$0xf]
    %v2125 = vld [vmem:[%s2121 + $0xc] sm:$0xf]
    %v2126 = vld [vmem:[%s2121 + $0x10] sm:$0xf]
    %v2127 = vld [vmem:[%s2121 + $0x14] sm:$0xf]
    %v2128 = vld [vmem:[%s2121 + $0x18] sm:$0xf]
    %v2129 = vld [vmem:[%s2121 + $0x1c] sm:$0xf]
    %v2130 = vld [vmem:[%s2121 + $0x20] sm:$0xf]
    %v2131 = vld [vmem:[%s2121 + $0x24] sm:$0xf]
    %v2132 = vld [vmem:[%s2121 + $0x28] sm:$0xf]
    %v2133 = vld [vmem:[%s2121 + $0x2c] sm:$0xf]
    %v2134 = vld [vmem:[%s2121 + $0x30] sm:$0xf]
    %v2135 = vld [vmem:[%s2121 + $0x34] sm:$0xf]
    %v2136 = vld [vmem:[%s2121 + $0x38] sm:$0xf]
    %v2137 = vld [vmem:[%s2121 + $0x3c] sm:$0xf]
    %v2138 = vld [vmem:[%s2121 + $0x40] sm:$0xf]
    %v2139 = vld [vmem:[%s2121 + $0x44] sm:$0xf]
    %s2140 = scalar_lea.vmem %s3, 4
    %v2141 = vld [vmem:[%s2140] sm:$0x1]
    %v2143 = vperm.slane %v2141, 0
    %v2149 = vunpack.c.l.b16 %v2117
    %v2150 = vunpack.c.h.b16 %v2117
    %v2151 = vunpack.c.l.b16 %v2118
    %v2152 = vunpack.c.h.b16 %v2118
    %v2153 = vunpack.c.l.b16 %v2119
    %v2154 = vunpack.c.h.b16 %v2119
    %v2155 = vunpack.c.l.b16 %v2120
    %v2156 = vunpack.c.h.b16 %v2120
    %v2157 = vpack.c.b16 %v2151, %v2149
    %v2158 = vpack.c.b16 %v2152, %v2150
    %v2159 = vpack.c.b16 %v2155, %v2153
    %v2160 = vpack.c.b16 %v2156, %v2154
    %v2181 = vunpack.c.l.b16 %v2122
    %v2182 = vunpack.c.l.b16 %v2123
    %v2183 = vunpack.c.l.b16 %v2124
    %v2184 = vunpack.c.l.b16 %v2125
    %v2185 = vunpack.c.l.b16 %v2126
    %v2186 = vunpack.c.l.b16 %v2127
    %v2187 = vunpack.c.l.b16 %v2128
    %v2188 = vunpack.c.l.b16 %v2129
    %v2189 = vunpack.c.l.b16 %v2130
    %v2190 = vunpack.c.l.b16 %v2131
    %v2191 = vunpack.c.l.b16 %v2132
    %v2192 = vunpack.c.l.b16 %v2133
    %v2193 = vunpack.c.l.b16 %v2134
    %v2194 = vunpack.c.l.b16 %v2135
    %v2195 = vunpack.c.l.b16 %v2136
    %v2196 = vunpack.c.l.b16 %v2137
    %v2197 = vunpack.c.l.b16 %v2138
    %v2198 = vunpack.c.l.b16 %v2139
    %v2199 = vpack.c.b16 %v2182, %v2181
    %v2200 = vpack.c.b16 %v2184, %v2183
    %v2201 = vpack.c.b16 %v2186, %v2185
    %v2202 = vpack.c.b16 %v2188, %v2187
    %v2203 = vpack.c.b16 %v2190, %v2189
    %v2204 = vpack.c.b16 %v2192, %v2191
    %v2205 = vpack.c.b16 %v2194, %v2193
    %v2206 = vpack.c.b16 %v2196, %v2195
    %v2207 = vpack.c.b16 %v2198, %v2197
    %v2218 = vsel %vm600, %v2158, 0
    %v2221 = vsel %vm600, %v2160, 0
    %2223 = vmatpush.bf16.msra.mxu0 %v2206
    %2224 = vmatpush.bf16.msra.mxu0 %v2205
    %2225 = vmatpush.bf16.msra.mxu0 %v2204
    %2226 = vmatpush.bf16.msra.mxu0 %v2203
    %2227 = vmatpush.bf16.msra.mxu0 %v2202
    %2228 = vmatpush.bf16.msra.mxu0 %v2201
    %2229 = vmatpush.bf16.msra.mxu0 %v2200
    %2230 = vmatpush.bf16.msra.mxu0 %v2199
    %2231 = vmatmul.bf16.gmra.mxu0 %v2157
    %v2232 = vpop.f32.mrf.mxu0
    %v2233 = vadd.f32 %v2143, %v2232
    %v2234 = vpop.f32.mrf.mxu0
    %v2235 = vadd.f32 %v2143, %v2234
    %2236 = vmatmul.bf16.gmra.mxu0 %v2159
    %v2237 = vpop.f32.mrf.mxu0
    %v2238 = vadd.f32 %v2143, %v2237
    %v2239 = vpop.f32.mrf.mxu0
    %v2240 = vadd.f32 %v2143, %v2239
    %2241 = vdwg.mxu0
    %2242 = vmatpush.bf16.msra.mxu0 0
    %2243 = vmatpush.bf16.msra.mxu0 0
    %2244 = vmatpush.bf16.msra.mxu0 0
    %2245 = vmatpush.bf16.msra.mxu0 0
    %2246 = vmatpush.bf16.msra.mxu0 0
    %2247 = vmatpush.bf16.msra.mxu0 0
    %2248 = vmatpush.bf16.msra.mxu0 0
    %2249 = vmatpush.bf16.msra.mxu0 %v2207
    %2250 = vmatmul.bf16.gmra.mxu0 %v2218
    %v2251 = vpop.f32.mrf.mxu0
    %v2252 = vadd.f32 %v2233, %v2251
    %v2253 = vpop.f32.mrf.mxu0
    %v2254 = vadd.f32 %v2235, %v2253
    %2255 = vmatmul.bf16.gmra.mxu0 %v2221
    %v2256 = vpop.f32.mrf.mxu0
    %v2257 = vadd.f32 %v2238, %v2256
    %v2258 = vpop.f32.mrf.mxu0
    %v2259 = vadd.f32 %v2240, %v2258
    %2260 = vdwg.mxu0
    %v2261 = vmax.f32 %v2252, 0.0
    %v2262 = vmax.f32 %v2254, 0.0
    %v2263 = vmax.f32 %v2257, 0.0
    %v2264 = vmax.f32 %v2259, 0.0
    %2265 = vst.msk [vmem:[#allocation3] sm:$0xff] %vm600, %v2261
    %2266 = vst.msk [vmem:[#allocation3 + $0x8] sm:$0xff] %vm600, %v2262
    %2267 = vst.msk [vmem:[#allocation3 + $0x10] sm:$0xff] %vm600, %v2263
    %2268 = vst.msk [vmem:[#allocation3 + $0x18] sm:$0xff] %vm600, %v2264
    %v2269 = vld [vmem:[#allocation3] ss:$16 sm:$0x3]
    %v2270 = vpack.c.bf16 %v2269, %v2269
    %vm2271 = vcmask 122880
    %2272 = vst.msk [vmem:[#allocation4] sm:$0x1] %vm2271, %v2270
    %s2273 = scalar_lea.vmem [#allocation3], 1
    %v2274 = vld [vmem:[%s2273] ss:$16 sm:$0x3]
    %v2275 = vpack.c.bf16 %v2274, %v2274
    %v2277 = vrot.slane %v2275, 3
    %vm2278 = vcmask 1040384
    %v2281 = vsel %vm2278, %v2275, %v2277
    %2283 = vrot.lane.b32.xlu0 %v2281, 16
    %v2284 = vpop.permute.xlu0 %2283
    %vm2286 = vcmask 254080
    %2287 = vst.msk [vmem:[#allocation4] sm:$0x1] %vm2286, %v2284
    %s2288 = scalar_lea.vmem [#allocation3], 2
    %v2289 = vld [vmem:[%s2288] ss:$16 sm:$0x3]
    %v2290 = vpack.c.bf16 %v2289, %v2289
    %v2292 = vrot.slane %v2290, 3
    %v2295 = vsel %vm2278, %v2290, %v2292
    %2297 = vrot.lane.b32.xlu0 %v2295, 32
    %v2298 = vpop.permute.xlu0 %2297
    %vm2300 = vcmask 385280
    %2301 = vst.msk [vmem:[#allocation4] sm:$0x1] %vm2300, %v2298
    %s2302 = scalar_lea.vmem [#allocation3], 3
    %v2303 = vld [vmem:[%s2302] ss:$16 sm:$0x3]
    %v2304 = vpack.c.bf16 %v2303, %v2303
    %v2306 = vrot.slane %v2304, 3
    %v2309 = vsel %vm2278, %v2304, %v2306
    %2311 = vrot.lane.b32.xlu0 %v2309, 48
    %v2312 = vpop.permute.xlu0 %2311
    %vm2314 = vcmask 516480
    %2315 = vst.msk [vmem:[#allocation4] sm:$0x1] %vm2314, %v2312
    %s2316 = scalar_lea.vmem [#allocation3], 4
    %v2317 = vld [vmem:[%s2316] ss:$16 sm:$0x3]
    %v2318 = vpack.c.bf16 %v2317, %v2317
    %v2320 = vrot.slane %v2318, 3
    %v2323 = vsel %vm2278, %v2318, %v2320
    %2325 = vrot.lane.b32.xlu0 %v2323, 64
    %v2326 = vpop.permute.xlu0 %2325
    %vm2328 = vcmask 647680
    %2329 = vst.msk [vmem:[#allocation4] sm:$0x1] %vm2328, %v2326
    %s2330 = scalar_lea.vmem [#allocation3], 5
    %v2331 = vld [vmem:[%s2330] ss:$16 sm:$0x3]
    %v2332 = vpack.c.bf16 %v2331, %v2331
    %v2334 = vrot.slane %v2332, 3
    %v2337 = vsel %vm2278, %v2332, %v2334
    %2339 = vrot.lane.b32.xlu0 %v2337, 80
    %v2340 = vpop.permute.xlu0 %2339
    %vm2342 = vcmask 778880
    %2343 = vst.msk [vmem:[#allocation4] sm:$0x1] %vm2342, %v2340
    %s2344 = scalar_lea.vmem [#allocation3], 6
    %v2345 = vld [vmem:[%s2344] ss:$16 sm:$0x3]
    %v2346 = vpack.c.bf16 %v2345, %v2345
    %v2348 = vrot.slane %v2346, 3
    %v2351 = vsel %vm2278, %v2346, %v2348
    %2353 = vrot.lane.b32.xlu0 %v2351, 96
    %v2354 = vpop.permute.xlu0 %2353
    %vm2356 = vcmask 910080
    %2357 = vst.msk [vmem:[#allocation4] sm:$0x1] %vm2356, %v2354
    %s2358 = scalar_lea.vmem [#allocation3], 7
    %v2359 = vld [vmem:[%s2358] ss:$16 sm:$0x3]
    %v2360 = vpack.c.bf16 %v2359, %v2359
    %v2362 = vrot.slane %v2360, 3
    %v2365 = vsel %vm2278, %v2360, %v2362
    %2367 = vrot.lane.b32.xlu0 %v2365, 112
    %v2368 = vpop.permute.xlu0 %2367
    %vm2370 = vcmask 1041280
    %2371 = vst.msk [vmem:[#allocation4] sm:$0x1] %vm2370, %v2368
    %s2372 = scalar_lea.vmem [#allocation3], 8
    %v2373 = vld [vmem:[%s2372] ss:$16 sm:$0x3]
    %v2374 = vpack.c.bf16 %v2373, %v2373
    %2375 = vst.msk [vmem:[#allocation4 + $0x1] sm:$0x1] %vm2271, %v2374
    %s2376 = scalar_lea.vmem [#allocation3], 9
    %v2377 = vld [vmem:[%s2376] ss:$16 sm:$0x3]
    %v2378 = vpack.c.bf16 %v2377, %v2377
    %v2380 = vrot.slane %v2378, 3
    %v2383 = vsel %vm2278, %v2378, %v2380
    %2385 = vrot.lane.b32.xlu0 %v2383, 16
    %v2386 = vpop.permute.xlu0 %2385
    %2388 = vst.msk [vmem:[#allocation4 + $0x1] sm:$0x1] %vm2286, %v2386
    %s2389 = scalar_lea.vmem [#allocation3], 10
    %v2390 = vld [vmem:[%s2389] ss:$16 sm:$0x3]
    %v2391 = vpack.c.bf16 %v2390, %v2390
    %v2393 = vrot.slane %v2391, 3
    %v2396 = vsel %vm2278, %v2391, %v2393
    %2398 = vrot.lane.b32.xlu0 %v2396, 32
    %v2399 = vpop.permute.xlu0 %2398
    %2401 = vst.msk [vmem:[#allocation4 + $0x1] sm:$0x1] %vm2300, %v2399
    %s2402 = scalar_lea.vmem [#allocation3], 11
    %v2403 = vld [vmem:[%s2402] ss:$16 sm:$0x3]
    %v2404 = vpack.c.bf16 %v2403, %v2403
    %v2406 = vrot.slane %v2404, 3
    %v2409 = vsel %vm2278, %v2404, %v2406
    %2411 = vrot.lane.b32.xlu0 %v2409, 48
    %v2412 = vpop.permute.xlu0 %2411
    %2414 = vst.msk [vmem:[#allocation4 + $0x1] sm:$0x1] %vm2314, %v2412
    %s2415 = scalar_lea.vmem [#allocation3], 12
    %v2416 = vld [vmem:[%s2415] ss:$16 sm:$0x3]
    %v2417 = vpack.c.bf16 %v2416, %v2416
    %v2419 = vrot.slane %v2417, 3
    %v2422 = vsel %vm2278, %v2417, %v2419
    %2424 = vrot.lane.b32.xlu0 %v2422, 64
    %v2425 = vpop.permute.xlu0 %2424
    %2427 = vst.msk [vmem:[#allocation4 + $0x1] sm:$0x1] %vm2328, %v2425
    %s2428 = scalar_lea.vmem [#allocation3], 13
    %v2429 = vld [vmem:[%s2428] ss:$16 sm:$0x3]
    %v2430 = vpack.c.bf16 %v2429, %v2429
    %v2432 = vrot.slane %v2430, 3
    %v2435 = vsel %vm2278, %v2430, %v2432
    %2437 = vrot.lane.b32.xlu0 %v2435, 80
    %v2438 = vpop.permute.xlu0 %2437
    %2440 = vst.msk [vmem:[#allocation4 + $0x1] sm:$0x1] %vm2342, %v2438
    %s2441 = scalar_lea.vmem [#allocation3], 14
    %v2442 = vld [vmem:[%s2441] ss:$16 sm:$0x3]
    %v2443 = vpack.c.bf16 %v2442, %v2442
    %v2445 = vrot.slane %v2443, 3
    %v2448 = vsel %vm2278, %v2443, %v2445
    %2450 = vrot.lane.b32.xlu0 %v2448, 96
    %v2451 = vpop.permute.xlu0 %2450
    %2453 = vst.msk [vmem:[#allocation4 + $0x1] sm:$0x1] %vm2356, %v2451
    %s2454 = scalar_lea.vmem [#allocation3], 15
    %v2455 = vld [vmem:[%s2454] ss:$16 sm:$0x3]
    %v2456 = vpack.c.bf16 %v2455, %v2455
    %v2458 = vrot.slane %v2456, 3
    %v2461 = vsel %vm2278, %v2456, %v2458
    %2463 = vrot.lane.b32.xlu0 %v2461, 112
    %v2464 = vpop.permute.xlu0 %2463
    %2466 = vst.msk [vmem:[#allocation4 + $0x1] sm:$0x1] %vm2370, %v2464
    %v2467 = vld [vmem:[#allocation4] sm:$0x3]
    %v2468 = vld [vmem:[%s4] sm:$0xf]
    %v2469 = vld [vmem:[%s4 + $0x4] sm:$0xf]
    %v2470 = vld [vmem:[%s4 + $0x8] sm:$0xf]
    %v2471 = vld [vmem:[%s4 + $0xc] sm:$0xf]
    %v2472 = vld [vmem:[%s4 + $0x10] sm:$0xf]
    %v2473 = vld [vmem:[%s4 + $0x14] sm:$0xf]
    %v2474 = vld [vmem:[%s4 + $0x18] sm:$0xf]
    %v2475 = vld [vmem:[%s4 + $0x1c] sm:$0xf]
    %v2476 = vld [vmem:[%s4 + $0x20] sm:$0xf]
    %v2477 = vld [vmem:[%s4 + $0x24] sm:$0xf]
    %v2478 = vld [vmem:[%s4 + $0x28] sm:$0xf]
    %v2479 = vld [vmem:[%s4 + $0x2c] sm:$0xf]
    %v2480 = vld [vmem:[%s4 + $0x30] sm:$0xf]
    %v2481 = vld [vmem:[%s4 + $0x34] sm:$0xf]
    %v2482 = vld [vmem:[%s4 + $0x38] sm:$0xf]
    %v2483 = vld [vmem:[%s4 + $0x3c] sm:$0xf]
    %v2484 = vld [vmem:[%s4 + $0x40] sm:$0xf]
    %v2485 = vld [vmem:[%s4 + $0x44] sm:$0xf]
    %v2486 = vld [vmem:[%s4 + $0x48] sm:$0xf]
    %v2487 = vld [vmem:[%s4 + $0x4c] sm:$0xf]
    %v2488 = vld [vmem:[%s4 + $0x50] sm:$0xf]
    %v2489 = vld [vmem:[%s4 + $0x54] sm:$0xf]
    %v2490 = vld [vmem:[%s4 + $0x58] sm:$0xf]
    %v2491 = vld [vmem:[%s4 + $0x5c] sm:$0xf]
    %v2492 = vld [vmem:[%s4 + $0x60] sm:$0xf]
    %v2493 = vld [vmem:[%s4 + $0x64] sm:$0xf]
    %v2494 = vld [vmem:[%s4 + $0x68] sm:$0xf]
    %v2495 = vld [vmem:[%s4 + $0x6c] sm:$0xf]
    %v2496 = vld [vmem:[%s4 + $0x70] sm:$0xf]
    %v2497 = vld [vmem:[%s4 + $0x74] sm:$0xf]
    %v2498 = vld [vmem:[%s4 + $0x78] sm:$0xf]
    %v2499 = vld [vmem:[%s4 + $0x7c] sm:$0xf]
    %v2500 = vld [vmem:[%s6] sm:$0x1]
    %v2502 = vperm.slane %v2500, 0
    %2505 = vst [vmem:[#allocation1] ss:$9 sm:$0xff] %v2467
    %v2506 = vld [vmem:[#allocation1] sm:$0xff]
    %v2507 = vld [vmem:[#allocation1 + $0x9] sm:$0xff]
    %v2542 = vunpack.c.l.b16 %v2468
    %v2543 = vunpack.c.l.b16 %v2469
    %v2544 = vunpack.c.l.b16 %v2470
    %v2545 = vunpack.c.l.b16 %v2471
    %v2546 = vunpack.c.l.b16 %v2472
    %v2547 = vunpack.c.l.b16 %v2473
    %v2548 = vunpack.c.l.b16 %v2474
    %v2549 = vunpack.c.l.b16 %v2475
    %v2550 = vunpack.c.l.b16 %v2476
    %v2551 = vunpack.c.l.b16 %v2477
    %v2552 = vunpack.c.l.b16 %v2478
    %v2553 = vunpack.c.l.b16 %v2479
    %v2554 = vunpack.c.l.b16 %v2480
    %v2555 = vunpack.c.l.b16 %v2481
    %v2556 = vunpack.c.l.b16 %v2482
    %v2557 = vunpack.c.l.b16 %v2483
    %v2558 = vunpack.c.l.b16 %v2484
    %v2559 = vunpack.c.l.b16 %v2485
    %v2560 = vunpack.c.l.b16 %v2486
    %v2561 = vunpack.c.l.b16 %v2487
    %v2562 = vunpack.c.l.b16 %v2488
    %v2563 = vunpack.c.l.b16 %v2489
    %v2564 = vunpack.c.l.b16 %v2490
    %v2565 = vunpack.c.l.b16 %v2491
    %v2566 = vunpack.c.l.b16 %v2492
    %v2567 = vunpack.c.l.b16 %v2493
    %v2568 = vunpack.c.l.b16 %v2494
    %v2569 = vunpack.c.l.b16 %v2495
    %v2570 = vunpack.c.l.b16 %v2496
    %v2571 = vunpack.c.l.b16 %v2497
    %v2572 = vunpack.c.l.b16 %v2498
    %v2573 = vunpack.c.l.b16 %v2499
    %v2574 = vpack.c.b16 %v2543, %v2542
    %v2575 = vpack.c.b16 %v2545, %v2544
    %v2576 = vpack.c.b16 %v2547, %v2546
    %v2577 = vpack.c.b16 %v2549, %v2548
    %v2578 = vpack.c.b16 %v2551, %v2550
    %v2579 = vpack.c.b16 %v2553, %v2552
    %v2580 = vpack.c.b16 %v2555, %v2554
    %v2581 = vpack.c.b16 %v2557, %v2556
    %v2582 = vpack.c.b16 %v2559, %v2558
    %v2583 = vpack.c.b16 %v2561, %v2560
    %v2584 = vpack.c.b16 %v2563, %v2562
    %v2585 = vpack.c.b16 %v2565, %v2564
    %v2586 = vpack.c.b16 %v2567, %v2566
    %v2587 = vpack.c.b16 %v2569, %v2568
    %v2588 = vpack.c.b16 %v2571, %v2570
    %v2589 = vpack.c.b16 %v2573, %v2572
    %2606 = vmatpush.bf16.msra.mxu0 %v2581
    %2607 = vmatpush.bf16.msra.mxu0 %v2580
    %2608 = vmatpush.bf16.msra.mxu0 %v2579
    %2609 = vmatpush.bf16.msra.mxu0 %v2578
    %2610 = vmatpush.bf16.msra.mxu0 %v2577
    %2611 = vmatpush.bf16.msra.mxu0 %v2576
    %2612 = vmatpush.bf16.msra.mxu0 %v2575
    %2613 = vmatpush.bf16.msra.mxu0 %v2574
    %2614 = vmatmul.bf16.gmra.mxu0 %v2506
    %v2615 = vpop.f32.mrf.mxu0
    %v2616 = vadd.f32 %v2502, %v2615
    %v2617 = vpop.f32.mrf.mxu0
    %2618 = vdwg.mxu0
    %2619 = vmatpush.bf16.msra.mxu0 %v2589
    %2620 = vmatpush.bf16.msra.mxu0 %v2588
    %2621 = vmatpush.bf16.msra.mxu0 %v2587
    %2622 = vmatpush.bf16.msra.mxu0 %v2586
    %2623 = vmatpush.bf16.msra.mxu0 %v2585
    %2624 = vmatpush.bf16.msra.mxu0 %v2584
    %2625 = vmatpush.bf16.msra.mxu0 %v2583
    %2626 = vmatpush.bf16.msra.mxu0 %v2582
    %2627 = vmatmul.bf16.gmra.mxu0 %v2507
    %v2628 = vpop.f32.mrf.mxu0
    %v2629 = vadd.f32 %v2616, %v2628
    %v2630 = vpop.f32.mrf.mxu0
    %2631 = vdwg.mxu0
    %v2632 = vmax.f32 %v2629, 0.0
    %v2633 = vpack.c.bf16 %v2632, %v2632
    %v2634 = vld [vmem:[%s5] sm:$0xf]
    %v2635 = vld [vmem:[%s6] sm:$0x1]
    %v2637 = vperm.slane %v2635, 0
    %2638 = vrot.lane.b32.xlu0 %v2637, 120
    %v2639 = vpop.permute.xlu0 %2638
    %vm2641 = vcmask 64512
    %v2643 = vsel %vm2641, %v2633, 0
    %vm2645 = vcmask 1043456
    %v2647 = vsel %vm2645, %v2634, 0
    %2649 = vmatpush.bf16.msra.mxu0 0
    %2650 = vmatpush.bf16.msra.mxu0 0
    %2651 = vmatpush.bf16.msra.mxu0 0
    %2652 = vmatpush.bf16.msra.mxu0 0
    %2653 = vmatpush.bf16.msra.mxu0 0
    %2654 = vmatpush.bf16.msra.mxu0 0
    %2655 = vmatpush.bf16.msra.mxu0 0
    %2656 = vmatpush.bf16.msra.mxu0 %v2647
    %2657 = vmatmul.bf16.gmra.mxu0 %v2643
    %v2658 = vpop.f32.mrf.mxu0
    %v2659 = vadd.f32 %v2639, %v2658
    %v2660 = vpop.f32.mrf.mxu0
    %2661 = vdwg.mxu0
    %v2662 = vmax.f32 %v2659, 0.0
    %v2663 = vpack.c.bf16 %v2662, %v2662
    %v2665 = vunpack.c.l.b16 %v2634
    %v2666 = vpack.c.b16 %v2665, %v2665
    %2667 = vrot.lane.b32.xlu0 %v2666, 120
    %v2668 = vpop.permute.xlu0 %2667
    %2669 = vrot.lane.b32.xlu0 %v2637, 112
    %v2670 = vpop.permute.xlu0 %2669
    %v2673 = vsel %vm2641, %v2663, 0
    %v2676 = vsel %vm2645, %v2668, 0
    %2678 = vmatpush.bf16.msra.mxu0 0
    %2679 = vmatpush.bf16.msra.mxu0 0
    %2680 = vmatpush.bf16.msra.mxu0 0
    %2681 = vmatpush.bf16.msra.mxu0 0
    %2682 = vmatpush.bf16.msra.mxu0 0
    %2683 = vmatpush.bf16.msra.mxu0 0
    %2684 = vmatpush.bf16.msra.mxu0 0
    %2685 = vmatpush.bf16.msra.mxu0 %v2676
    %2686 = vmatmul.bf16.gmra.mxu0 %v2673
    %v2687 = vpop.f32.mrf.mxu0
    %v2688 = vadd.f32 %v2670, %v2687
    %v2689 = vpop.f32.mrf.mxu0
    %2690 = vdwg.mxu0
    %vm2691 = vcmask 9216
    %v2692 = vsel %vm2691, %v2688, -inf
    %2693 = vmax.xlane.f32.xlu0 %v2692
    %v2694 = vpop.xlane.xlu0 %2693
    %v2695 = vsub.f32 %v2688, %v2694
    %v2696 = vmul.f32 %v2695, 1.442695
    %v2697 = vpow.pop %v2696
    %v2698 = vsel %vm2691, %v2697, 0.0
    %2699 = vadd.xlane.f32.xlu0 %v2698
    %v2700 = vpop.xlane.xlu0 %2699
    %v2701 = vlog2.pop %v2700
    %v2702 = vmul.f32 %v2701, 0.6931472
    %v2703 = vsub.f32 %v2695, %v2702
    %2704 = vst.msk [vmem:[#allocation5] sm:$0x3] %vm2691, %v2703
    // Predicated region
    $region30: #{discriminator_forward.1} parent=1 // pred_check
      _
    $region31: #{discriminator_forward.1} parent=1 // pred_check_branch
      %2706 = sbr.rel (0) target = $region33
    $region32: #{discriminator_forward.1} parent=1 // pred_region
      %2708 = vsyncadd [#allocation6], 0
      %s2710 = sshll.u32 [#allocation5], 4
      %s2711 = int_to_ptr.vmem [resolvable:$true] %s2710
      %s2712 = sshll.u32 %s7, 4
      %s2713 = int_to_ptr.hbm [resolvable:$true] %s2712
      %2715 = dma.vmem_to_hbm [thread:$0]  %s2711, 32, %s2713, [#allocation6]
    $region33: #{discriminator_forward.1} parent=1 // pred_fallthru
      _
    // Predicated region
    $region34: #{discriminator_forward.1} parent=1 // pred_check
      _
    $region35: #{discriminator_forward.1} parent=1 // pred_check_branch
      %2717 = sbr.rel (0) target = $region37
    $region36: #{discriminator_forward.1} parent=1 // pred_region
      %2719 = dma.done [#allocation6], 32
    $region37: #{discriminator_forward.1} parent=1 // pred_fallthru
      _
    %2720 = vsyncpa [#allocation6], 1

</llo_original>
